<compile_context>
chip_gen: v7x
topology: tpu7x:2x2x1
jax: 0.10.0
libtpu: 0.0.40
codegen_flags: <defaults>
</compile_context>

<pallas_src>
import math

import jax
import jax.numpy as jnp
from jax import lax
from jax.experimental import pallas as pl
from jax.experimental.pallas import tpu as pltpu

# ----------------------------- small ViT config ------------------------------
B = 2                     # batch
C = 3                     # in_channels (module default)
IMG = 16                  # img_size
PATCH = 4                 # config.patches['size']
HIDDEN = 32               # config.hidden_size
HEADS = 4                 # config.transformer['num_heads']
HEAD_DIM = HIDDEN // HEADS
MLP_DIM = 64              # config.transformer['mlp_dim']
LAYERS = 2                # config.transformer['num_layers']
N_PATCH = (IMG // PATCH) ** 2
S = N_PATCH + 1           # seq len incl. cls token
BS = B * S                # batch folded into rows
CPP = C * PATCH * PATCH   # flattened patch length
EPS = 1e-6
NEG_INF = -1e30

VMEM = pltpu.MemorySpace.VMEM


def _layernorm(x, g, b):
    mu = jnp.mean(x, axis=-1, keepdims=True)
    var = jnp.mean((x - mu) ** 2, axis=-1, keepdims=True)
    return (x - mu) * lax.rsqrt(var + EPS) * g + b


# ------------------------------- fused kernel --------------------------------
def transformer_kernel(tok_ref, add_ref, convw_ref, enc_ref,
                       wqkv_ref, bqkv_ref, wo_ref, w1_ref, b1_ref, w2_ref,
                       vecs_ref, o_ref):
    # Embeddings: patch matmul + additive term (cls token, position emb, conv
    # bias already folded into add_ref; cls rows of tok_ref are zero).
    x = (jnp.dot(tok_ref[...], convw_ref[...],
                 preferred_element_type=jnp.float32)
         + add_ref[...])                                      # (B*S, H)

    # ---- block-diagonal cross-image mask, generated in-kernel (no DMA). ----
    # Applied additively BEFORE the row max so max/sum only see in-image keys.
    row = lax.broadcasted_iota(jnp.int32, (BS, BS), 0)
    col = lax.broadcasted_iota(jnp.int32, (BS, BS), 1)
    same_img = jnp.zeros((BS, BS), jnp.bool_)
    for b in range(B):                                        # static unroll (B=2)
        rin = (row >= b * S) & (row < (b + 1) * S)
        cin = (col >= b * S) & (col < (b + 1) * S)
        same_img = same_img | (rin & cin)
    neg_mask = jnp.where(same_img, 0.0, NEG_INF)              # (BS, BS) f32

    # ---- per-head lane masks, materialized once at full (BS, HIDDEN). ----
    lane = lax.broadcasted_iota(jnp.int32, (BS, HIDDEN), 1)
    head_masks = [
        ((lane >= h * HEAD_DIM) & (lane < (h + 1) * HEAD_DIM)).astype(jnp.float32)
        for h in range(HEADS)
    ]

    for l in range(LAYERS):                                   # static unroll
        vec = vecs_ref[l]                                     # (6, H)
        ln1g, ln1b = vec[0:1, :], vec[1:2, :]
        bo = vec[2:3, :]
        ln2g, ln2b = vec[3:4, :], vec[4:5, :]
        b2 = vec[5:6, :]

        # ---------------- attention ----------------
        h_res = x
        xn = _layernorm(x, ln1g, ln1b)
        # 1/sqrt(HEAD_DIM) is folded into Wq / bq at pack time.
        qkv = (jnp.dot(xn, wqkv_ref[l], preferred_element_type=jnp.float32)
               + bqkv_ref[l])                                 # (B*S, 3H)
        q = qkv[:, 0:HIDDEN]
        k = qkv[:, HIDDEN:2 * HIDDEN]
        v = qkv[:, 2 * HIDDEN:3 * HIDDEN]

        ctx = None
        for hm in head_masks:
            # mask Q (not K): same un-masked K for all heads -> one transpose.
            s = lax.dot_general(q * hm, k, (((1,), (1,)), ((), ())),
                                preferred_element_type=jnp.float32)
            s = s + neg_mask                                  # -1e30 off-image
            e = jnp.exp(s - jnp.max(s, axis=-1, keepdims=True))
            p = e / jnp.sum(e, axis=-1, keepdims=True)        # exact divide
            term = jnp.dot(p, v * hm, preferred_element_type=jnp.float32)
            ctx = term if ctx is None else ctx + term         # disjoint columns
        x = jnp.dot(ctx, wo_ref[l], preferred_element_type=jnp.float32) + bo
        x = x + h_res

        # ---------------- MLP ----------------
        h_res = x
        xn = _layernorm(x, ln2g, ln2b)
        y = jnp.dot(xn, w1_ref[l], preferred_element_type=jnp.float32) + b1_ref[l]
        y = 0.5 * y * (1.0 + lax.erf(y * (1.0 / math.sqrt(2.0))))   # exact GELU
        y = jnp.dot(y, w2_ref[l], preferred_element_type=jnp.float32) + b2
        x = y + h_res

    # final encoder LayerNorm over all tokens
    enc = enc_ref[...]
    o_ref[...] = _layernorm(x, enc[0:1, :], enc[1:2, :])


# ------------------------------- host wrappers --------------------------------
def extract_tokens(x_img):
    # (B, C, IMG, IMG) NCHW -> (B*S, C*P*P); row b*S is all-zero (cls slot,
    # handled by the additive embedding term), patch vectors flattened (c,ph,pw)
    # to match Conv2d weight (O, C, P, P).reshape(O, -1).
    # TODO(synk): fold this layout shuffle into the kernel/BlockSpec to save one
    # dispatch; at 6.5 KB it is noise today.
    n = IMG // PATCH
    p = x_img.reshape(B, C, n, PATCH, n, PATCH)
    p = p.transpose(0, 2, 4, 1, 3, 5).reshape(B, N_PATCH, CPP)
    zero = jnp.zeros((B, 1, CPP), jnp.float32)
    return jnp.concatenate([zero, p], axis=1).reshape(BS, CPP)


def pack_params(params):
    # One-time host-side packing into few, coalesced kernel inputs.
    conv_w_flat = params["conv_w"].reshape(HIDDEN, CPP).T            # (CPP, H)
    # additive term: cls row = cls_token + pos[0]; patch rows = pos[i] + conv_b
    add = jnp.concatenate(
        [params["cls_token"] + params["pos_emb"][:, :1, :],
         params["pos_emb"][:, 1:, :] + params["conv_b"].reshape(1, 1, HIDDEN)],
        axis=1)                                                      # (1, S, H)
    add_flat = jnp.broadcast_to(add, (B, S, HIDDEN)).reshape(BS, HIDDEN)

    scale = 1.0 / math.sqrt(HEAD_DIM)
    wqkv, bqkv, wo, w1, b1, w2, vecs = [], [], [], [], [], [], []
    for lp in params["layers"]:
        # fold attention scale into the Q projection (weight AND bias)
        wqkv.append(jnp.concatenate([lp["wq"] * scale, lp["wk"], lp["wv"]],
                                    axis=1))
        bqkv.append(jnp.concatenate([lp["bq"] * scale, lp["bk"], lp["bv"]],
                                    axis=0).reshape(1, 3 * HIDDEN))
        wo.append(lp["wo"])
        w1.append(lp["w1"])
        b1.append(lp["b1"].reshape(1, MLP_DIM))
        w2.append(lp["w2"])
        vecs.append(jnp.stack([lp["ln1_g"], lp["ln1_b"], lp["bo"],
                               lp["ln2_g"], lp["ln2_b"], lp["b2"]], axis=0))
    enc = jnp.stack([params["enc_g"], params["enc_b"]], axis=0)      # (2, H)
    return dict(add_flat=add_flat, conv_w=conv_w_flat, enc=enc,
                wqkv=jnp.stack(wqkv), bqkv=jnp.stack(bqkv), wo=jnp.stack(wo),
                w1=jnp.stack(w1), b1=jnp.stack(b1), w2=jnp.stack(w2),
                vecs=jnp.stack(vecs))


@jax.jit
def transformer_forward(x_img, packed):
    tokens = extract_tokens(x_img)
    out_flat = pl.pallas_call(
        transformer_kernel,
        out_shape=jax.ShapeDtypeStruct((BS, HIDDEN), jnp.float32),
        in_specs=[pl.BlockSpec(memory_space=VMEM)] * 11,
        out_specs=pl.BlockSpec(memory_space=VMEM),
    )(tokens, packed["add_flat"], packed["conv_w"], packed["enc"],
      packed["wqkv"], packed["bqkv"], packed["wo"], packed["w1"],
      packed["b1"], packed["w2"], packed["vecs"])
    # module output: encoded tokens (B, S, H); attn_weights is None (vis=False)
    return out_flat.reshape(B, S, HIDDEN)


# ------------------------------ param init / ref -------------------------------
def init_params(key):
    def nrm(k, shape, scale=0.05):
        return scale * jax.random.normal(k, shape, dtype=jnp.float32)

    keys = iter(jax.random.split(key, 128))
    params = {
        "conv_w": nrm(next(keys), (HIDDEN, C, PATCH, PATCH)),   # Conv2d (O,I,kH,kW)
        "conv_b": nrm(next(keys), (HIDDEN,)),
        "cls_token": nrm(next(keys), (1, 1, HIDDEN)),
        "pos_emb": nrm(next(keys), (1, S, HIDDEN)),
        "enc_g": 1.0 + nrm(next(keys), (HIDDEN,)),
        "enc_b": nrm(next(keys), (HIDDEN,)),
        "layers": [],
    }
    for _ in range(LAYERS):
        params["layers"].append({
            "ln1_g": 1.0 + nrm(next(keys), (HIDDEN,)),
            "ln1_b": nrm(next(keys), (HIDDEN,)),
            "wq": nrm(next(keys), (HIDDEN, HIDDEN)),   # stored (in, out)
            "bq": nrm(next(keys), (HIDDEN,)),
            "wk": nrm(next(keys), (HIDDEN, HIDDEN)),
            "bk": nrm(next(keys), (HIDDEN,)),
            "wv": nrm(next(keys), (HIDDEN, HIDDEN)),
            "bv": nrm(next(keys), (HIDDEN,)),
            "wo": nrm(next(keys), (HIDDEN, HIDDEN)),
            "bo": nrm(next(keys), (HIDDEN,)),
            "ln2_g": 1.0 + nrm(next(keys), (HIDDEN,)),
            "ln2_b": nrm(next(keys), (HIDDEN,)),
            "w1": nrm(next(keys), (HIDDEN, MLP_DIM)),
            "b1": nrm(next(keys), (MLP_DIM,)),
            "w2": nrm(next(keys), (MLP_DIM, HIDDEN)),
            "b2": nrm(next(keys), (HIDDEN,)),
        })
    return params


def reference_forward(x_img, params):
    # Pure-JAX reference mirroring the PyTorch Transformer forward (eval mode).
    def ln(x, g, b):
        mu = jnp.mean(x, -1, keepdims=True)
        var = jnp.mean((x - mu) ** 2, -1, keepdims=True)
        return (x - mu) / jnp.sqrt(var + EPS) * g + b

    n = IMG // PATCH
    p = x_img.reshape(B, C, n, PATCH, n, PATCH).transpose(0, 2, 4, 1, 3, 5)
    patches = p.reshape(B, N_PATCH, CPP)
    emb = patches @ params["conv_w"].reshape(HIDDEN, CPP).T + params["conv_b"]
    cls = jnp.broadcast_to(params["cls_token"], (B, 1, HIDDEN))
    x = jnp.concatenate([cls, emb], axis=1) + params["pos_emb"]
    for lp in params["layers"]:
        h = x
        xn = ln(x, lp["ln1_g"], lp["ln1_b"])
        q = (xn @ lp["wq"] + lp["bq"]).reshape(B, S, HEADS, HEAD_DIM).transpose(0, 2, 1, 3)
        k = (xn @ lp["wk"] + lp["bk"]).reshape(B, S, HEADS, HEAD_DIM).transpose(0, 2, 1, 3)
        v = (xn @ lp["wv"] + lp["bv"]).reshape(B, S, HEADS, HEAD_DIM).transpose(0, 2, 1, 3)
        s = jnp.einsum("bhqd,bhkd->bhqk", q, k) / math.sqrt(HEAD_DIM)
        pr = jax.nn.softmax(s, axis=-1)
        ctx = jnp.einsum("bhqk,bhkd->bhqd", pr, v).transpose(0, 2, 1, 3)
        x = ctx.reshape(B, S, HIDDEN) @ lp["wo"] + lp["bo"] + h
        h = x
        xn = ln(x, lp["ln2_g"], lp["ln2_b"])
        y = xn @ lp["w1"] + lp["b1"]
        y = 0.5 * y * (1.0 + lax.erf(y / jnp.sqrt(2.0)))
        x = y @ lp["w2"] + lp["b2"] + h
    return ln(x, params["enc_g"], params["enc_b"])


# ------------------------------------ main -------------------------------------
if __name__ == "__main__":
    key = jax.random.PRNGKey(0)
    k_x, k_p = jax.random.split(key)
    x_img = jax.random.normal(k_x, (B, C, IMG, IMG), dtype=jnp.float32)  # NCHW
    params = init_params(k_p)
    packed = pack_params(params)

    out = transformer_forward(x_img, packed)
    out = jax.block_until_ready(out)

    ref = reference_forward(x_img, params)
    assert out.shape == (B, S, HIDDEN)
    assert bool(jnp.all(jnp.isfinite(out)))
    max_err = float(jnp.max(jnp.abs(out - ref)))
    assert max_err < 2e-3, max_err
    print("KERNEL_OK")
</pallas_src>

<mosaic_0001>
module attributes {stable_mosaic.version = 11 : i64} {
  func.func @transformer_kernel(%arg0: memref<34x48xf32, #tpu.memory_space<vmem>>, %arg1: memref<34x32xf32, #tpu.memory_space<vmem>>, %arg2: memref<48x32xf32, #tpu.memory_space<vmem>>, %arg3: memref<2x32xf32, #tpu.memory_space<vmem>>, %arg4: memref<2x32x96xf32, #tpu.memory_space<vmem>>, %arg5: memref<2x1x96xf32, #tpu.memory_space<vmem>>, %arg6: memref<2x32x32xf32, #tpu.memory_space<vmem>>, %arg7: memref<2x32x64xf32, #tpu.memory_space<vmem>>, %arg8: memref<2x1x64xf32, #tpu.memory_space<vmem>>, %arg9: memref<2x64x32xf32, #tpu.memory_space<vmem>>, %arg10: memref<2x6x32xf32, #tpu.memory_space<vmem>>, %arg11: memref<34x32xf32, #tpu.memory_space<vmem>>) attributes {dimension_semantics = [], scalar_prefetch = 0 : i64, scratch_operands = 0 : i64, tpu.core_type = #tpu.core_type<tc>} {
    %c0 = arith.constant 0 : index
    %c0_0 = arith.constant 0 : index
    %0 = vector.load %arg0[%c0, %c0_0] : memref<34x48xf32, #tpu.memory_space<vmem>>, vector<34x48xf32>
    %c0_1 = arith.constant 0 : index
    %c0_2 = arith.constant 0 : index
    %1 = vector.load %arg2[%c0_1, %c0_2] : memref<48x32xf32, #tpu.memory_space<vmem>>, vector<48x32xf32>
    %cst = arith.constant dense<0.000000e+00> : vector<34x32xf32>
    %2 = tpu.matmul %0, %1, %cst {dimension_numbers = #tpu.dot_dimension_numbers<[1], [0], [0], [1], [0, 0, 1, 1], [], []>} : vector<34x48xf32>, vector<48x32xf32>, vector<34x32xf32> -> vector<34x32xf32>
    %c0_3 = arith.constant 0 : index
    %c0_4 = arith.constant 0 : index
    %3 = vector.load %arg1[%c0_3, %c0_4] : memref<34x32xf32, #tpu.memory_space<vmem>>, vector<34x32xf32>
    %4 = arith.addf %2, %3 : vector<34x32xf32>
    %5 = tpu.iota {dimensions = array<i32: 0>} : vector<34x34xi32>
    %6 = tpu.iota {dimensions = array<i32: 1>} : vector<34x34xi32>
    %false = arith.constant false
    %7 = vector.broadcast %false : i1 to vector<34x34xi1>
    %c0_i32 = arith.constant 0 : i32
    %8 = vector.broadcast %c0_i32 : i32 to vector<34x34xi32>
    %9 = arith.cmpi sge, %5, %8 : vector<34x34xi32>
    %c17_i32 = arith.constant 17 : i32
    %10 = vector.broadcast %c17_i32 : i32 to vector<34x34xi32>
    %11 = arith.cmpi slt, %5, %10 : vector<34x34xi32>
    %12 = arith.andi %9, %11 : vector<34x34xi1>
    %c0_i32_5 = arith.constant 0 : i32
    %13 = vector.broadcast %c0_i32_5 : i32 to vector<34x34xi32>
    %14 = arith.cmpi sge, %6, %13 : vector<34x34xi32>
    %c17_i32_6 = arith.constant 17 : i32
    %15 = vector.broadcast %c17_i32_6 : i32 to vector<34x34xi32>
    %16 = arith.cmpi slt, %6, %15 : vector<34x34xi32>
    %17 = arith.andi %14, %16 : vector<34x34xi1>
    %18 = arith.andi %12, %17 : vector<34x34xi1>
    %19 = arith.ori %7, %18 : vector<34x34xi1>
    %c17_i32_7 = arith.constant 17 : i32
    %20 = vector.broadcast %c17_i32_7 : i32 to vector<34x34xi32>
    %21 = arith.cmpi sge, %5, %20 : vector<34x34xi32>
    %c34_i32 = arith.constant 34 : i32
    %22 = vector.broadcast %c34_i32 : i32 to vector<34x34xi32>
    %23 = arith.cmpi slt, %5, %22 : vector<34x34xi32>
    %24 = arith.andi %21, %23 : vector<34x34xi1>
    %c17_i32_8 = arith.constant 17 : i32
    %25 = vector.broadcast %c17_i32_8 : i32 to vector<34x34xi32>
    %26 = arith.cmpi sge, %6, %25 : vector<34x34xi32>
    %c34_i32_9 = arith.constant 34 : i32
    %27 = vector.broadcast %c34_i32_9 : i32 to vector<34x34xi32>
    %28 = arith.cmpi slt, %6, %27 : vector<34x34xi32>
    %29 = arith.andi %26, %28 : vector<34x34xi1>
    %30 = arith.andi %24, %29 : vector<34x34xi1>
    %31 = arith.ori %19, %30 : vector<34x34xi1>
    %cst_10 = arith.constant 0.000000e+00 : f32
    %cst_11 = arith.constant -1.000000e+30 : f32
    %32 = vector.broadcast %cst_10 : f32 to vector<34x34xf32>
    %33 = vector.broadcast %cst_11 : f32 to vector<34x34xf32>
    %34 = arith.select %31, %32, %33 : vector<34x34xi1>, vector<34x34xf32>
    %35 = tpu.iota {dimensions = array<i32: 1>} : vector<34x32xi32>
    %c0_i32_12 = arith.constant 0 : i32
    %36 = vector.broadcast %c0_i32_12 : i32 to vector<34x32xi32>
    %37 = arith.cmpi sge, %35, %36 : vector<34x32xi32>
    %c8_i32 = arith.constant 8 : i32
    %38 = vector.broadcast %c8_i32 : i32 to vector<34x32xi32>
    %39 = arith.cmpi slt, %35, %38 : vector<34x32xi32>
    %40 = arith.andi %37, %39 : vector<34x32xi1>
    %41 = arith.extui %40 : vector<34x32xi1> to vector<34x32xi32>
    %42 = arith.sitofp %41 : vector<34x32xi32> to vector<34x32xf32>
    %c8_i32_13 = arith.constant 8 : i32
    %43 = vector.broadcast %c8_i32_13 : i32 to vector<34x32xi32>
    %44 = arith.cmpi sge, %35, %43 : vector<34x32xi32>
    %c16_i32 = arith.constant 16 : i32
    %45 = vector.broadcast %c16_i32 : i32 to vector<34x32xi32>
    %46 = arith.cmpi slt, %35, %45 : vector<34x32xi32>
    %47 = arith.andi %44, %46 : vector<34x32xi1>
    %48 = arith.extui %47 : vector<34x32xi1> to vector<34x32xi32>
    %49 = arith.sitofp %48 : vector<34x32xi32> to vector<34x32xf32>
    %c16_i32_14 = arith.constant 16 : i32
    %50 = vector.broadcast %c16_i32_14 : i32 to vector<34x32xi32>
    %51 = arith.cmpi sge, %35, %50 : vector<34x32xi32>
    %c24_i32 = arith.constant 24 : i32
    %52 = vector.broadcast %c24_i32 : i32 to vector<34x32xi32>
    %53 = arith.cmpi slt, %35, %52 : vector<34x32xi32>
    %54 = arith.andi %51, %53 : vector<34x32xi1>
    %55 = arith.extui %54 : vector<34x32xi1> to vector<34x32xi32>
    %56 = arith.sitofp %55 : vector<34x32xi32> to vector<34x32xf32>
    %c24_i32_15 = arith.constant 24 : i32
    %57 = vector.broadcast %c24_i32_15 : i32 to vector<34x32xi32>
    %58 = arith.cmpi sge, %35, %57 : vector<34x32xi32>
    %c32_i32 = arith.constant 32 : i32
    %59 = vector.broadcast %c32_i32 : i32 to vector<34x32xi32>
    %60 = arith.cmpi slt, %35, %59 : vector<34x32xi32>
    %61 = arith.andi %58, %60 : vector<34x32xi1>
    %62 = arith.extui %61 : vector<34x32xi1> to vector<34x32xi32>
    %63 = arith.sitofp %62 : vector<34x32xi32> to vector<34x32xf32>
    %c0_16 = arith.constant 0 : index
    %c0_17 = arith.constant 0 : index
    %c0_18 = arith.constant 0 : index
    %64 = vector.load %arg10[%c0_16, %c0_17, %c0_18] : memref<2x6x32xf32, #tpu.memory_space<vmem>>, vector<1x6x32xf32>
    %65 = vector.shape_cast %64 : vector<1x6x32xf32> to vector<6x32xf32>
    %66 = vector.extract_strided_slice %65 {offsets = [0, 0], sizes = [1, 32], strides = [1, 1]} : vector<6x32xf32> to vector<1x32xf32>
    %67 = vector.extract_strided_slice %65 {offsets = [1, 0], sizes = [1, 32], strides = [1, 1]} : vector<6x32xf32> to vector<1x32xf32>
    %68 = vector.extract_strided_slice %65 {offsets = [2, 0], sizes = [1, 32], strides = [1, 1]} : vector<6x32xf32> to vector<1x32xf32>
    %69 = vector.extract_strided_slice %65 {offsets = [3, 0], sizes = [1, 32], strides = [1, 1]} : vector<6x32xf32> to vector<1x32xf32>
    %70 = vector.extract_strided_slice %65 {offsets = [4, 0], sizes = [1, 32], strides = [1, 1]} : vector<6x32xf32> to vector<1x32xf32>
    %71 = vector.extract_strided_slice %65 {offsets = [5, 0], sizes = [1, 32], strides = [1, 1]} : vector<6x32xf32> to vector<1x32xf32>
    %cst_19 = arith.constant dense<0.000000e+00> : vector<34xf32>
    %72 = vector.multi_reduction <add>, %4, %cst_19 [1] : vector<34x32xf32> to vector<34xf32>
    %73 = vector.shape_cast %72 : vector<34xf32> to vector<34x1xf32>
    %cst_20 = arith.constant 3.200000e+01 : f32
    %74 = vector.broadcast %cst_20 : f32 to vector<34x1xf32>
    %75 = arith.divf %73, %74 : vector<34x1xf32>
    %76 = vector.broadcast %75 : vector<34x1xf32> to vector<34x32xf32>
    %77 = arith.subf %4, %76 : vector<34x32xf32>
    %78 = arith.mulf %77, %77 : vector<34x32xf32>
    %cst_21 = arith.constant dense<0.000000e+00> : vector<34xf32>
    %79 = vector.multi_reduction <add>, %78, %cst_21 [1] : vector<34x32xf32> to vector<34xf32>
    %80 = vector.shape_cast %79 : vector<34xf32> to vector<34x1xf32>
    %cst_22 = arith.constant 3.200000e+01 : f32
    %81 = vector.broadcast %cst_22 : f32 to vector<34x1xf32>
    %82 = arith.divf %80, %81 : vector<34x1xf32>
    %83 = vector.broadcast %75 : vector<34x1xf32> to vector<34x32xf32>
    %84 = arith.subf %4, %83 : vector<34x32xf32>
    %cst_23 = arith.constant 9.99999997E-7 : f32
    %85 = vector.broadcast %cst_23 : f32 to vector<34x1xf32>
    %86 = arith.addf %82, %85 : vector<34x1xf32>
    %87 = math.rsqrt %86 : vector<34x1xf32>
    %88 = vector.broadcast %87 : vector<34x1xf32> to vector<34x32xf32>
    %89 = arith.mulf %84, %88 : vector<34x32xf32>
    %90 = vector.broadcast %66 : vector<1x32xf32> to vector<34x32xf32>
    %91 = arith.mulf %89, %90 : vector<34x32xf32>
    %92 = vector.broadcast %67 : vector<1x32xf32> to vector<34x32xf32>
    %93 = arith.addf %91, %92 : vector<34x32xf32>
    %c0_24 = arith.constant 0 : index
    %c0_25 = arith.constant 0 : index
    %c0_26 = arith.constant 0 : index
    %94 = vector.load %arg4[%c0_24, %c0_25, %c0_26] : memref<2x32x96xf32, #tpu.memory_space<vmem>>, vector<1x32x96xf32>
    %95 = vector.shape_cast %94 : vector<1x32x96xf32> to vector<32x96xf32>
    %cst_27 = arith.constant dense<0.000000e+00> : vector<34x96xf32>
    %96 = tpu.matmul %93, %95, %cst_27 {dimension_numbers = #tpu.dot_dimension_numbers<[1], [0], [0], [1], [0, 0, 1, 1], [], []>} : vector<34x32xf32>, vector<32x96xf32>, vector<34x96xf32> -> vector<34x96xf32>
    %c0_28 = arith.constant 0 : index
    %c0_29 = arith.constant 0 : index
    %c0_30 = arith.constant 0 : index
    %97 = vector.load %arg5[%c0_28, %c0_29, %c0_30] : memref<2x1x96xf32, #tpu.memory_space<vmem>>, vector<1x1x96xf32>
    %98 = vector.shape_cast %97 : vector<1x1x96xf32> to vector<1x96xf32>
    %99 = vector.broadcast %98 : vector<1x96xf32> to vector<34x96xf32>
    %100 = arith.addf %96, %99 : vector<34x96xf32>
    %101 = vector.extract_strided_slice %100 {offsets = [0, 0], sizes = [34, 32], strides = [1, 1]} : vector<34x96xf32> to vector<34x32xf32>
    %102 = vector.extract_strided_slice %100 {offsets = [0, 32], sizes = [34, 32], strides = [1, 1]} : vector<34x96xf32> to vector<34x32xf32>
    %103 = vector.extract_strided_slice %100 {offsets = [0, 64], sizes = [34, 32], strides = [1, 1]} : vector<34x96xf32> to vector<34x32xf32>
    %104 = arith.mulf %101, %42 : vector<34x32xf32>
    %cst_31 = arith.constant dense<0.000000e+00> : vector<34x34xf32>
    %105 = tpu.matmul %104, %102, %cst_31 {dimension_numbers = #tpu.dot_dimension_numbers<[1], [1], [0], [0], [0, 0, 1, 0], [], []>} : vector<34x32xf32>, vector<34x32xf32>, vector<34x34xf32> -> vector<34x34xf32>
    %106 = arith.addf %105, %34 : vector<34x34xf32>
    %cst_32 = arith.constant dense<0xFF800000> : vector<34xf32>
    %107 = vector.multi_reduction <maximumf>, %106, %cst_32 [1] : vector<34x34xf32> to vector<34xf32>
    %108 = vector.shape_cast %107 : vector<34xf32> to vector<34x1xf32>
    %109 = vector.broadcast %108 : vector<34x1xf32> to vector<34x34xf32>
    %110 = arith.subf %106, %109 : vector<34x34xf32>
    %111 = math.exp %110 : vector<34x34xf32>
    %cst_33 = arith.constant dense<0.000000e+00> : vector<34xf32>
    %112 = vector.multi_reduction <add>, %111, %cst_33 [1] : vector<34x34xf32> to vector<34xf32>
    %113 = vector.shape_cast %112 : vector<34xf32> to vector<34x1xf32>
    %114 = vector.broadcast %113 : vector<34x1xf32> to vector<34x34xf32>
    %115 = arith.divf %111, %114 : vector<34x34xf32>
    %116 = arith.mulf %103, %42 : vector<34x32xf32>
    %cst_34 = arith.constant dense<0.000000e+00> : vector<34x32xf32>
    %117 = tpu.matmul %115, %116, %cst_34 {dimension_numbers = #tpu.dot_dimension_numbers<[1], [0], [0], [1], [0, 0, 1, 1], [], []>} : vector<34x34xf32>, vector<34x32xf32>, vector<34x32xf32> -> vector<34x32xf32>
    %118 = arith.mulf %101, %49 : vector<34x32xf32>
    %cst_35 = arith.constant dense<0.000000e+00> : vector<34x34xf32>
    %119 = tpu.matmul %118, %102, %cst_35 {dimension_numbers = #tpu.dot_dimension_numbers<[1], [1], [0], [0], [0, 0, 1, 0], [], []>} : vector<34x32xf32>, vector<34x32xf32>, vector<34x34xf32> -> vector<34x34xf32>
    %120 = arith.addf %119, %34 : vector<34x34xf32>
    %cst_36 = arith.constant dense<0xFF800000> : vector<34xf32>
    %121 = vector.multi_reduction <maximumf>, %120, %cst_36 [1] : vector<34x34xf32> to vector<34xf32>
    %122 = vector.shape_cast %121 : vector<34xf32> to vector<34x1xf32>
    %123 = vector.broadcast %122 : vector<34x1xf32> to vector<34x34xf32>
    %124 = arith.subf %120, %123 : vector<34x34xf32>
    %125 = math.exp %124 : vector<34x34xf32>
    %cst_37 = arith.constant dense<0.000000e+00> : vector<34xf32>
    %126 = vector.multi_reduction <add>, %125, %cst_37 [1] : vector<34x34xf32> to vector<34xf32>
    %127 = vector.shape_cast %126 : vector<34xf32> to vector<34x1xf32>
    %128 = vector.broadcast %127 : vector<34x1xf32> to vector<34x34xf32>
    %129 = arith.divf %125, %128 : vector<34x34xf32>
    %130 = arith.mulf %103, %49 : vector<34x32xf32>
    %cst_38 = arith.constant dense<0.000000e+00> : vector<34x32xf32>
    %131 = tpu.matmul %129, %130, %cst_38 {dimension_numbers = #tpu.dot_dimension_numbers<[1], [0], [0], [1], [0, 0, 1, 1], [], []>} : vector<34x34xf32>, vector<34x32xf32>, vector<34x32xf32> -> vector<34x32xf32>
    %132 = arith.addf %117, %131 : vector<34x32xf32>
    %133 = arith.mulf %101, %56 : vector<34x32xf32>
    %cst_39 = arith.constant dense<0.000000e+00> : vector<34x34xf32>
    %134 = tpu.matmul %133, %102, %cst_39 {dimension_numbers = #tpu.dot_dimension_numbers<[1], [1], [0], [0], [0, 0, 1, 0], [], []>} : vector<34x32xf32>, vector<34x32xf32>, vector<34x34xf32> -> vector<34x34xf32>
    %135 = arith.addf %134, %34 : vector<34x34xf32>
    %cst_40 = arith.constant dense<0xFF800000> : vector<34xf32>
    %136 = vector.multi_reduction <maximumf>, %135, %cst_40 [1] : vector<34x34xf32> to vector<34xf32>
    %137 = vector.shape_cast %136 : vector<34xf32> to vector<34x1xf32>
    %138 = vector.broadcast %137 : vector<34x1xf32> to vector<34x34xf32>
    %139 = arith.subf %135, %138 : vector<34x34xf32>
    %140 = math.exp %139 : vector<34x34xf32>
    %cst_41 = arith.constant dense<0.000000e+00> : vector<34xf32>
    %141 = vector.multi_reduction <add>, %140, %cst_41 [1] : vector<34x34xf32> to vector<34xf32>
    %142 = vector.shape_cast %141 : vector<34xf32> to vector<34x1xf32>
    %143 = vector.broadcast %142 : vector<34x1xf32> to vector<34x34xf32>
    %144 = arith.divf %140, %143 : vector<34x34xf32>
    %145 = arith.mulf %103, %56 : vector<34x32xf32>
    %cst_42 = arith.constant dense<0.000000e+00> : vector<34x32xf32>
    %146 = tpu.matmul %144, %145, %cst_42 {dimension_numbers = #tpu.dot_dimension_numbers<[1], [0], [0], [1], [0, 0, 1, 1], [], []>} : vector<34x34xf32>, vector<34x32xf32>, vector<34x32xf32> -> vector<34x32xf32>
    %147 = arith.addf %132, %146 : vector<34x32xf32>
    %148 = arith.mulf %101, %63 : vector<34x32xf32>
    %cst_43 = arith.constant dense<0.000000e+00> : vector<34x34xf32>
    %149 = tpu.matmul %148, %102, %cst_43 {dimension_numbers = #tpu.dot_dimension_numbers<[1], [1], [0], [0], [0, 0, 1, 0], [], []>} : vector<34x32xf32>, vector<34x32xf32>, vector<34x34xf32> -> vector<34x34xf32>
    %150 = arith.addf %149, %34 : vector<34x34xf32>
    %cst_44 = arith.constant dense<0xFF800000> : vector<34xf32>
    %151 = vector.multi_reduction <maximumf>, %150, %cst_44 [1] : vector<34x34xf32> to vector<34xf32>
    %152 = vector.shape_cast %151 : vector<34xf32> to vector<34x1xf32>
    %153 = vector.broadcast %152 : vector<34x1xf32> to vector<34x34xf32>
    %154 = arith.subf %150, %153 : vector<34x34xf32>
    %155 = math.exp %154 : vector<34x34xf32>
    %cst_45 = arith.constant dense<0.000000e+00> : vector<34xf32>
    %156 = vector.multi_reduction <add>, %155, %cst_45 [1] : vector<34x34xf32> to vector<34xf32>
    %157 = vector.shape_cast %156 : vector<34xf32> to vector<34x1xf32>
    %158 = vector.broadcast %157 : vector<34x1xf32> to vector<34x34xf32>
    %159 = arith.divf %155, %158 : vector<34x34xf32>
    %160 = arith.mulf %103, %63 : vector<34x32xf32>
    %cst_46 = arith.constant dense<0.000000e+00> : vector<34x32xf32>
    %161 = tpu.matmul %159, %160, %cst_46 {dimension_numbers = #tpu.dot_dimension_numbers<[1], [0], [0], [1], [0, 0, 1, 1], [], []>} : vector<34x34xf32>, vector<34x32xf32>, vector<34x32xf32> -> vector<34x32xf32>
    %162 = arith.addf %147, %161 : vector<34x32xf32>
    %c0_47 = arith.constant 0 : index
    %c0_48 = arith.constant 0 : index
    %c0_49 = arith.constant 0 : index
    %163 = vector.load %arg6[%c0_47, %c0_48, %c0_49] : memref<2x32x32xf32, #tpu.memory_space<vmem>>, vector<1x32x32xf32>
    %164 = vector.shape_cast %163 : vector<1x32x32xf32> to vector<32x32xf32>
    %cst_50 = arith.constant dense<0.000000e+00> : vector<34x32xf32>
    %165 = tpu.matmul %162, %164, %cst_50 {dimension_numbers = #tpu.dot_dimension_numbers<[1], [0], [0], [1], [0, 0, 1, 1], [], []>} : vector<34x32xf32>, vector<32x32xf32>, vector<34x32xf32> -> vector<34x32xf32>
    %166 = vector.broadcast %68 : vector<1x32xf32> to vector<34x32xf32>
    %167 = arith.addf %165, %166 : vector<34x32xf32>
    %168 = arith.addf %167, %4 : vector<34x32xf32>
    %cst_51 = arith.constant dense<0.000000e+00> : vector<34xf32>
    %169 = vector.multi_reduction <add>, %168, %cst_51 [1] : vector<34x32xf32> to vector<34xf32>
    %170 = vector.shape_cast %169 : vector<34xf32> to vector<34x1xf32>
    %cst_52 = arith.constant 3.200000e+01 : f32
    %171 = vector.broadcast %cst_52 : f32 to vector<34x1xf32>
    %172 = arith.divf %170, %171 : vector<34x1xf32>
    %173 = vector.broadcast %172 : vector<34x1xf32> to vector<34x32xf32>
    %174 = arith.subf %168, %173 : vector<34x32xf32>
    %175 = arith.mulf %174, %174 : vector<34x32xf32>
    %cst_53 = arith.constant dense<0.000000e+00> : vector<34xf32>
    %176 = vector.multi_reduction <add>, %175, %cst_53 [1] : vector<34x32xf32> to vector<34xf32>
    %177 = vector.shape_cast %176 : vector<34xf32> to vector<34x1xf32>
    %cst_54 = arith.constant 3.200000e+01 : f32
    %178 = vector.broadcast %cst_54 : f32 to vector<34x1xf32>
    %179 = arith.divf %177, %178 : vector<34x1xf32>
    %180 = vector.broadcast %172 : vector<34x1xf32> to vector<34x32xf32>
    %181 = arith.subf %168, %180 : vector<34x32xf32>
    %cst_55 = arith.constant 9.99999997E-7 : f32
    %182 = vector.broadcast %cst_55 : f32 to vector<34x1xf32>
    %183 = arith.addf %179, %182 : vector<34x1xf32>
    %184 = math.rsqrt %183 : vector<34x1xf32>
    %185 = vector.broadcast %184 : vector<34x1xf32> to vector<34x32xf32>
    %186 = arith.mulf %181, %185 : vector<34x32xf32>
    %187 = vector.broadcast %69 : vector<1x32xf32> to vector<34x32xf32>
    %188 = arith.mulf %186, %187 : vector<34x32xf32>
    %189 = vector.broadcast %70 : vector<1x32xf32> to vector<34x32xf32>
    %190 = arith.addf %188, %189 : vector<34x32xf32>
    %c0_56 = arith.constant 0 : index
    %c0_57 = arith.constant 0 : index
    %c0_58 = arith.constant 0 : index
    %191 = vector.load %arg7[%c0_56, %c0_57, %c0_58] : memref<2x32x64xf32, #tpu.memory_space<vmem>>, vector<1x32x64xf32>
    %192 = vector.shape_cast %191 : vector<1x32x64xf32> to vector<32x64xf32>
    %cst_59 = arith.constant dense<0.000000e+00> : vector<34x64xf32>
    %193 = tpu.matmul %190, %192, %cst_59 {dimension_numbers = #tpu.dot_dimension_numbers<[1], [0], [0], [1], [0, 0, 1, 1], [], []>} : vector<34x32xf32>, vector<32x64xf32>, vector<34x64xf32> -> vector<34x64xf32>
    %c0_60 = arith.constant 0 : index
    %c0_61 = arith.constant 0 : index
    %c0_62 = arith.constant 0 : index
    %194 = vector.load %arg8[%c0_60, %c0_61, %c0_62] : memref<2x1x64xf32, #tpu.memory_space<vmem>>, vector<1x1x64xf32>
    %195 = vector.shape_cast %194 : vector<1x1x64xf32> to vector<1x64xf32>
    %196 = vector.broadcast %195 : vector<1x64xf32> to vector<34x64xf32>
    %197 = arith.addf %193, %196 : vector<34x64xf32>
    %cst_63 = arith.constant 5.000000e-01 : f32
    %198 = vector.broadcast %cst_63 : f32 to vector<34x64xf32>
    %199 = arith.mulf %198, %197 : vector<34x64xf32>
    %cst_64 = arith.constant 0.707106769 : f32
    %200 = vector.broadcast %cst_64 : f32 to vector<34x64xf32>
    %201 = arith.mulf %197, %200 : vector<34x64xf32>
    %202 = math.erf %201 : vector<34x64xf32>
    %cst_65 = arith.constant 1.000000e+00 : f32
    %203 = vector.broadcast %cst_65 : f32 to vector<34x64xf32>
    %204 = arith.addf %203, %202 : vector<34x64xf32>
    %205 = arith.mulf %199, %204 : vector<34x64xf32>
    %c0_66 = arith.constant 0 : index
    %c0_67 = arith.constant 0 : index
    %c0_68 = arith.constant 0 : index
    %206 = vector.load %arg9[%c0_66, %c0_67, %c0_68] : memref<2x64x32xf32, #tpu.memory_space<vmem>>, vector<1x64x32xf32>
    %207 = vector.shape_cast %206 : vector<1x64x32xf32> to vector<64x32xf32>
    %cst_69 = arith.constant dense<0.000000e+00> : vector<34x32xf32>
    %208 = tpu.matmul %205, %207, %cst_69 {dimension_numbers = #tpu.dot_dimension_numbers<[1], [0], [0], [1], [0, 0, 1, 1], [], []>} : vector<34x64xf32>, vector<64x32xf32>, vector<34x32xf32> -> vector<34x32xf32>
    %209 = vector.broadcast %71 : vector<1x32xf32> to vector<34x32xf32>
    %210 = arith.addf %208, %209 : vector<34x32xf32>
    %211 = arith.addf %210, %168 : vector<34x32xf32>
    %c1 = arith.constant 1 : index
    %c0_70 = arith.constant 0 : index
    %c0_71 = arith.constant 0 : index
    %212 = vector.load %arg10[%c1, %c0_70, %c0_71] : memref<2x6x32xf32, #tpu.memory_space<vmem>>, vector<1x6x32xf32>
    %213 = vector.shape_cast %212 : vector<1x6x32xf32> to vector<6x32xf32>
    %214 = vector.extract_strided_slice %213 {offsets = [0, 0], sizes = [1, 32], strides = [1, 1]} : vector<6x32xf32> to vector<1x32xf32>
    %215 = vector.extract_strided_slice %213 {offsets = [1, 0], sizes = [1, 32], strides = [1, 1]} : vector<6x32xf32> to vector<1x32xf32>
    %216 = vector.extract_strided_slice %213 {offsets = [2, 0], sizes = [1, 32], strides = [1, 1]} : vector<6x32xf32> to vector<1x32xf32>
    %217 = vector.extract_strided_slice %213 {offsets = [3, 0], sizes = [1, 32], strides = [1, 1]} : vector<6x32xf32> to vector<1x32xf32>
    %218 = vector.extract_strided_slice %213 {offsets = [4, 0], sizes = [1, 32], strides = [1, 1]} : vector<6x32xf32> to vector<1x32xf32>
    %219 = vector.extract_strided_slice %213 {offsets = [5, 0], sizes = [1, 32], strides = [1, 1]} : vector<6x32xf32> to vector<1x32xf32>
    %cst_72 = arith.constant dense<0.000000e+00> : vector<34xf32>
    %220 = vector.multi_reduction <add>, %211, %cst_72 [1] : vector<34x32xf32> to vector<34xf32>
    %221 = vector.shape_cast %220 : vector<34xf32> to vector<34x1xf32>
    %cst_73 = arith.constant 3.200000e+01 : f32
    %222 = vector.broadcast %cst_73 : f32 to vector<34x1xf32>
    %223 = arith.divf %221, %222 : vector<34x1xf32>
    %224 = vector.broadcast %223 : vector<34x1xf32> to vector<34x32xf32>
    %225 = arith.subf %211, %224 : vector<34x32xf32>
    %226 = arith.mulf %225, %225 : vector<34x32xf32>
    %cst_74 = arith.constant dense<0.000000e+00> : vector<34xf32>
    %227 = vector.multi_reduction <add>, %226, %cst_74 [1] : vector<34x32xf32> to vector<34xf32>
    %228 = vector.shape_cast %227 : vector<34xf32> to vector<34x1xf32>
    %cst_75 = arith.constant 3.200000e+01 : f32
    %229 = vector.broadcast %cst_75 : f32 to vector<34x1xf32>
    %230 = arith.divf %228, %229 : vector<34x1xf32>
    %231 = vector.broadcast %223 : vector<34x1xf32> to vector<34x32xf32>
    %232 = arith.subf %211, %231 : vector<34x32xf32>
    %cst_76 = arith.constant 9.99999997E-7 : f32
    %233 = vector.broadcast %cst_76 : f32 to vector<34x1xf32>
    %234 = arith.addf %230, %233 : vector<34x1xf32>
    %235 = math.rsqrt %234 : vector<34x1xf32>
    %236 = vector.broadcast %235 : vector<34x1xf32> to vector<34x32xf32>
    %237 = arith.mulf %232, %236 : vector<34x32xf32>
    %238 = vector.broadcast %214 : vector<1x32xf32> to vector<34x32xf32>
    %239 = arith.mulf %237, %238 : vector<34x32xf32>
    %240 = vector.broadcast %215 : vector<1x32xf32> to vector<34x32xf32>
    %241 = arith.addf %239, %240 : vector<34x32xf32>
    %c1_77 = arith.constant 1 : index
    %c0_78 = arith.constant 0 : index
    %c0_79 = arith.constant 0 : index
    %242 = vector.load %arg4[%c1_77, %c0_78, %c0_79] : memref<2x32x96xf32, #tpu.memory_space<vmem>>, vector<1x32x96xf32>
    %243 = vector.shape_cast %242 : vector<1x32x96xf32> to vector<32x96xf32>
    %cst_80 = arith.constant dense<0.000000e+00> : vector<34x96xf32>
    %244 = tpu.matmul %241, %243, %cst_80 {dimension_numbers = #tpu.dot_dimension_numbers<[1], [0], [0], [1], [0, 0, 1, 1], [], []>} : vector<34x32xf32>, vector<32x96xf32>, vector<34x96xf32> -> vector<34x96xf32>
    %c1_81 = arith.constant 1 : index
    %c0_82 = arith.constant 0 : index
    %c0_83 = arith.constant 0 : index
    %245 = vector.load %arg5[%c1_81, %c0_82, %c0_83] : memref<2x1x96xf32, #tpu.memory_space<vmem>>, vector<1x1x96xf32>
    %246 = vector.shape_cast %245 : vector<1x1x96xf32> to vector<1x96xf32>
    %247 = vector.broadcast %246 : vector<1x96xf32> to vector<34x96xf32>
    %248 = arith.addf %244, %247 : vector<34x96xf32>
    %249 = vector.extract_strided_slice %248 {offsets = [0, 0], sizes = [34, 32], strides = [1, 1]} : vector<34x96xf32> to vector<34x32xf32>
    %250 = vector.extract_strided_slice %248 {offsets = [0, 32], sizes = [34, 32], strides = [1, 1]} : vector<34x96xf32> to vector<34x32xf32>
    %251 = vector.extract_strided_slice %248 {offsets = [0, 64], sizes = [34, 32], strides = [1, 1]} : vector<34x96xf32> to vector<34x32xf32>
    %252 = arith.mulf %249, %42 : vector<34x32xf32>
    %cst_84 = arith.constant dense<0.000000e+00> : vector<34x34xf32>
    %253 = tpu.matmul %252, %250, %cst_84 {dimension_numbers = #tpu.dot_dimension_numbers<[1], [1], [0], [0], [0, 0, 1, 0], [], []>} : vector<34x32xf32>, vector<34x32xf32>, vector<34x34xf32> -> vector<34x34xf32>
    %254 = arith.addf %253, %34 : vector<34x34xf32>
    %cst_85 = arith.constant dense<0xFF800000> : vector<34xf32>
    %255 = vector.multi_reduction <maximumf>, %254, %cst_85 [1] : vector<34x34xf32> to vector<34xf32>
    %256 = vector.shape_cast %255 : vector<34xf32> to vector<34x1xf32>
    %257 = vector.broadcast %256 : vector<34x1xf32> to vector<34x34xf32>
    %258 = arith.subf %254, %257 : vector<34x34xf32>
    %259 = math.exp %258 : vector<34x34xf32>
    %cst_86 = arith.constant dense<0.000000e+00> : vector<34xf32>
    %260 = vector.multi_reduction <add>, %259, %cst_86 [1] : vector<34x34xf32> to vector<34xf32>
    %261 = vector.shape_cast %260 : vector<34xf32> to vector<34x1xf32>
    %262 = vector.broadcast %261 : vector<34x1xf32> to vector<34x34xf32>
    %263 = arith.divf %259, %262 : vector<34x34xf32>
    %264 = arith.mulf %251, %42 : vector<34x32xf32>
    %cst_87 = arith.constant dense<0.000000e+00> : vector<34x32xf32>
    %265 = tpu.matmul %263, %264, %cst_87 {dimension_numbers = #tpu.dot_dimension_numbers<[1], [0], [0], [1], [0, 0, 1, 1], [], []>} : vector<34x34xf32>, vector<34x32xf32>, vector<34x32xf32> -> vector<34x32xf32>
    %266 = arith.mulf %249, %49 : vector<34x32xf32>
    %cst_88 = arith.constant dense<0.000000e+00> : vector<34x34xf32>
    %267 = tpu.matmul %266, %250, %cst_88 {dimension_numbers = #tpu.dot_dimension_numbers<[1], [1], [0], [0], [0, 0, 1, 0], [], []>} : vector<34x32xf32>, vector<34x32xf32>, vector<34x34xf32> -> vector<34x34xf32>
    %268 = arith.addf %267, %34 : vector<34x34xf32>
    %cst_89 = arith.constant dense<0xFF800000> : vector<34xf32>
    %269 = vector.multi_reduction <maximumf>, %268, %cst_89 [1] : vector<34x34xf32> to vector<34xf32>
    %270 = vector.shape_cast %269 : vector<34xf32> to vector<34x1xf32>
    %271 = vector.broadcast %270 : vector<34x1xf32> to vector<34x34xf32>
    %272 = arith.subf %268, %271 : vector<34x34xf32>
    %273 = math.exp %272 : vector<34x34xf32>
    %cst_90 = arith.constant dense<0.000000e+00> : vector<34xf32>
    %274 = vector.multi_reduction <add>, %273, %cst_90 [1] : vector<34x34xf32> to vector<34xf32>
    %275 = vector.shape_cast %274 : vector<34xf32> to vector<34x1xf32>
    %276 = vector.broadcast %275 : vector<34x1xf32> to vector<34x34xf32>
    %277 = arith.divf %273, %276 : vector<34x34xf32>
    %278 = arith.mulf %251, %49 : vector<34x32xf32>
    %cst_91 = arith.constant dense<0.000000e+00> : vector<34x32xf32>
    %279 = tpu.matmul %277, %278, %cst_91 {dimension_numbers = #tpu.dot_dimension_numbers<[1], [0], [0], [1], [0, 0, 1, 1], [], []>} : vector<34x34xf32>, vector<34x32xf32>, vector<34x32xf32> -> vector<34x32xf32>
    %280 = arith.addf %265, %279 : vector<34x32xf32>
    %281 = arith.mulf %249, %56 : vector<34x32xf32>
    %cst_92 = arith.constant dense<0.000000e+00> : vector<34x34xf32>
    %282 = tpu.matmul %281, %250, %cst_92 {dimension_numbers = #tpu.dot_dimension_numbers<[1], [1], [0], [0], [0, 0, 1, 0], [], []>} : vector<34x32xf32>, vector<34x32xf32>, vector<34x34xf32> -> vector<34x34xf32>
    %283 = arith.addf %282, %34 : vector<34x34xf32>
    %cst_93 = arith.constant dense<0xFF800000> : vector<34xf32>
    %284 = vector.multi_reduction <maximumf>, %283, %cst_93 [1] : vector<34x34xf32> to vector<34xf32>
    %285 = vector.shape_cast %284 : vector<34xf32> to vector<34x1xf32>
    %286 = vector.broadcast %285 : vector<34x1xf32> to vector<34x34xf32>
    %287 = arith.subf %283, %286 : vector<34x34xf32>
    %288 = math.exp %287 : vector<34x34xf32>
    %cst_94 = arith.constant dense<0.000000e+00> : vector<34xf32>
    %289 = vector.multi_reduction <add>, %288, %cst_94 [1] : vector<34x34xf32> to vector<34xf32>
    %290 = vector.shape_cast %289 : vector<34xf32> to vector<34x1xf32>
    %291 = vector.broadcast %290 : vector<34x1xf32> to vector<34x34xf32>
    %292 = arith.divf %288, %291 : vector<34x34xf32>
    %293 = arith.mulf %251, %56 : vector<34x32xf32>
    %cst_95 = arith.constant dense<0.000000e+00> : vector<34x32xf32>
    %294 = tpu.matmul %292, %293, %cst_95 {dimension_numbers = #tpu.dot_dimension_numbers<[1], [0], [0], [1], [0, 0, 1, 1], [], []>} : vector<34x34xf32>, vector<34x32xf32>, vector<34x32xf32> -> vector<34x32xf32>
    %295 = arith.addf %280, %294 : vector<34x32xf32>
    %296 = arith.mulf %249, %63 : vector<34x32xf32>
    %cst_96 = arith.constant dense<0.000000e+00> : vector<34x34xf32>
    %297 = tpu.matmul %296, %250, %cst_96 {dimension_numbers = #tpu.dot_dimension_numbers<[1], [1], [0], [0], [0, 0, 1, 0], [], []>} : vector<34x32xf32>, vector<34x32xf32>, vector<34x34xf32> -> vector<34x34xf32>
    %298 = arith.addf %297, %34 : vector<34x34xf32>
    %cst_97 = arith.constant dense<0xFF800000> : vector<34xf32>
    %299 = vector.multi_reduction <maximumf>, %298, %cst_97 [1] : vector<34x34xf32> to vector<34xf32>
    %300 = vector.shape_cast %299 : vector<34xf32> to vector<34x1xf32>
    %301 = vector.broadcast %300 : vector<34x1xf32> to vector<34x34xf32>
    %302 = arith.subf %298, %301 : vector<34x34xf32>
    %303 = math.exp %302 : vector<34x34xf32>
    %cst_98 = arith.constant dense<0.000000e+00> : vector<34xf32>
    %304 = vector.multi_reduction <add>, %303, %cst_98 [1] : vector<34x34xf32> to vector<34xf32>
    %305 = vector.shape_cast %304 : vector<34xf32> to vector<34x1xf32>
    %306 = vector.broadcast %305 : vector<34x1xf32> to vector<34x34xf32>
    %307 = arith.divf %303, %306 : vector<34x34xf32>
    %308 = arith.mulf %251, %63 : vector<34x32xf32>
    %cst_99 = arith.constant dense<0.000000e+00> : vector<34x32xf32>
    %309 = tpu.matmul %307, %308, %cst_99 {dimension_numbers = #tpu.dot_dimension_numbers<[1], [0], [0], [1], [0, 0, 1, 1], [], []>} : vector<34x34xf32>, vector<34x32xf32>, vector<34x32xf32> -> vector<34x32xf32>
    %310 = arith.addf %295, %309 : vector<34x32xf32>
    %c1_100 = arith.constant 1 : index
    %c0_101 = arith.constant 0 : index
    %c0_102 = arith.constant 0 : index
    %311 = vector.load %arg6[%c1_100, %c0_101, %c0_102] : memref<2x32x32xf32, #tpu.memory_space<vmem>>, vector<1x32x32xf32>
    %312 = vector.shape_cast %311 : vector<1x32x32xf32> to vector<32x32xf32>
    %cst_103 = arith.constant dense<0.000000e+00> : vector<34x32xf32>
    %313 = tpu.matmul %310, %312, %cst_103 {dimension_numbers = #tpu.dot_dimension_numbers<[1], [0], [0], [1], [0, 0, 1, 1], [], []>} : vector<34x32xf32>, vector<32x32xf32>, vector<34x32xf32> -> vector<34x32xf32>
    %314 = vector.broadcast %216 : vector<1x32xf32> to vector<34x32xf32>
    %315 = arith.addf %313, %314 : vector<34x32xf32>
    %316 = arith.addf %315, %211 : vector<34x32xf32>
    %cst_104 = arith.constant dense<0.000000e+00> : vector<34xf32>
    %317 = vector.multi_reduction <add>, %316, %cst_104 [1] : vector<34x32xf32> to vector<34xf32>
    %318 = vector.shape_cast %317 : vector<34xf32> to vector<34x1xf32>
    %cst_105 = arith.constant 3.200000e+01 : f32
    %319 = vector.broadcast %cst_105 : f32 to vector<34x1xf32>
    %320 = arith.divf %318, %319 : vector<34x1xf32>
    %321 = vector.broadcast %320 : vector<34x1xf32> to vector<34x32xf32>
    %322 = arith.subf %316, %321 : vector<34x32xf32>
    %323 = arith.mulf %322, %322 : vector<34x32xf32>
    %cst_106 = arith.constant dense<0.000000e+00> : vector<34xf32>
    %324 = vector.multi_reduction <add>, %323, %cst_106 [1] : vector<34x32xf32> to vector<34xf32>
    %325 = vector.shape_cast %324 : vector<34xf32> to vector<34x1xf32>
    %cst_107 = arith.constant 3.200000e+01 : f32
    %326 = vector.broadcast %cst_107 : f32 to vector<34x1xf32>
    %327 = arith.divf %325, %326 : vector<34x1xf32>
    %328 = vector.broadcast %320 : vector<34x1xf32> to vector<34x32xf32>
    %329 = arith.subf %316, %328 : vector<34x32xf32>
    %cst_108 = arith.constant 9.99999997E-7 : f32
    %330 = vector.broadcast %cst_108 : f32 to vector<34x1xf32>
    %331 = arith.addf %327, %330 : vector<34x1xf32>
    %332 = math.rsqrt %331 : vector<34x1xf32>
    %333 = vector.broadcast %332 : vector<34x1xf32> to vector<34x32xf32>
    %334 = arith.mulf %329, %333 : vector<34x32xf32>
    %335 = vector.broadcast %217 : vector<1x32xf32> to vector<34x32xf32>
    %336 = arith.mulf %334, %335 : vector<34x32xf32>
    %337 = vector.broadcast %218 : vector<1x32xf32> to vector<34x32xf32>
    %338 = arith.addf %336, %337 : vector<34x32xf32>
    %c1_109 = arith.constant 1 : index
    %c0_110 = arith.constant 0 : index
    %c0_111 = arith.constant 0 : index
    %339 = vector.load %arg7[%c1_109, %c0_110, %c0_111] : memref<2x32x64xf32, #tpu.memory_space<vmem>>, vector<1x32x64xf32>
    %340 = vector.shape_cast %339 : vector<1x32x64xf32> to vector<32x64xf32>
    %cst_112 = arith.constant dense<0.000000e+00> : vector<34x64xf32>
    %341 = tpu.matmul %338, %340, %cst_112 {dimension_numbers = #tpu.dot_dimension_numbers<[1], [0], [0], [1], [0, 0, 1, 1], [], []>} : vector<34x32xf32>, vector<32x64xf32>, vector<34x64xf32> -> vector<34x64xf32>
    %c1_113 = arith.constant 1 : index
    %c0_114 = arith.constant 0 : index
    %c0_115 = arith.constant 0 : index
    %342 = vector.load %arg8[%c1_113, %c0_114, %c0_115] : memref<2x1x64xf32, #tpu.memory_space<vmem>>, vector<1x1x64xf32>
    %343 = vector.shape_cast %342 : vector<1x1x64xf32> to vector<1x64xf32>
    %344 = vector.broadcast %343 : vector<1x64xf32> to vector<34x64xf32>
    %345 = arith.addf %341, %344 : vector<34x64xf32>
    %cst_116 = arith.constant 5.000000e-01 : f32
    %346 = vector.broadcast %cst_116 : f32 to vector<34x64xf32>
    %347 = arith.mulf %346, %345 : vector<34x64xf32>
    %cst_117 = arith.constant 0.707106769 : f32
    %348 = vector.broadcast %cst_117 : f32 to vector<34x64xf32>
    %349 = arith.mulf %345, %348 : vector<34x64xf32>
    %350 = math.erf %349 : vector<34x64xf32>
    %cst_118 = arith.constant 1.000000e+00 : f32
    %351 = vector.broadcast %cst_118 : f32 to vector<34x64xf32>
    %352 = arith.addf %351, %350 : vector<34x64xf32>
    %353 = arith.mulf %347, %352 : vector<34x64xf32>
    %c1_119 = arith.constant 1 : index
    %c0_120 = arith.constant 0 : index
    %c0_121 = arith.constant 0 : index
    %354 = vector.load %arg9[%c1_119, %c0_120, %c0_121] : memref<2x64x32xf32, #tpu.memory_space<vmem>>, vector<1x64x32xf32>
    %355 = vector.shape_cast %354 : vector<1x64x32xf32> to vector<64x32xf32>
    %cst_122 = arith.constant dense<0.000000e+00> : vector<34x32xf32>
    %356 = tpu.matmul %353, %355, %cst_122 {dimension_numbers = #tpu.dot_dimension_numbers<[1], [0], [0], [1], [0, 0, 1, 1], [], []>} : vector<34x64xf32>, vector<64x32xf32>, vector<34x32xf32> -> vector<34x32xf32>
    %357 = vector.broadcast %219 : vector<1x32xf32> to vector<34x32xf32>
    %358 = arith.addf %356, %357 : vector<34x32xf32>
    %359 = arith.addf %358, %316 : vector<34x32xf32>
    %c0_123 = arith.constant 0 : index
    %c0_124 = arith.constant 0 : index
    %360 = vector.load %arg3[%c0_123, %c0_124] : memref<2x32xf32, #tpu.memory_space<vmem>>, vector<2x32xf32>
    %361 = vector.extract_strided_slice %360 {offsets = [0, 0], sizes = [1, 32], strides = [1, 1]} : vector<2x32xf32> to vector<1x32xf32>
    %362 = vector.extract_strided_slice %360 {offsets = [1, 0], sizes = [1, 32], strides = [1, 1]} : vector<2x32xf32> to vector<1x32xf32>
    %cst_125 = arith.constant dense<0.000000e+00> : vector<34xf32>
    %363 = vector.multi_reduction <add>, %359, %cst_125 [1] : vector<34x32xf32> to vector<34xf32>
    %364 = vector.shape_cast %363 : vector<34xf32> to vector<34x1xf32>
    %cst_126 = arith.constant 3.200000e+01 : f32
    %365 = vector.broadcast %cst_126 : f32 to vector<34x1xf32>
    %366 = arith.divf %364, %365 : vector<34x1xf32>
    %367 = vector.broadcast %366 : vector<34x1xf32> to vector<34x32xf32>
    %368 = arith.subf %359, %367 : vector<34x32xf32>
    %369 = arith.mulf %368, %368 : vector<34x32xf32>
    %cst_127 = arith.constant dense<0.000000e+00> : vector<34xf32>
    %370 = vector.multi_reduction <add>, %369, %cst_127 [1] : vector<34x32xf32> to vector<34xf32>
    %371 = vector.shape_cast %370 : vector<34xf32> to vector<34x1xf32>
    %cst_128 = arith.constant 3.200000e+01 : f32
    %372 = vector.broadcast %cst_128 : f32 to vector<34x1xf32>
    %373 = arith.divf %371, %372 : vector<34x1xf32>
    %374 = vector.broadcast %366 : vector<34x1xf32> to vector<34x32xf32>
    %375 = arith.subf %359, %374 : vector<34x32xf32>
    %cst_129 = arith.constant 9.99999997E-7 : f32
    %376 = vector.broadcast %cst_129 : f32 to vector<34x1xf32>
    %377 = arith.addf %373, %376 : vector<34x1xf32>
    %378 = math.rsqrt %377 : vector<34x1xf32>
    %379 = vector.broadcast %378 : vector<34x1xf32> to vector<34x32xf32>
    %380 = arith.mulf %375, %379 : vector<34x32xf32>
    %381 = vector.broadcast %361 : vector<1x32xf32> to vector<34x32xf32>
    %382 = arith.mulf %380, %381 : vector<34x32xf32>
    %383 = vector.broadcast %362 : vector<1x32xf32> to vector<34x32xf32>
    %384 = arith.addf %382, %383 : vector<34x32xf32>
    %c0_130 = arith.constant 0 : index
    %c0_131 = arith.constant 0 : index
    %385 = vector.load %arg11[%c0_130, %c0_131] : memref<34x32xf32, #tpu.memory_space<vmem>>, vector<34x32xf32>
    tpu.vector_store %arg11[%c0_130, %c0_131], %384 {strides = array<i32>} : memref<34x32xf32, #tpu.memory_space<vmem>>, vector<34x32xf32>,
    return
  }
}

</mosaic_0001>

<llo_original>
// kernel: transformer_forward.1
$region0: #{transformer_forward.1}
  #allocation0 [shape = 'u32[]', space=smem, size = 0x4, offset = 0x4, fixed_abs, tag = 'smem constant byte address 0x4 - core index']
  #allocation1 [shape = 'u32[144,128]{1,0:T(1,128)}', space=vmem, size = 0x12000, scoped, tag = 'internal scratch']
  %s0 = inlined_call_operand.vmem [shape: f32[34,48], index: 0, kind: input, shape index: {}]
  %s1 = inlined_call_operand.vmem [shape: f32[34,32], index: 1, kind: input, shape index: {}]
  %s2 = inlined_call_operand.vmem [shape: f32[48,32], index: 2, kind: input, shape index: {}]
  %s3 = inlined_call_operand.vmem [shape: f32[2,32], index: 3, kind: input, shape index: {}]
  %s4 = inlined_call_operand.vmem [shape: f32[2,32,96], index: 4, kind: input, shape index: {}]
  %s5 = inlined_call_operand.vmem [shape: f32[2,1,96], index: 5, kind: input, shape index: {}]
  %s6 = inlined_call_operand.vmem [shape: f32[2,32,32], index: 6, kind: input, shape index: {}]
  %s7 = inlined_call_operand.vmem [shape: f32[2,32,64], index: 7, kind: input, shape index: {}]
  %s8 = inlined_call_operand.vmem [shape: f32[2,1,64], index: 8, kind: input, shape index: {}]
  %s9 = inlined_call_operand.vmem [shape: f32[2,64,32], index: 9, kind: input, shape index: {}]
  %s10 = inlined_call_operand.vmem [shape: f32[2,6,32], index: 10, kind: input, shape index: {}]
  %s11 = inlined_call_operand.vmem [shape: f32[34,32], index: 11, kind: output, shape index: {}]
  %s12 = sld [smem:[#allocation0]]
  $region54: #{transformer_forward.1} parent=0
    _
  %s14 = ssub.s32 1, %s12
  %s15 = scalar_select 0, %s14, %s12
  // Predicated region
  $region2: #{transformer_forward.1} parent=0 // pred_check
    _
  $region3: #{transformer_forward.1} parent=0 // pred_check_branch
    %17 = sbr.rel (0) target = $region5
  $region4: #{transformer_forward.1} parent=0 // pred_region
    _
  $region5: #{transformer_forward.1} parent=0 // pred_fallthru
    _
  // Predicated region
  $region6: #{transformer_forward.1} parent=0 // pred_check
    _
  $region7: #{transformer_forward.1} parent=0 // pred_check_branch
    %19 = sbr.rel (0) target = $region9
  $region8: #{transformer_forward.1} parent=0 // pred_region
    _
  $region9: #{transformer_forward.1} parent=0 // pred_fallthru
    _
  // Predicated region
  $region10: #{transformer_forward.1} parent=0 // pred_check
    _
  $region11: #{transformer_forward.1} parent=0 // pred_check_branch
    %21 = sbr.rel (0) target = $region13
  $region12: #{transformer_forward.1} parent=0 // pred_region
    _
  $region13: #{transformer_forward.1} parent=0 // pred_fallthru
    _
  // Predicated region
  $region14: #{transformer_forward.1} parent=0 // pred_check
    _
  $region15: #{transformer_forward.1} parent=0 // pred_check_branch
    %23 = sbr.rel (0) target = $region17
  $region16: #{transformer_forward.1} parent=0 // pred_region
    _
  $region17: #{transformer_forward.1} parent=0 // pred_fallthru
    _
  // Predicated region
  $region18: #{transformer_forward.1} parent=0 // pred_check
    _
  $region19: #{transformer_forward.1} parent=0 // pred_check_branch
    %25 = sbr.rel (0) target = $region21
  $region20: #{transformer_forward.1} parent=0 // pred_region
    _
  $region21: #{transformer_forward.1} parent=0 // pred_fallthru
    _
  // Predicated region
  $region22: #{transformer_forward.1} parent=0 // pred_check
    _
  $region23: #{transformer_forward.1} parent=0 // pred_check_branch
    %27 = sbr.rel (0) target = $region25
  $region24: #{transformer_forward.1} parent=0 // pred_region
    _
  $region25: #{transformer_forward.1} parent=0 // pred_fallthru
    _
  // Predicated region
  $region26: #{transformer_forward.1} parent=0 // pred_check
    _
  $region27: #{transformer_forward.1} parent=0 // pred_check_branch
    %29 = sbr.rel (0) target = $region29
  $region28: #{transformer_forward.1} parent=0 // pred_region
    _
  $region29: #{transformer_forward.1} parent=0 // pred_fallthru
    _
  // Predicated region
  $region30: #{transformer_forward.1} parent=0 // pred_check
    _
  $region31: #{transformer_forward.1} parent=0 // pred_check_branch
    %31 = sbr.rel (0) target = $region33
  $region32: #{transformer_forward.1} parent=0 // pred_region
    _
  $region33: #{transformer_forward.1} parent=0 // pred_fallthru
    _
  // Predicated region
  $region34: #{transformer_forward.1} parent=0 // pred_check
    _
  $region35: #{transformer_forward.1} parent=0 // pred_check_branch
    %33 = sbr.rel (0) target = $region37
  $region36: #{transformer_forward.1} parent=0 // pred_region
    _
  $region37: #{transformer_forward.1} parent=0 // pred_fallthru
    _
  // Predicated region
  $region38: #{transformer_forward.1} parent=0 // pred_check
    _
  $region39: #{transformer_forward.1} parent=0 // pred_check_branch
    %35 = sbr.rel (0) target = $region41
  $region40: #{transformer_forward.1} parent=0 // pred_region
    _
  $region41: #{transformer_forward.1} parent=0 // pred_fallthru
    _
  // Predicated region
  $region42: #{transformer_forward.1} parent=0 // pred_check
    _
  $region43: #{transformer_forward.1} parent=0 // pred_check_branch
    %37 = sbr.rel (0) target = $region45
  $region44: #{transformer_forward.1} parent=0 // pred_region
    _
  $region45: #{transformer_forward.1} parent=0 // pred_fallthru
    _
  %v38 = vld [vmem:[%s0] sm:$0xff]
  %v39 = vld [vmem:[%s0 + $0x8] sm:$0xff]
  %v40 = vld [vmem:[%s0 + $0x10] sm:$0xff]
  %v41 = vld [vmem:[%s0 + $0x18] sm:$0xff]
  %v42 = vld [vmem:[%s0 + $0x20] sm:$0x3]
  %v43 = vld [vmem:[%s2] sm:$0xff]
  %v44 = vld [vmem:[%s2 + $0x8] sm:$0xff]
  %v45 = vld [vmem:[%s2 + $0x10] sm:$0xff]
  %v46 = vld [vmem:[%s2 + $0x18] sm:$0xff]
  %v47 = vld [vmem:[%s2 + $0x20] sm:$0xff]
  %v48 = vld [vmem:[%s2 + $0x28] sm:$0xff]
  %v49 = vld [vmem:[%s1] sm:$0xff]
  %v50 = vld [vmem:[%s1 + $0x8] sm:$0xff]
  %v51 = vld [vmem:[%s1 + $0x10] sm:$0xff]
  %v52 = vld [vmem:[%s1 + $0x18] sm:$0xff]
  %v53 = vld [vmem:[%s1 + $0x20] sm:$0x3]
  %vm54 = vcmask 392192
  %v56 = vsel %vm54, %v38, 0
  %v59 = vsel %vm54, %v39, 0
  %v62 = vsel %vm54, %v40, 0
  %v65 = vsel %vm54, %v41, 0
  %v68 = vsel %vm54, %v42, 0
  %70 = vmatprep.subr.mxu0 0.0
  %71 = vmatpush1.msra.mxu0 %v43
  %72 = vmatprep.subr.mxu0 0.0
  %73 = vmatpush1.msra.mxu0 %v44
  %74 = vmatprep.subr.mxu0 0.0
  %75 = vmatpush1.msra.mxu0 %v45
  %76 = vmatprep.subr.mxu0 0.0
  %77 = vmatpush1.msra.mxu0 %v46
  %78 = vmatprep.subr.mxu0 0.0
  %79 = vmatpush1.msra.mxu0 %v47
  %80 = vmatprep.subr.mxu0 0.0
  %81 = vmatpush1.msra.mxu0 %v48
  %82 = vmatprep.subr.mxu0 0.0
  %83 = vmatpush1.msra.mxu0 0.0
  %84 = vmatprep.subr.mxu0 0.0
  %85 = vmatpush1.msra.mxu0 0.0
  %86 = vmatprep.subr.mxu0 0.0
  %87 = vmatpush1.msra.mxu0 0.0
  %88 = vmatprep.subr.mxu0 0.0
  %89 = vmatpush1.msra.mxu0 0.0
  %90 = vmatprep.subr.mxu0 0.0
  %91 = vmatpush1.msra.mxu0 0.0
  %92 = vmatprep.subr.mxu0 0.0
  %93 = vmatpush1.msra.mxu0 0.0
  %94 = vmatprep.subr.mxu0 0.0
  %95 = vmatpush1.msra.mxu0 0.0
  %96 = vmatprep.subr.mxu0 0.0
  %97 = vmatpush1.msra.mxu0 0.0
  %98 = vmatprep.subr.mxu0 0.0
  %99 = vmatpush1.msra.mxu0 0.0
  %100 = vmatprep.subr.mxu0 0.0
  %101 = vmatpush1.msra.mxu0 0.0
  %102 = vmatprep.subr.mxu0 0.0
  %103 = vmatpush1.msra.mxu0 0.0
  %104 = vmatprep.subr.mxu0 0.0
  %105 = vmatpush1.msra.mxu0 0.0
  %106 = vmatprep.subr.mxu0 0.0
  %107 = vmatpush1.msra.mxu0 0.0
  %108 = vmatprep.subr.mxu0 0.0
  %109 = vmatpush1.msra.mxu0 0.0
  %110 = vmatprep.subr.mxu0 0.0
  %111 = vmatpush1.msra.mxu0 0.0
  %112 = vmatprep.subr.mxu0 0.0
  %113 = vmatpush1.msra.mxu0 0.0
  %114 = vmatprep.subr.mxu0 0.0
  %115 = vmatpush1.msra.mxu0 0.0
  %116 = vmatprep.subr.mxu0 0.0
  %117 = vmatpush1.msra.mxu0 0.0
  %118 = vmatprep.subr.mxu0 0.0
  %119 = vmatpush1.msra.mxu0 0.0
  %120 = vmatprep.subr.mxu0 0.0
  %121 = vmatpush1.msra.mxu0 0.0
  %122 = vmatprep.subr.mxu0 0.0
  %123 = vmatpush1.msra.mxu0 0.0
  %124 = vmatprep.subr.mxu0 0.0
  %125 = vmatpush1.msra.mxu0 0.0
  %126 = vmatprep.subr.mxu0 0.0
  %127 = vmatpush1.msra.mxu0 0.0
  %128 = vmatprep.subr.mxu0 0.0
  %129 = vmatpush1.msra.mxu0 0.0
  %130 = vmatprep.subr.mxu0 0.0
  %131 = vmatpush1.msra.mxu0 0.0
  %132 = vmatprep.subr.mxu0 0.0
  %133 = vmatpush1.msra.mxu0 0.0
  %134 = vmatprep.mubr.f32.mxu0 0.0
  %135 = vmatmul.mubr.f32.gmra.mrb[0].mxu0 %v56
  %v136 = vpop.f32.mrb[0].mxu0
  %v137 = vadd.f32 %v49, %v136
  %v138 = vpop.f32.mrb[0].mxu0
  %139 = vmatprep.mubr.f32.mxu0 0.0
  %140 = vmatmul.mubr.f32.gmra.mrb[0].mxu0 %v59
  %v141 = vpop.f32.mrb[0].mxu0
  %v142 = vadd.f32 %v50, %v141
  %v143 = vpop.f32.mrb[0].mxu0
  %144 = vmatprep.mubr.f32.mxu0 0.0
  %145 = vmatmul.mubr.f32.gmra.mrb[0].mxu0 %v62
  %v146 = vpop.f32.mrb[0].mxu0
  %v147 = vadd.f32 %v51, %v146
  %v148 = vpop.f32.mrb[0].mxu0
  %149 = vmatprep.mubr.f32.mxu0 0.0
  %150 = vmatmul.mubr.f32.gmra.mrb[0].mxu0 %v65
  %v151 = vpop.f32.mrb[0].mxu0
  %v152 = vadd.f32 %v52, %v151
  %v153 = vpop.f32.mrb[0].mxu0
  %154 = vmatprep.mubr.f32.mxu0 0.0
  %155 = vmatmul.mubr.f32.gmra.mrb[0].mxu0 %v68
  %v156 = vpop.f32.mrb[0].mxu0
  %v157 = vadd.f32 %v53, %v156
  %v158 = vpop.f32.mrb[0].mxu0
  %159 = vdwg.mxu0
  %v160 = vlaneseq
  %v161 = vshrl.u32 %v160, 7
  %v162 = vadd.s32 %v161, 8
  %v163 = vadd.s32 %v161, 16
  %v164 = vadd.s32 %v161, 24
  %v165 = vadd.s32 %v161, 32
  %v166 = vlaneseq
  %v167 = vand.u32 %v166, 127
  %vm168 = vcmp.ge.s32.totalorder %v161, 0
  %vm169 = vcmp.ge.s32.totalorder %v162, 0
  %vm170 = vcmp.ge.s32.totalorder %v163, 0
  %vm171 = vcmp.ge.s32.totalorder %v164, 0
  %vm172 = vcmp.ge.s32.totalorder %v165, 0
  %vm173 = vcmp.lt.s32.totalorder %v161, 17
  %vm174 = vcmp.lt.s32.totalorder %v162, 17
  %vm175 = vcmp.lt.s32.totalorder %v163, 17
  %vm176 = vcmp.lt.s32.totalorder %v164, 17
  %vm177 = vcmp.lt.s32.totalorder %v165, 17
  %vm178 = vmand %vm168, %vm173
  %vm179 = vmand %vm169, %vm174
  %vm180 = vmand %vm170, %vm175
  %vm181 = vmand %vm171, %vm176
  %vm182 = vmand %vm172, %vm177
  %vm183 = vcmp.ge.s32.totalorder %v167, 0
  %vm184 = vcmp.lt.s32.totalorder %v167, 17
  %vm185 = vmand %vm183, %vm184
  %vm186 = vmand %vm178, %vm185
  %vm187 = vmand %vm179, %vm185
  %vm188 = vmand %vm180, %vm185
  %vm189 = vmand %vm181, %vm185
  %vm190 = vmand %vm182, %vm185
  %vm191 = vcmp.ge.s32.totalorder %v161, 17
  %vm192 = vcmp.ge.s32.totalorder %v162, 17
  %vm193 = vcmp.ge.s32.totalorder %v163, 17
  %vm194 = vcmp.ge.s32.totalorder %v164, 17
  %vm195 = vcmp.ge.s32.totalorder %v165, 17
  %vm196 = vcmp.lt.s32.totalorder %v161, 34
  %vm197 = vcmp.lt.s32.totalorder %v162, 34
  %vm198 = vcmp.lt.s32.totalorder %v163, 34
  %vm199 = vcmp.lt.s32.totalorder %v164, 34
  %vm200 = vcmp.lt.s32.totalorder %v165, 34
  %vm201 = vmand %vm191, %vm196
  %vm202 = vmand %vm192, %vm197
  %vm203 = vmand %vm193, %vm198
  %vm204 = vmand %vm194, %vm199
  %vm205 = vmand %vm195, %vm200
  %vm206 = vcmp.ge.s32.totalorder %v167, 17
  %vm207 = vcmp.lt.s32.totalorder %v167, 34
  %vm208 = vmand %vm206, %vm207
  %vm209 = vmand %vm201, %vm208
  %vm210 = vmand %vm202, %vm208
  %vm211 = vmand %vm203, %vm208
  %vm212 = vmand %vm204, %vm208
  %vm213 = vmand %vm205, %vm208
  %vm214 = vmor %vm186, %vm209
  %vm215 = vmor %vm187, %vm210
  %vm216 = vmor %vm188, %vm211
  %vm217 = vmor %vm189, %vm212
  %vm218 = vmor %vm190, %vm213
  %v219 = vsel %vm214, 0.0, -1e+30
  %v220 = vsel %vm215, 0.0, -1e+30
  %v221 = vsel %vm216, 0.0, -1e+30
  %v222 = vsel %vm217, 0.0, -1e+30
  %v223 = vsel %vm218, 0.0, -1e+30
  %vm224 = vcmp.lt.s32.totalorder %v167, 8
  %vm225 = vmand %vm183, %vm224
  %v226 = vsel %vm225, 1, 0
  %v227 = vcvt.s32.f32 %v226
  %vm228 = vcmp.ge.s32.totalorder %v167, 8
  %vm229 = vcmp.lt.s32.totalorder %v167, 16
  %vm230 = vmand %vm228, %vm229
  %v231 = vsel %vm230, 1, 0
  %v232 = vcvt.s32.f32 %v231
  %vm233 = vcmp.ge.s32.totalorder %v167, 16
  %vm234 = vcmp.lt.s32.totalorder %v167, 24
  %vm235 = vmand %vm233, %vm234
  %v236 = vsel %vm235, 1, 0
  %v237 = vcvt.s32.f32 %v236
  %vm238 = vcmp.ge.s32.totalorder %v167, 24
  %vm239 = vcmp.lt.s32.totalorder %v167, 32
  %vm240 = vmand %vm238, %vm239
  %v241 = vsel %vm240, 1, 0
  %v242 = vcvt.s32.f32 %v241
  %v243 = vld [vmem:[%s10] sm:$0x3f]
  %vm244 = vcmask 261120
  %v245 = vsel %vm244, %v137, 0.0
  %246 = vadd.xlane.f32.xlu0 %v245
  %v247 = vpop.xlane.xlu0 %246
  %v248 = vsel %vm244, %v142, 0.0
  %249 = vadd.xlane.f32.xlu0 %v248
  %v250 = vpop.xlane.xlu0 %249
  %v251 = vsel %vm244, %v147, 0.0
  %252 = vadd.xlane.f32.xlu0 %v251
  %v253 = vpop.xlane.xlu0 %252
  %v254 = vsel %vm244, %v152, 0.0
  %255 = vadd.xlane.f32.xlu0 %v254
  %v256 = vpop.xlane.xlu0 %255
  %vm257 = vcmask 254976
  %v258 = vsel %vm257, %v157, 0.0
  %259 = vadd.xlane.f32.xlu0 %v258
  %v260 = vpop.xlane.xlu0 %259
  %v261 = vrcp.pop 32.0
  %v262 = vmul.f32 %v247, %v261
  %v263 = vmul.f32 %v250, %v261
  %v264 = vmul.f32 %v253, %v261
  %v265 = vmul.f32 %v256, %v261
  %v266 = vmul.f32 %v260, %v261
  %v267 = vsub.f32 %v137, %v262
  %v268 = vsub.f32 %v142, %v263
  %v269 = vsub.f32 %v147, %v264
  %v270 = vsub.f32 %v152, %v265
  %v271 = vsub.f32 %v157, %v266
  %v272 = vmul.f32 %v267, %v267
  %v273 = vmul.f32 %v268, %v268
  %v274 = vmul.f32 %v269, %v269
  %v275 = vmul.f32 %v270, %v270
  %v276 = vmul.f32 %v271, %v271
  %v277 = vsel %vm244, %v272, 0.0
  %278 = vadd.xlane.f32.xlu0 %v277
  %v279 = vpop.xlane.xlu0 %278
  %v280 = vsel %vm244, %v273, 0.0
  %281 = vadd.xlane.f32.xlu0 %v280
  %v282 = vpop.xlane.xlu0 %281
  %v283 = vsel %vm244, %v274, 0.0
  %284 = vadd.xlane.f32.xlu0 %v283
  %v285 = vpop.xlane.xlu0 %284
  %v286 = vsel %vm244, %v275, 0.0
  %287 = vadd.xlane.f32.xlu0 %v286
  %v288 = vpop.xlane.xlu0 %287
  %v289 = vsel %vm257, %v276, 0.0
  %290 = vadd.xlane.f32.xlu0 %v289
  %v291 = vpop.xlane.xlu0 %290
  %v292 = vmul.f32 %v279, %v261
  %v293 = vmul.f32 %v282, %v261
  %v294 = vmul.f32 %v285, %v261
  %v295 = vmul.f32 %v288, %v261
  %v296 = vmul.f32 %v291, %v261
  %v297 = vadd.f32 %v292, 1e-06
  %v298 = vadd.f32 %v293, 1e-06
  %v299 = vadd.f32 %v294, 1e-06
  %v300 = vadd.f32 %v295, 1e-06
  %v301 = vadd.f32 %v296, 1e-06
  %v302 = vrsqrt.pop %v297
  %v303 = vrsqrt.pop %v298
  %v304 = vrsqrt.pop %v299
  %v305 = vrsqrt.pop %v300
  %v306 = vrsqrt.pop %v301
  %v307 = vmul.f32 %v267, %v302
  %v308 = vmul.f32 %v268, %v303
  %v309 = vmul.f32 %v269, %v304
  %v310 = vmul.f32 %v270, %v305
  %v311 = vmul.f32 %v271, %v306
  %v312 = vlaneseq
  %v313 = vshrl.u32 %v312, 7
  %v314 = vsub.s32 0, %v313
  %v315 = vrot.slane %v243, %v314
  %v316 = vmul.f32 %v307, %v315
  %v317 = vmul.f32 %v308, %v315
  %v318 = vmul.f32 %v309, %v315
  %v319 = vmul.f32 %v310, %v315
  %v320 = vmul.f32 %v311, %v315
  %v321 = vlaneseq
  %v322 = vshrl.u32 %v321, 7
  %v323 = vsub.s32 1, %v322
  %v324 = vrot.slane %v243, %v323
  %v325 = vadd.f32 %v316, %v324
  %v326 = vadd.f32 %v317, %v324
  %v327 = vadd.f32 %v318, %v324
  %v328 = vadd.f32 %v319, %v324
  %v329 = vadd.f32 %v320, %v324
  %v330 = vld [vmem:[%s4] sm:$0xff]
  %v331 = vld [vmem:[%s4 + $0x8] sm:$0xff]
  %v332 = vld [vmem:[%s4 + $0x10] sm:$0xff]
  %v333 = vld [vmem:[%s4 + $0x18] sm:$0xff]
  %v334 = vld [vmem:[%s5] sm:$0x1]
  %v336 = vlaneseq
  %v337 = vshrl.u32 %v336, 7
  %v338 = vsub.s32 0, %v337
  %v339 = vrot.slane %v334, %v338
  %v342 = vsel %vm244, %v325, 0
  %v345 = vsel %vm244, %v326, 0
  %v348 = vsel %vm244, %v327, 0
  %v351 = vsel %vm244, %v328, 0
  %v354 = vsel %vm244, %v329, 0
  %356 = vmatprep.subr.mxu0 0.0
  %357 = vmatpush1.msra.mxu0 %v330
  %358 = vmatprep.subr.mxu0 0.0
  %359 = vmatpush1.msra.mxu0 %v331
  %360 = vmatprep.subr.mxu0 0.0
  %361 = vmatpush1.msra.mxu0 %v332
  %362 = vmatprep.subr.mxu0 0.0
  %363 = vmatpush1.msra.mxu0 %v333
  %364 = vmatprep.subr.mxu0 0.0
  %365 = vmatpush1.msra.mxu0 0.0
  %366 = vmatprep.subr.mxu0 0.0
  %367 = vmatpush1.msra.mxu0 0.0
  %368 = vmatprep.subr.mxu0 0.0
  %369 = vmatpush1.msra.mxu0 0.0
  %370 = vmatprep.subr.mxu0 0.0
  %371 = vmatpush1.msra.mxu0 0.0
  %372 = vmatprep.subr.mxu0 0.0
  %373 = vmatpush1.msra.mxu0 0.0
  %374 = vmatprep.subr.mxu0 0.0
  %375 = vmatpush1.msra.mxu0 0.0
  %376 = vmatprep.subr.mxu0 0.0
  %377 = vmatpush1.msra.mxu0 0.0
  %378 = vmatprep.subr.mxu0 0.0
  %379 = vmatpush1.msra.mxu0 0.0
  %380 = vmatprep.subr.mxu0 0.0
  %381 = vmatpush1.msra.mxu0 0.0
  %382 = vmatprep.subr.mxu0 0.0
  %383 = vmatpush1.msra.mxu0 0.0
  %384 = vmatprep.subr.mxu0 0.0
  %385 = vmatpush1.msra.mxu0 0.0
  %386 = vmatprep.subr.mxu0 0.0
  %387 = vmatpush1.msra.mxu0 0.0
  %388 = vmatprep.subr.mxu0 0.0
  %389 = vmatpush1.msra.mxu0 0.0
  %390 = vmatprep.subr.mxu0 0.0
  %391 = vmatpush1.msra.mxu0 0.0
  %392 = vmatprep.subr.mxu0 0.0
  %393 = vmatpush1.msra.mxu0 0.0
  %394 = vmatprep.subr.mxu0 0.0
  %395 = vmatpush1.msra.mxu0 0.0
  %396 = vmatprep.subr.mxu0 0.0
  %397 = vmatpush1.msra.mxu0 0.0
  %398 = vmatprep.subr.mxu0 0.0
  %399 = vmatpush1.msra.mxu0 0.0
  %400 = vmatprep.subr.mxu0 0.0
  %401 = vmatpush1.msra.mxu0 0.0
  %402 = vmatprep.subr.mxu0 0.0
  %403 = vmatpush1.msra.mxu0 0.0
  %404 = vmatprep.subr.mxu0 0.0
  %405 = vmatpush1.msra.mxu0 0.0
  %406 = vmatprep.subr.mxu0 0.0
  %407 = vmatpush1.msra.mxu0 0.0
  %408 = vmatprep.subr.mxu0 0.0
  %409 = vmatpush1.msra.mxu0 0.0
  %410 = vmatprep.subr.mxu0 0.0
  %411 = vmatpush1.msra.mxu0 0.0
  %412 = vmatprep.subr.mxu0 0.0
  %413 = vmatpush1.msra.mxu0 0.0
  %414 = vmatprep.subr.mxu0 0.0
  %415 = vmatpush1.msra.mxu0 0.0
  %416 = vmatprep.subr.mxu0 0.0
  %417 = vmatpush1.msra.mxu0 0.0
  %418 = vmatprep.subr.mxu0 0.0
  %419 = vmatpush1.msra.mxu0 0.0
  %420 = vmatprep.mubr.f32.mxu0 0.0
  %421 = vmatmul.mubr.f32.gmra.mrb[0].mxu0 %v342
  %v422 = vpop.f32.mrb[0].mxu0
  %v423 = vadd.f32 %v339, %v422
  %v424 = vpop.f32.mrb[0].mxu0
  %425 = vmatprep.mubr.f32.mxu0 0.0
  %426 = vmatmul.mubr.f32.gmra.mrb[0].mxu0 %v345
  %v427 = vpop.f32.mrb[0].mxu0
  %v428 = vadd.f32 %v339, %v427
  %v429 = vpop.f32.mrb[0].mxu0
  %430 = vmatprep.mubr.f32.mxu0 0.0
  %431 = vmatmul.mubr.f32.gmra.mrb[0].mxu0 %v348
  %v432 = vpop.f32.mrb[0].mxu0
  %v433 = vadd.f32 %v339, %v432
  %v434 = vpop.f32.mrb[0].mxu0
  %435 = vmatprep.mubr.f32.mxu0 0.0
  %436 = vmatmul.mubr.f32.gmra.mrb[0].mxu0 %v351
  %v437 = vpop.f32.mrb[0].mxu0
  %v438 = vadd.f32 %v339, %v437
  %v439 = vpop.f32.mrb[0].mxu0
  %440 = vmatprep.mubr.f32.mxu0 0.0
  %441 = vmatmul.mubr.f32.gmra.mrb[0].mxu0 %v354
  %v442 = vpop.f32.mrb[0].mxu0
  %v443 = vadd.f32 %v339, %v442
  %v444 = vpop.f32.mrb[0].mxu0
  %445 = vdwg.mxu0
  %v446 = vmul.f32 %v423, %v227
  %v447 = vmul.f32 %v428, %v227
  %v448 = vmul.f32 %v433, %v227
  %v449 = vmul.f32 %v438, %v227
  %v450 = vmul.f32 %v443, %v227
  %456 = vrot.lane.b32.xlu0 %v423, 96
  %v457 = vpop.permute.xlu0 %456
  %458 = vrot.lane.b32.xlu0 %v428, 96
  %v459 = vpop.permute.xlu0 %458
  %460 = vrot.lane.b32.xlu0 %v433, 96
  %v461 = vpop.permute.xlu0 %460
  %462 = vrot.lane.b32.xlu0 %v438, 96
  %v463 = vpop.permute.xlu0 %462
  %464 = vrot.lane.b32.xlu0 %v443, 96
  %v465 = vpop.permute.xlu0 %464
  %v467 = vsel %vm244, %v446, 0
  %v470 = vsel %vm244, %v447, 0
  %v473 = vsel %vm244, %v448, 0
  %v476 = vsel %vm244, %v449, 0
  %v479 = vsel %vm244, %v450, 0
  %v481 = vsel %vm244, %v457, 0
  %v483 = vsel %vm244, %v459, 0
  %v485 = vsel %vm244, %v461, 0
  %v487 = vsel %vm244, %v463, 0
  %v489 = vsel %vm244, %v465, 0
  %491 = vmatprep.subr.mxu0 0.0
  %492 = vmatpush1.xpose.msra.mxu0 %v481
  %493 = vmatprep.subr.mxu0 0.0
  %494 = vmatpush1.xpose.msra.mxu0 %v483
  %495 = vmatprep.subr.mxu0 0.0
  %496 = vmatpush1.xpose.msra.mxu0 %v485
  %497 = vmatprep.subr.mxu0 0.0
  %498 = vmatpush1.xpose.msra.mxu0 %v487
  %499 = vmatprep.subr.mxu0 0.0
  %500 = vmatpush1.xpose.msra.mxu0 %v489
  %501 = vmatprep.subr.mxu0 0.0
  %502 = vmatpush1.xpose.msra.mxu0 0.0
  %503 = vmatprep.subr.mxu0 0.0
  %504 = vmatpush1.xpose.msra.mxu0 0.0
  %505 = vmatprep.subr.mxu0 0.0
  %506 = vmatpush1.xpose.msra.mxu0 0.0
  %507 = vmatprep.subr.mxu0 0.0
  %508 = vmatpush1.xpose.msra.mxu0 0.0
  %509 = vmatprep.subr.mxu0 0.0
  %510 = vmatpush1.xpose.msra.mxu0 0.0
  %511 = vmatprep.subr.mxu0 0.0
  %512 = vmatpush1.xpose.msra.mxu0 0.0
  %513 = vmatprep.subr.mxu0 0.0
  %514 = vmatpush1.xpose.msra.mxu0 0.0
  %515 = vmatprep.subr.mxu0 0.0
  %516 = vmatpush1.xpose.msra.mxu0 0.0
  %517 = vmatprep.subr.mxu0 0.0
  %518 = vmatpush1.xpose.msra.mxu0 0.0
  %519 = vmatprep.subr.mxu0 0.0
  %520 = vmatpush1.xpose.msra.mxu0 0.0
  %521 = vmatprep.subr.mxu0 0.0
  %522 = vmatpush1.xpose.msra.mxu0 0.0
  %523 = vmatprep.subr.mxu0 0.0
  %524 = vmatpush1.xpose.msra.mxu0 0.0
  %525 = vmatprep.subr.mxu0 0.0
  %526 = vmatpush1.xpose.msra.mxu0 0.0
  %527 = vmatprep.subr.mxu0 0.0
  %528 = vmatpush1.xpose.msra.mxu0 0.0
  %529 = vmatprep.subr.mxu0 0.0
  %530 = vmatpush1.xpose.msra.mxu0 0.0
  %531 = vmatprep.subr.mxu0 0.0
  %532 = vmatpush1.xpose.msra.mxu0 0.0
  %533 = vmatprep.subr.mxu0 0.0
  %534 = vmatpush1.xpose.msra.mxu0 0.0
  %535 = vmatprep.subr.mxu0 0.0
  %536 = vmatpush1.xpose.msra.mxu0 0.0
  %537 = vmatprep.subr.mxu0 0.0
  %538 = vmatpush1.xpose.msra.mxu0 0.0
  %539 = vmatprep.subr.mxu0 0.0
  %540 = vmatpush1.xpose.msra.mxu0 0.0
  %541 = vmatprep.subr.mxu0 0.0
  %542 = vmatpush1.xpose.msra.mxu0 0.0
  %543 = vmatprep.subr.mxu0 0.0
  %544 = vmatpush1.xpose.msra.mxu0 0.0
  %545 = vmatprep.subr.mxu0 0.0
  %546 = vmatpush1.xpose.msra.mxu0 0.0
  %547 = vmatprep.subr.mxu0 0.0
  %548 = vmatpush1.xpose.msra.mxu0 0.0
  %549 = vmatprep.subr.mxu0 0.0
  %550 = vmatpush1.xpose.msra.mxu0 0.0
  %551 = vmatprep.subr.mxu0 0.0
  %552 = vmatpush1.xpose.msra.mxu0 0.0
  %553 = vmatprep.subr.mxu0 0.0
  %554 = vmatpush1.xpose.msra.mxu0 0.0
  %555 = vmatprep.mubr.f32.mxu0 0.0
  %556 = vmatmul.mubr.f32.gmra.mrb[0].mxu0 %v467
  %v557 = vpop.f32.mrb[0].mxu0
  %v558 = vadd.f32 %v219, %v557
  %v559 = vpop.f32.mrb[0].mxu0
  %560 = vmatprep.mubr.f32.mxu0 0.0
  %561 = vmatmul.mubr.f32.gmra.mrb[0].mxu0 %v470
  %v562 = vpop.f32.mrb[0].mxu0
  %v563 = vadd.f32 %v220, %v562
  %v564 = vpop.f32.mrb[0].mxu0
  %565 = vmatprep.mubr.f32.mxu0 0.0
  %566 = vmatmul.mubr.f32.gmra.mrb[0].mxu0 %v473
  %v567 = vpop.f32.mrb[0].mxu0
  %v568 = vadd.f32 %v221, %v567
  %v569 = vpop.f32.mrb[0].mxu0
  %570 = vmatprep.mubr.f32.mxu0 0.0
  %571 = vmatmul.mubr.f32.gmra.mrb[0].mxu0 %v476
  %v572 = vpop.f32.mrb[0].mxu0
  %v573 = vadd.f32 %v222, %v572
  %v574 = vpop.f32.mrb[0].mxu0
  %575 = vmatprep.mubr.f32.mxu0 0.0
  %576 = vmatmul.mubr.f32.gmra.mrb[0].mxu0 %v479
  %v577 = vpop.f32.mrb[0].mxu0
  %v578 = vadd.f32 %v223, %v577
  %v579 = vpop.f32.mrb[0].mxu0
  %580 = vdwg.mxu0
  %vm581 = vcmask 277504
  %v582 = vsel %vm581, %v558, -inf
  %583 = vmax.xlane.f32.xlu0 %v582
  %v584 = vpop.xlane.xlu0 %583
  %v585 = vsel %vm581, %v563, -inf
  %586 = vmax.xlane.f32.xlu0 %v585
  %v587 = vpop.xlane.xlu0 %586
  %v588 = vsel %vm581, %v568, -inf
  %589 = vmax.xlane.f32.xlu0 %v588
  %v590 = vpop.xlane.xlu0 %589
  %v591 = vsel %vm581, %v573, -inf
  %592 = vmax.xlane.f32.xlu0 %v591
  %v593 = vpop.xlane.xlu0 %592
  %vm594 = vcmask 271360
  %v595 = vsel %vm594, %v578, -inf
  %596 = vmax.xlane.f32.xlu0 %v595
  %v597 = vpop.xlane.xlu0 %596
  %v598 = vsub.f32 %v558, %v584
  %v599 = vsub.f32 %v563, %v587
  %v600 = vsub.f32 %v568, %v590
  %v601 = vsub.f32 %v573, %v593
  %v602 = vsub.f32 %v578, %v597
  %v603 = vmul.f32 %v598, 1.442695
  %v604 = vpow.pop %v603
  %v605 = vmul.f32 %v599, 1.442695
  %v606 = vpow.pop %v605
  %v607 = vmul.f32 %v600, 1.442695
  %v608 = vpow.pop %v607
  %v609 = vmul.f32 %v601, 1.442695
  %v610 = vpow.pop %v609
  %v611 = vmul.f32 %v602, 1.442695
  %v612 = vpow.pop %v611
  %v613 = vsel %vm581, %v604, 0.0
  %614 = vadd.xlane.f32.xlu0 %v613
  %v615 = vpop.xlane.xlu0 %614
  %v616 = vsel %vm581, %v606, 0.0
  %617 = vadd.xlane.f32.xlu0 %v616
  %v618 = vpop.xlane.xlu0 %617
  %v619 = vsel %vm581, %v608, 0.0
  %620 = vadd.xlane.f32.xlu0 %v619
  %v621 = vpop.xlane.xlu0 %620
  %v622 = vsel %vm581, %v610, 0.0
  %623 = vadd.xlane.f32.xlu0 %v622
  %v624 = vpop.xlane.xlu0 %623
  %v625 = vsel %vm594, %v612, 0.0
  %626 = vadd.xlane.f32.xlu0 %v625
  %v627 = vpop.xlane.xlu0 %626
  %v628 = vrcp.pop %v615
  %v629 = vmul.f32 %v604, %v628
  %v630 = vrcp.pop %v618
  %v631 = vmul.f32 %v606, %v630
  %v632 = vrcp.pop %v621
  %v633 = vmul.f32 %v608, %v632
  %v634 = vrcp.pop %v624
  %v635 = vmul.f32 %v610, %v634
  %v636 = vrcp.pop %v627
  %v637 = vmul.f32 %v612, %v636
  %639 = vrot.lane.b32.xlu0 %v227, 64
  %v640 = vpop.permute.xlu0 %639
  %v642 = vmul.f32 %v423, %v640
  %v643 = vmul.f32 %v428, %v640
  %v644 = vmul.f32 %v433, %v640
  %v645 = vmul.f32 %v438, %v640
  %v646 = vmul.f32 %v443, %v640
  %v647 = vmul.f32 %v423, %v232
  %v648 = vmul.f32 %v428, %v232
  %v649 = vmul.f32 %v433, %v232
  %v650 = vmul.f32 %v438, %v232
  %v651 = vmul.f32 %v443, %v232
  %v653 = vsel %vm244, %v647, 0
  %v656 = vsel %vm244, %v648, 0
  %v659 = vsel %vm244, %v649, 0
  %v662 = vsel %vm244, %v650, 0
  %v665 = vsel %vm244, %v651, 0
  %667 = vmatprep.subr.mxu0 0.0
  %668 = vmatpush1.xpose.msra.mxu0 %v481
  %669 = vmatprep.subr.mxu0 0.0
  %670 = vmatpush1.xpose.msra.mxu0 %v483
  %671 = vmatprep.subr.mxu0 0.0
  %672 = vmatpush1.xpose.msra.mxu0 %v485
  %673 = vmatprep.subr.mxu0 0.0
  %674 = vmatpush1.xpose.msra.mxu0 %v487
  %675 = vmatprep.subr.mxu0 0.0
  %676 = vmatpush1.xpose.msra.mxu0 %v489
  %677 = vmatprep.subr.mxu0 0.0
  %678 = vmatpush1.xpose.msra.mxu0 0.0
  %679 = vmatprep.subr.mxu0 0.0
  %680 = vmatpush1.xpose.msra.mxu0 0.0
  %681 = vmatprep.subr.mxu0 0.0
  %682 = vmatpush1.xpose.msra.mxu0 0.0
  %683 = vmatprep.subr.mxu0 0.0
  %684 = vmatpush1.xpose.msra.mxu0 0.0
  %685 = vmatprep.subr.mxu0 0.0
  %686 = vmatpush1.xpose.msra.mxu0 0.0
  %687 = vmatprep.subr.mxu0 0.0
  %688 = vmatpush1.xpose.msra.mxu0 0.0
  %689 = vmatprep.subr.mxu0 0.0
  %690 = vmatpush1.xpose.msra.mxu0 0.0
  %691 = vmatprep.subr.mxu0 0.0
  %692 = vmatpush1.xpose.msra.mxu0 0.0
  %693 = vmatprep.subr.mxu0 0.0
  %694 = vmatpush1.xpose.msra.mxu0 0.0
  %695 = vmatprep.subr.mxu0 0.0
  %696 = vmatpush1.xpose.msra.mxu0 0.0
  %697 = vmatprep.subr.mxu0 0.0
  %698 = vmatpush1.xpose.msra.mxu0 0.0
  %699 = vmatprep.subr.mxu0 0.0
  %700 = vmatpush1.xpose.msra.mxu0 0.0
  %701 = vmatprep.subr.mxu0 0.0
  %702 = vmatpush1.xpose.msra.mxu0 0.0
  %703 = vmatprep.subr.mxu0 0.0
  %704 = vmatpush1.xpose.msra.mxu0 0.0
  %705 = vmatprep.subr.mxu0 0.0
  %706 = vmatpush1.xpose.msra.mxu0 0.0
  %707 = vmatprep.subr.mxu0 0.0
  %708 = vmatpush1.xpose.msra.mxu0 0.0
  %709 = vmatprep.subr.mxu0 0.0
  %710 = vmatpush1.xpose.msra.mxu0 0.0
  %711 = vmatprep.subr.mxu0 0.0
  %712 = vmatpush1.xpose.msra.mxu0 0.0
  %713 = vmatprep.subr.mxu0 0.0
  %714 = vmatpush1.xpose.msra.mxu0 0.0
  %715 = vmatprep.subr.mxu0 0.0
  %716 = vmatpush1.xpose.msra.mxu0 0.0
  %717 = vmatprep.subr.mxu0 0.0
  %718 = vmatpush1.xpose.msra.mxu0 0.0
  %719 = vmatprep.subr.mxu0 0.0
  %720 = vmatpush1.xpose.msra.mxu0 0.0
  %721 = vmatprep.subr.mxu0 0.0
  %722 = vmatpush1.xpose.msra.mxu0 0.0
  %723 = vmatprep.subr.mxu0 0.0
  %724 = vmatpush1.xpose.msra.mxu0 0.0
  %725 = vmatprep.subr.mxu0 0.0
  %726 = vmatpush1.xpose.msra.mxu0 0.0
  %727 = vmatprep.subr.mxu0 0.0
  %728 = vmatpush1.xpose.msra.mxu0 0.0
  %729 = vmatprep.subr.mxu0 0.0
  %730 = vmatpush1.xpose.msra.mxu0 0.0
  %731 = vmatprep.mubr.f32.mxu0 0.0
  %732 = vmatmul.mubr.f32.gmra.mrb[0].mxu0 %v653
  %v733 = vpop.f32.mrb[0].mxu0
  %v734 = vadd.f32 %v219, %v733
  %v735 = vpop.f32.mrb[0].mxu0
  %736 = vmatprep.mubr.f32.mxu0 0.0
  %737 = vmatmul.mubr.f32.gmra.mrb[0].mxu0 %v656
  %v738 = vpop.f32.mrb[0].mxu0
  %v739 = vadd.f32 %v220, %v738
  %v740 = vpop.f32.mrb[0].mxu0
  %741 = vmatprep.mubr.f32.mxu0 0.0
  %742 = vmatmul.mubr.f32.gmra.mrb[0].mxu0 %v659
  %v743 = vpop.f32.mrb[0].mxu0
  %v744 = vadd.f32 %v221, %v743
  %v745 = vpop.f32.mrb[0].mxu0
  %746 = vmatprep.mubr.f32.mxu0 0.0
  %747 = vmatmul.mubr.f32.gmra.mrb[0].mxu0 %v662
  %v748 = vpop.f32.mrb[0].mxu0
  %v749 = vadd.f32 %v222, %v748
  %v750 = vpop.f32.mrb[0].mxu0
  %751 = vmatprep.mubr.f32.mxu0 0.0
  %752 = vmatmul.mubr.f32.gmra.mrb[0].mxu0 %v665
  %v753 = vpop.f32.mrb[0].mxu0
  %v754 = vadd.f32 %v223, %v753
  %v755 = vpop.f32.mrb[0].mxu0
  %756 = vdwg.mxu0
  %v757 = vsel %vm581, %v734, -inf
  %758 = vmax.xlane.f32.xlu0 %v757
  %v759 = vpop.xlane.xlu0 %758
  %v760 = vsel %vm581, %v739, -inf
  %761 = vmax.xlane.f32.xlu0 %v760
  %v762 = vpop.xlane.xlu0 %761
  %v763 = vsel %vm581, %v744, -inf
  %764 = vmax.xlane.f32.xlu0 %v763
  %v765 = vpop.xlane.xlu0 %764
  %v766 = vsel %vm581, %v749, -inf
  %767 = vmax.xlane.f32.xlu0 %v766
  %v768 = vpop.xlane.xlu0 %767
  %v769 = vsel %vm594, %v754, -inf
  %770 = vmax.xlane.f32.xlu0 %v769
  %v771 = vpop.xlane.xlu0 %770
  %v772 = vsub.f32 %v734, %v759
  %v773 = vsub.f32 %v739, %v762
  %v774 = vsub.f32 %v744, %v765
  %v775 = vsub.f32 %v749, %v768
  %v776 = vsub.f32 %v754, %v771
  %v777 = vmul.f32 %v772, 1.442695
  %v778 = vpow.pop %v777
  %v779 = vmul.f32 %v773, 1.442695
  %v780 = vpow.pop %v779
  %v781 = vmul.f32 %v774, 1.442695
  %v782 = vpow.pop %v781
  %v783 = vmul.f32 %v775, 1.442695
  %v784 = vpow.pop %v783
  %v785 = vmul.f32 %v776, 1.442695
  %v786 = vpow.pop %v785
  %v787 = vsel %vm581, %v778, 0.0
  %788 = vadd.xlane.f32.xlu0 %v787
  %v789 = vpop.xlane.xlu0 %788
  %v790 = vsel %vm581, %v780, 0.0
  %791 = vadd.xlane.f32.xlu0 %v790
  %v792 = vpop.xlane.xlu0 %791
  %v793 = vsel %vm581, %v782, 0.0
  %794 = vadd.xlane.f32.xlu0 %v793
  %v795 = vpop.xlane.xlu0 %794
  %v796 = vsel %vm581, %v784, 0.0
  %797 = vadd.xlane.f32.xlu0 %v796
  %v798 = vpop.xlane.xlu0 %797
  %v799 = vsel %vm594, %v786, 0.0
  %800 = vadd.xlane.f32.xlu0 %v799
  %v801 = vpop.xlane.xlu0 %800
  %v802 = vrcp.pop %v789
  %v803 = vmul.f32 %v778, %v802
  %v804 = vrcp.pop %v792
  %v805 = vmul.f32 %v780, %v804
  %v806 = vrcp.pop %v795
  %v807 = vmul.f32 %v782, %v806
  %v808 = vrcp.pop %v798
  %v809 = vmul.f32 %v784, %v808
  %v810 = vrcp.pop %v801
  %v811 = vmul.f32 %v786, %v810
  %813 = vrot.lane.b32.xlu0 %v232, 64
  %v814 = vpop.permute.xlu0 %813
  %v816 = vmul.f32 %v423, %v814
  %v817 = vmul.f32 %v428, %v814
  %v818 = vmul.f32 %v433, %v814
  %v819 = vmul.f32 %v438, %v814
  %v820 = vmul.f32 %v443, %v814
  %826 = vrot.lane.b32.xlu0 %v816, 64
  %v827 = vpop.permute.xlu0 %826
  %828 = vrot.lane.b32.xlu0 %v817, 64
  %v829 = vpop.permute.xlu0 %828
  %830 = vrot.lane.b32.xlu0 %v818, 64
  %v831 = vpop.permute.xlu0 %830
  %832 = vrot.lane.b32.xlu0 %v819, 64
  %v833 = vpop.permute.xlu0 %832
  %834 = vrot.lane.b32.xlu0 %v820, 64
  %v835 = vpop.permute.xlu0 %834
  %v841 = vsel %vm581, %v803, 0
  %v844 = vsel %vm581, %v805, 0
  %v847 = vsel %vm581, %v807, 0
  %v850 = vsel %vm581, %v809, 0
  %v853 = vsel %vm581, %v811, 0
  %vm855 = vcmask 1041408
  %v856 = vsel %vm855, %v835, 0
  %858 = vmatprep.subr.mxu0 0.0
  %859 = vmatpush1.msra.mxu0 %v827
  %860 = vmatprep.subr.mxu0 0.0
  %861 = vmatpush1.msra.mxu0 %v829
  %862 = vmatprep.subr.mxu0 0.0
  %863 = vmatpush1.msra.mxu0 %v831
  %864 = vmatprep.subr.mxu0 0.0
  %865 = vmatpush1.msra.mxu0 %v833
  %866 = vmatprep.subr.mxu0 0.0
  %867 = vmatpush1.msra.mxu0 %v856
  %868 = vmatprep.subr.mxu0 0.0
  %869 = vmatpush1.msra.mxu0 0.0
  %870 = vmatprep.subr.mxu0 0.0
  %871 = vmatpush1.msra.mxu0 0.0
  %872 = vmatprep.subr.mxu0 0.0
  %873 = vmatpush1.msra.mxu0 0.0
  %874 = vmatprep.subr.mxu0 0.0
  %875 = vmatpush1.msra.mxu0 0.0
  %876 = vmatprep.subr.mxu0 0.0
  %877 = vmatpush1.msra.mxu0 0.0
  %878 = vmatprep.subr.mxu0 0.0
  %879 = vmatpush1.msra.mxu0 0.0
  %880 = vmatprep.subr.mxu0 0.0
  %881 = vmatpush1.msra.mxu0 0.0
  %882 = vmatprep.subr.mxu0 0.0
  %883 = vmatpush1.msra.mxu0 0.0
  %884 = vmatprep.subr.mxu0 0.0
  %885 = vmatpush1.msra.mxu0 0.0
  %886 = vmatprep.subr.mxu0 0.0
  %887 = vmatpush1.msra.mxu0 0.0
  %888 = vmatprep.subr.mxu0 0.0
  %889 = vmatpush1.msra.mxu0 0.0
  %890 = vmatprep.subr.mxu0 0.0
  %891 = vmatpush1.msra.mxu0 0.0
  %892 = vmatprep.subr.mxu0 0.0
  %893 = vmatpush1.msra.mxu0 0.0
  %894 = vmatprep.subr.mxu0 0.0
  %895 = vmatpush1.msra.mxu0 0.0
  %896 = vmatprep.subr.mxu0 0.0
  %897 = vmatpush1.msra.mxu0 0.0
  %898 = vmatprep.subr.mxu0 0.0
  %899 = vmatpush1.msra.mxu0 0.0
  %900 = vmatprep.subr.mxu0 0.0
  %901 = vmatpush1.msra.mxu0 0.0
  %902 = vmatprep.subr.mxu0 0.0
  %903 = vmatpush1.msra.mxu0 0.0
  %904 = vmatprep.subr.mxu0 0.0
  %905 = vmatpush1.msra.mxu0 0.0
  %906 = vmatprep.subr.mxu0 0.0
  %907 = vmatpush1.msra.mxu0 0.0
  %908 = vmatprep.subr.mxu0 0.0
  %909 = vmatpush1.msra.mxu0 0.0
  %910 = vmatprep.subr.mxu0 0.0
  %911 = vmatpush1.msra.mxu0 0.0
  %912 = vmatprep.subr.mxu0 0.0
  %913 = vmatpush1.msra.mxu0 0.0
  %914 = vmatprep.subr.mxu0 0.0
  %915 = vmatpush1.msra.mxu0 0.0
  %916 = vmatprep.subr.mxu0 0.0
  %917 = vmatpush1.msra.mxu0 0.0
  %918 = vmatprep.subr.mxu0 0.0
  %919 = vmatpush1.msra.mxu0 0.0
  %920 = vmatprep.subr.mxu0 0.0
  %921 = vmatpush1.msra.mxu0 0.0
  %922 = vmatprep.mubr.f32.mxu0 0.0
  %923 = vmatmul.mubr.f32.gmra.mrb[0].mxu0 %v841
  %v924 = vpop.f32.mrb[0].mxu0
  %v925 = vadd.f32 0.0, %v924
  %v926 = vpop.f32.mrb[0].mxu0
  %927 = vmatprep.mubr.f32.mxu0 0.0
  %928 = vmatmul.mubr.f32.gmra.mrb[0].mxu0 %v844
  %v929 = vpop.f32.mrb[0].mxu0
  %v930 = vadd.f32 0.0, %v929
  %v931 = vpop.f32.mrb[0].mxu0
  %932 = vmatprep.mubr.f32.mxu0 0.0
  %933 = vmatmul.mubr.f32.gmra.mrb[0].mxu0 %v847
  %v934 = vpop.f32.mrb[0].mxu0
  %v935 = vadd.f32 0.0, %v934
  %v936 = vpop.f32.mrb[0].mxu0
  %937 = vmatprep.mubr.f32.mxu0 0.0
  %938 = vmatmul.mubr.f32.gmra.mrb[0].mxu0 %v850
  %v939 = vpop.f32.mrb[0].mxu0
  %v940 = vadd.f32 0.0, %v939
  %v941 = vpop.f32.mrb[0].mxu0
  %942 = vmatprep.mubr.f32.mxu0 0.0
  %943 = vmatmul.mubr.f32.gmra.mrb[0].mxu0 %v853
  %v944 = vpop.f32.mrb[0].mxu0
  %v945 = vadd.f32 0.0, %v944
  %v946 = vpop.f32.mrb[0].mxu0
  %947 = vdwg.mxu0
  %953 = vrot.lane.b32.xlu0 %v642, 64
  %v954 = vpop.permute.xlu0 %953
  %955 = vrot.lane.b32.xlu0 %v643, 64
  %v956 = vpop.permute.xlu0 %955
  %957 = vrot.lane.b32.xlu0 %v644, 64
  %v958 = vpop.permute.xlu0 %957
  %959 = vrot.lane.b32.xlu0 %v645, 64
  %v960 = vpop.permute.xlu0 %959
  %961 = vrot.lane.b32.xlu0 %v646, 64
  %v962 = vpop.permute.xlu0 %961
  %v968 = vsel %vm581, %v629, 0
  %v971 = vsel %vm581, %v631, 0
  %v974 = vsel %vm581, %v633, 0
  %v977 = vsel %vm581, %v635, 0
  %v980 = vsel %vm581, %v637, 0
  %v982 = vsel %vm855, %v962, 0
  %984 = vmatprep.subr.mxu0 0.0
  %985 = vmatpush1.msra.mxu0 %v954
  %986 = vmatprep.subr.mxu0 0.0
  %987 = vmatpush1.msra.mxu0 %v956
  %988 = vmatprep.subr.mxu0 0.0
  %989 = vmatpush1.msra.mxu0 %v958
  %990 = vmatprep.subr.mxu0 0.0
  %991 = vmatpush1.msra.mxu0 %v960
  %992 = vmatprep.subr.mxu0 0.0
  %993 = vmatpush1.msra.mxu0 %v982
  %994 = vmatprep.subr.mxu0 0.0
  %995 = vmatpush1.msra.mxu0 0.0
  %996 = vmatprep.subr.mxu0 0.0
  %997 = vmatpush1.msra.mxu0 0.0
  %998 = vmatprep.subr.mxu0 0.0
  %999 = vmatpush1.msra.mxu0 0.0
  %1000 = vmatprep.subr.mxu0 0.0
  %1001 = vmatpush1.msra.mxu0 0.0
  %1002 = vmatprep.subr.mxu0 0.0
  %1003 = vmatpush1.msra.mxu0 0.0
  %1004 = vmatprep.subr.mxu0 0.0
  %1005 = vmatpush1.msra.mxu0 0.0
  %1006 = vmatprep.subr.mxu0 0.0
  %1007 = vmatpush1.msra.mxu0 0.0
  %1008 = vmatprep.subr.mxu0 0.0
  %1009 = vmatpush1.msra.mxu0 0.0
  %1010 = vmatprep.subr.mxu0 0.0
  %1011 = vmatpush1.msra.mxu0 0.0
  %1012 = vmatprep.subr.mxu0 0.0
  %1013 = vmatpush1.msra.mxu0 0.0
  %1014 = vmatprep.subr.mxu0 0.0
  %1015 = vmatpush1.msra.mxu0 0.0
  %1016 = vmatprep.subr.mxu0 0.0
  %1017 = vmatpush1.msra.mxu0 0.0
  %1018 = vmatprep.subr.mxu0 0.0
  %1019 = vmatpush1.msra.mxu0 0.0
  %1020 = vmatprep.subr.mxu0 0.0
  %1021 = vmatpush1.msra.mxu0 0.0
  %1022 = vmatprep.subr.mxu0 0.0
  %1023 = vmatpush1.msra.mxu0 0.0
  %1024 = vmatprep.subr.mxu0 0.0
  %1025 = vmatpush1.msra.mxu0 0.0
  %1026 = vmatprep.subr.mxu0 0.0
  %1027 = vmatpush1.msra.mxu0 0.0
  %1028 = vmatprep.subr.mxu0 0.0
  %1029 = vmatpush1.msra.mxu0 0.0
  %1030 = vmatprep.subr.mxu0 0.0
  %1031 = vmatpush1.msra.mxu0 0.0
  %1032 = vmatprep.subr.mxu0 0.0
  %1033 = vmatpush1.msra.mxu0 0.0
  %1034 = vmatprep.subr.mxu0 0.0
  %1035 = vmatpush1.msra.mxu0 0.0
  %1036 = vmatprep.subr.mxu0 0.0
  %1037 = vmatpush1.msra.mxu0 0.0
  %1038 = vmatprep.subr.mxu0 0.0
  %1039 = vmatpush1.msra.mxu0 0.0
  %1040 = vmatprep.subr.mxu0 0.0
  %1041 = vmatpush1.msra.mxu0 0.0
  %1042 = vmatprep.subr.mxu0 0.0
  %1043 = vmatpush1.msra.mxu0 0.0
  %1044 = vmatprep.subr.mxu0 0.0
  %1045 = vmatpush1.msra.mxu0 0.0
  %1046 = vmatprep.subr.mxu0 0.0
  %1047 = vmatpush1.msra.mxu0 0.0
  %1048 = vmatprep.mubr.f32.mxu0 0.0
  %1049 = vmatmul.mubr.f32.gmra.mrb[0].mxu0 %v968
  %v1050 = vpop.f32.mrb[0].mxu0
  %v1051 = vadd.f32 %v925, %v1050
  %v1052 = vpop.f32.mrb[0].mxu0
  %1053 = vmatprep.mubr.f32.mxu0 0.0
  %1054 = vmatmul.mubr.f32.gmra.mrb[0].mxu0 %v971
  %v1055 = vpop.f32.mrb[0].mxu0
  %v1056 = vadd.f32 %v930, %v1055
  %v1057 = vpop.f32.mrb[0].mxu0
  %1058 = vmatprep.mubr.f32.mxu0 0.0
  %1059 = vmatmul.mubr.f32.gmra.mrb[0].mxu0 %v974
  %v1060 = vpop.f32.mrb[0].mxu0
  %v1061 = vadd.f32 %v935, %v1060
  %v1062 = vpop.f32.mrb[0].mxu0
  %1063 = vmatprep.mubr.f32.mxu0 0.0
  %1064 = vmatmul.mubr.f32.gmra.mrb[0].mxu0 %v977
  %v1065 = vpop.f32.mrb[0].mxu0
  %v1066 = vadd.f32 %v940, %v1065
  %v1067 = vpop.f32.mrb[0].mxu0
  %1068 = vmatprep.mubr.f32.mxu0 0.0
  %1069 = vmatmul.mubr.f32.gmra.mrb[0].mxu0 %v980
  %v1070 = vpop.f32.mrb[0].mxu0
  %v1071 = vadd.f32 %v945, %v1070
  %v1072 = vpop.f32.mrb[0].mxu0
  %1073 = vdwg.mxu0
  %v1074 = vmul.f32 %v423, %v237
  %v1075 = vmul.f32 %v428, %v237
  %v1076 = vmul.f32 %v433, %v237
  %v1077 = vmul.f32 %v438, %v237
  %v1078 = vmul.f32 %v443, %v237
  %v1080 = vsel %vm244, %v1074, 0
  %v1083 = vsel %vm244, %v1075, 0
  %v1086 = vsel %vm244, %v1076, 0
  %v1089 = vsel %vm244, %v1077, 0
  %v1092 = vsel %vm244, %v1078, 0
  %1094 = vmatprep.subr.mxu0 0.0
  %1095 = vmatpush1.xpose.msra.mxu0 %v481
  %1096 = vmatprep.subr.mxu0 0.0
  %1097 = vmatpush1.xpose.msra.mxu0 %v483
  %1098 = vmatprep.subr.mxu0 0.0
  %1099 = vmatpush1.xpose.msra.mxu0 %v485
  %1100 = vmatprep.subr.mxu0 0.0
  %1101 = vmatpush1.xpose.msra.mxu0 %v487
  %1102 = vmatprep.subr.mxu0 0.0
  %1103 = vmatpush1.xpose.msra.mxu0 %v489
  %1104 = vmatprep.subr.mxu0 0.0
  %1105 = vmatpush1.xpose.msra.mxu0 0.0
  %1106 = vmatprep.subr.mxu0 0.0
  %1107 = vmatpush1.xpose.msra.mxu0 0.0
  %1108 = vmatprep.subr.mxu0 0.0
  %1109 = vmatpush1.xpose.msra.mxu0 0.0
  %1110 = vmatprep.subr.mxu0 0.0
  %1111 = vmatpush1.xpose.msra.mxu0 0.0
  %1112 = vmatprep.subr.mxu0 0.0
  %1113 = vmatpush1.xpose.msra.mxu0 0.0
  %1114 = vmatprep.subr.mxu0 0.0
  %1115 = vmatpush1.xpose.msra.mxu0 0.0
  %1116 = vmatprep.subr.mxu0 0.0
  %1117 = vmatpush1.xpose.msra.mxu0 0.0
  %1118 = vmatprep.subr.mxu0 0.0
  %1119 = vmatpush1.xpose.msra.mxu0 0.0
  %1120 = vmatprep.subr.mxu0 0.0
  %1121 = vmatpush1.xpose.msra.mxu0 0.0
  %1122 = vmatprep.subr.mxu0 0.0
  %1123 = vmatpush1.xpose.msra.mxu0 0.0
  %1124 = vmatprep.subr.mxu0 0.0
  %1125 = vmatpush1.xpose.msra.mxu0 0.0
  %1126 = vmatprep.subr.mxu0 0.0
  %1127 = vmatpush1.xpose.msra.mxu0 0.0
  %1128 = vmatprep.subr.mxu0 0.0
  %1129 = vmatpush1.xpose.msra.mxu0 0.0
  %1130 = vmatprep.subr.mxu0 0.0
  %1131 = vmatpush1.xpose.msra.mxu0 0.0
  %1132 = vmatprep.subr.mxu0 0.0
  %1133 = vmatpush1.xpose.msra.mxu0 0.0
  %1134 = vmatprep.subr.mxu0 0.0
  %1135 = vmatpush1.xpose.msra.mxu0 0.0
  %1136 = vmatprep.subr.mxu0 0.0
  %1137 = vmatpush1.xpose.msra.mxu0 0.0
  %1138 = vmatprep.subr.mxu0 0.0
  %1139 = vmatpush1.xpose.msra.mxu0 0.0
  %1140 = vmatprep.subr.mxu0 0.0
  %1141 = vmatpush1.xpose.msra.mxu0 0.0
  %1142 = vmatprep.subr.mxu0 0.0
  %1143 = vmatpush1.xpose.msra.mxu0 0.0
  %1144 = vmatprep.subr.mxu0 0.0
  %1145 = vmatpush1.xpose.msra.mxu0 0.0
  %1146 = vmatprep.subr.mxu0 0.0
  %1147 = vmatpush1.xpose.msra.mxu0 0.0
  %1148 = vmatprep.subr.mxu0 0.0
  %1149 = vmatpush1.xpose.msra.mxu0 0.0
  %1150 = vmatprep.subr.mxu0 0.0
  %1151 = vmatpush1.xpose.msra.mxu0 0.0
  %1152 = vmatprep.subr.mxu0 0.0
  %1153 = vmatpush1.xpose.msra.mxu0 0.0
  %1154 = vmatprep.subr.mxu0 0.0
  %1155 = vmatpush1.xpose.msra.mxu0 0.0
  %1156 = vmatprep.subr.mxu0 0.0
  %1157 = vmatpush1.xpose.msra.mxu0 0.0
  %1158 = vmatprep.mubr.f32.mxu0 0.0
  %1159 = vmatmul.mubr.f32.gmra.mrb[0].mxu0 %v1080
  %v1160 = vpop.f32.mrb[0].mxu0
  %v1161 = vadd.f32 %v219, %v1160
  %v1162 = vpop.f32.mrb[0].mxu0
  %1163 = vmatprep.mubr.f32.mxu0 0.0
  %1164 = vmatmul.mubr.f32.gmra.mrb[0].mxu0 %v1083
  %v1165 = vpop.f32.mrb[0].mxu0
  %v1166 = vadd.f32 %v220, %v1165
  %v1167 = vpop.f32.mrb[0].mxu0
  %1168 = vmatprep.mubr.f32.mxu0 0.0
  %1169 = vmatmul.mubr.f32.gmra.mrb[0].mxu0 %v1086
  %v1170 = vpop.f32.mrb[0].mxu0
  %v1171 = vadd.f32 %v221, %v1170
  %v1172 = vpop.f32.mrb[0].mxu0
  %1173 = vmatprep.mubr.f32.mxu0 0.0
  %1174 = vmatmul.mubr.f32.gmra.mrb[0].mxu0 %v1089
  %v1175 = vpop.f32.mrb[0].mxu0
  %v1176 = vadd.f32 %v222, %v1175
  %v1177 = vpop.f32.mrb[0].mxu0
  %1178 = vmatprep.mubr.f32.mxu0 0.0
  %1179 = vmatmul.mubr.f32.gmra.mrb[0].mxu0 %v1092
  %v1180 = vpop.f32.mrb[0].mxu0
  %v1181 = vadd.f32 %v223, %v1180
  %v1182 = vpop.f32.mrb[0].mxu0
  %1183 = vdwg.mxu0
  %v1184 = vsel %vm581, %v1161, -inf
  %1185 = vmax.xlane.f32.xlu0 %v1184
  %v1186 = vpop.xlane.xlu0 %1185
  %v1187 = vsel %vm581, %v1166, -inf
  %1188 = vmax.xlane.f32.xlu0 %v1187
  %v1189 = vpop.xlane.xlu0 %1188
  %v1190 = vsel %vm581, %v1171, -inf
  %1191 = vmax.xlane.f32.xlu0 %v1190
  %v1192 = vpop.xlane.xlu0 %1191
  %v1193 = vsel %vm581, %v1176, -inf
  %1194 = vmax.xlane.f32.xlu0 %v1193
  %v1195 = vpop.xlane.xlu0 %1194
  %v1196 = vsel %vm594, %v1181, -inf
  %1197 = vmax.xlane.f32.xlu0 %v1196
  %v1198 = vpop.xlane.xlu0 %1197
  %v1199 = vsub.f32 %v1161, %v1186
  %v1200 = vsub.f32 %v1166, %v1189
  %v1201 = vsub.f32 %v1171, %v1192
  %v1202 = vsub.f32 %v1176, %v1195
  %v1203 = vsub.f32 %v1181, %v1198
  %v1204 = vmul.f32 %v1199, 1.442695
  %v1205 = vpow.pop %v1204
  %v1206 = vmul.f32 %v1200, 1.442695
  %v1207 = vpow.pop %v1206
  %v1208 = vmul.f32 %v1201, 1.442695
  %v1209 = vpow.pop %v1208
  %v1210 = vmul.f32 %v1202, 1.442695
  %v1211 = vpow.pop %v1210
  %v1212 = vmul.f32 %v1203, 1.442695
  %v1213 = vpow.pop %v1212
  %v1214 = vsel %vm581, %v1205, 0.0
  %1215 = vadd.xlane.f32.xlu0 %v1214
  %v1216 = vpop.xlane.xlu0 %1215
  %v1217 = vsel %vm581, %v1207, 0.0
  %1218 = vadd.xlane.f32.xlu0 %v1217
  %v1219 = vpop.xlane.xlu0 %1218
  %v1220 = vsel %vm581, %v1209, 0.0
  %1221 = vadd.xlane.f32.xlu0 %v1220
  %v1222 = vpop.xlane.xlu0 %1221
  %v1223 = vsel %vm581, %v1211, 0.0
  %1224 = vadd.xlane.f32.xlu0 %v1223
  %v1225 = vpop.xlane.xlu0 %1224
  %v1226 = vsel %vm594, %v1213, 0.0
  %1227 = vadd.xlane.f32.xlu0 %v1226
  %v1228 = vpop.xlane.xlu0 %1227
  %v1229 = vrcp.pop %v1216
  %v1230 = vmul.f32 %v1205, %v1229
  %v1231 = vrcp.pop %v1219
  %v1232 = vmul.f32 %v1207, %v1231
  %v1233 = vrcp.pop %v1222
  %v1234 = vmul.f32 %v1209, %v1233
  %v1235 = vrcp.pop %v1225
  %v1236 = vmul.f32 %v1211, %v1235
  %v1237 = vrcp.pop %v1228
  %v1238 = vmul.f32 %v1213, %v1237
  %1240 = vrot.lane.b32.xlu0 %v237, 64
  %v1241 = vpop.permute.xlu0 %1240
  %v1243 = vmul.f32 %v423, %v1241
  %v1244 = vmul.f32 %v428, %v1241
  %v1245 = vmul.f32 %v433, %v1241
  %v1246 = vmul.f32 %v438, %v1241
  %v1247 = vmul.f32 %v443, %v1241
  %1253 = vrot.lane.b32.xlu0 %v1243, 64
  %v1254 = vpop.permute.xlu0 %1253
  %1255 = vrot.lane.b32.xlu0 %v1244, 64
  %v1256 = vpop.permute.xlu0 %1255
  %1257 = vrot.lane.b32.xlu0 %v1245, 64
  %v1258 = vpop.permute.xlu0 %1257
  %1259 = vrot.lane.b32.xlu0 %v1246, 64
  %v1260 = vpop.permute.xlu0 %1259
  %1261 = vrot.lane.b32.xlu0 %v1247, 64
  %v1262 = vpop.permute.xlu0 %1261
  %v1268 = vsel %vm581, %v1230, 0
  %v1271 = vsel %vm581, %v1232, 0
  %v1274 = vsel %vm581, %v1234, 0
  %v1277 = vsel %vm581, %v1236, 0
  %v1280 = vsel %vm581, %v1238, 0
  %v1282 = vsel %vm855, %v1262, 0
  %1284 = vmatprep.subr.mxu0 0.0
  %1285 = vmatpush1.msra.mxu0 %v1254
  %1286 = vmatprep.subr.mxu0 0.0
  %1287 = vmatpush1.msra.mxu0 %v1256
  %1288 = vmatprep.subr.mxu0 0.0
  %1289 = vmatpush1.msra.mxu0 %v1258
  %1290 = vmatprep.subr.mxu0 0.0
  %1291 = vmatpush1.msra.mxu0 %v1260
  %1292 = vmatprep.subr.mxu0 0.0
  %1293 = vmatpush1.msra.mxu0 %v1282
  %1294 = vmatprep.subr.mxu0 0.0
  %1295 = vmatpush1.msra.mxu0 0.0
  %1296 = vmatprep.subr.mxu0 0.0
  %1297 = vmatpush1.msra.mxu0 0.0
  %1298 = vmatprep.subr.mxu0 0.0
  %1299 = vmatpush1.msra.mxu0 0.0
  %1300 = vmatprep.subr.mxu0 0.0
  %1301 = vmatpush1.msra.mxu0 0.0
  %1302 = vmatprep.subr.mxu0 0.0
  %1303 = vmatpush1.msra.mxu0 0.0
  %1304 = vmatprep.subr.mxu0 0.0
  %1305 = vmatpush1.msra.mxu0 0.0
  %1306 = vmatprep.subr.mxu0 0.0
  %1307 = vmatpush1.msra.mxu0 0.0
  %1308 = vmatprep.subr.mxu0 0.0
  %1309 = vmatpush1.msra.mxu0 0.0
  %1310 = vmatprep.subr.mxu0 0.0
  %1311 = vmatpush1.msra.mxu0 0.0
  %1312 = vmatprep.subr.mxu0 0.0
  %1313 = vmatpush1.msra.mxu0 0.0
  %1314 = vmatprep.subr.mxu0 0.0
  %1315 = vmatpush1.msra.mxu0 0.0
  %1316 = vmatprep.subr.mxu0 0.0
  %1317 = vmatpush1.msra.mxu0 0.0
  %1318 = vmatprep.subr.mxu0 0.0
  %1319 = vmatpush1.msra.mxu0 0.0
  %1320 = vmatprep.subr.mxu0 0.0
  %1321 = vmatpush1.msra.mxu0 0.0
  %1322 = vmatprep.subr.mxu0 0.0
  %1323 = vmatpush1.msra.mxu0 0.0
  %1324 = vmatprep.subr.mxu0 0.0
  %1325 = vmatpush1.msra.mxu0 0.0
  %1326 = vmatprep.subr.mxu0 0.0
  %1327 = vmatpush1.msra.mxu0 0.0
  %1328 = vmatprep.subr.mxu0 0.0
  %1329 = vmatpush1.msra.mxu0 0.0
  %1330 = vmatprep.subr.mxu0 0.0
  %1331 = vmatpush1.msra.mxu0 0.0
  %1332 = vmatprep.subr.mxu0 0.0
  %1333 = vmatpush1.msra.mxu0 0.0
  %1334 = vmatprep.subr.mxu0 0.0
  %1335 = vmatpush1.msra.mxu0 0.0
  %1336 = vmatprep.subr.mxu0 0.0
  %1337 = vmatpush1.msra.mxu0 0.0
  %1338 = vmatprep.subr.mxu0 0.0
  %1339 = vmatpush1.msra.mxu0 0.0
  %1340 = vmatprep.subr.mxu0 0.0
  %1341 = vmatpush1.msra.mxu0 0.0
  %1342 = vmatprep.subr.mxu0 0.0
  %1343 = vmatpush1.msra.mxu0 0.0
  %1344 = vmatprep.subr.mxu0 0.0
  %1345 = vmatpush1.msra.mxu0 0.0
  %1346 = vmatprep.subr.mxu0 0.0
  %1347 = vmatpush1.msra.mxu0 0.0
  %1348 = vmatprep.mubr.f32.mxu0 0.0
  %1349 = vmatmul.mubr.f32.gmra.mrb[0].mxu0 %v1268
  %v1350 = vpop.f32.mrb[0].mxu0
  %v1351 = vadd.f32 0.0, %v1350
  %v1352 = vpop.f32.mrb[0].mxu0
  %1353 = vmatprep.mubr.f32.mxu0 0.0
  %1354 = vmatmul.mubr.f32.gmra.mrb[0].mxu0 %v1271
  %v1355 = vpop.f32.mrb[0].mxu0
  %v1356 = vadd.f32 0.0, %v1355
  %v1357 = vpop.f32.mrb[0].mxu0
  %1358 = vmatprep.mubr.f32.mxu0 0.0
  %1359 = vmatmul.mubr.f32.gmra.mrb[0].mxu0 %v1274
  %v1360 = vpop.f32.mrb[0].mxu0
  %v1361 = vadd.f32 0.0, %v1360
  %v1362 = vpop.f32.mrb[0].mxu0
  %1363 = vmatprep.mubr.f32.mxu0 0.0
  %1364 = vmatmul.mubr.f32.gmra.mrb[0].mxu0 %v1277
  %v1365 = vpop.f32.mrb[0].mxu0
  %v1366 = vadd.f32 0.0, %v1365
  %v1367 = vpop.f32.mrb[0].mxu0
  %1368 = vmatprep.mubr.f32.mxu0 0.0
  %1369 = vmatmul.mubr.f32.gmra.mrb[0].mxu0 %v1280
  %v1370 = vpop.f32.mrb[0].mxu0
  %v1371 = vadd.f32 0.0, %v1370
  %v1372 = vpop.f32.mrb[0].mxu0
  %1373 = vdwg.mxu0
  %v1374 = vadd.f32 %v1051, %v1351
  %v1375 = vadd.f32 %v1056, %v1356
  %v1376 = vadd.f32 %v1061, %v1361
  %v1377 = vadd.f32 %v1066, %v1366
  %v1378 = vadd.f32 %v1071, %v1371
  %v1379 = vmul.f32 %v423, %v242
  %v1380 = vmul.f32 %v428, %v242
  %v1381 = vmul.f32 %v433, %v242
  %v1382 = vmul.f32 %v438, %v242
  %v1383 = vmul.f32 %v443, %v242
  %v1385 = vsel %vm244, %v1379, 0
  %v1388 = vsel %vm244, %v1380, 0
  %v1391 = vsel %vm244, %v1381, 0
  %v1394 = vsel %vm244, %v1382, 0
  %v1397 = vsel %vm244, %v1383, 0
  %1399 = vmatprep.subr.mxu0 0.0
  %1400 = vmatpush1.xpose.msra.mxu0 %v481
  %1401 = vmatprep.subr.mxu0 0.0
  %1402 = vmatpush1.xpose.msra.mxu0 %v483
  %1403 = vmatprep.subr.mxu0 0.0
  %1404 = vmatpush1.xpose.msra.mxu0 %v485
  %1405 = vmatprep.subr.mxu0 0.0
  %1406 = vmatpush1.xpose.msra.mxu0 %v487
  %1407 = vmatprep.subr.mxu0 0.0
  %1408 = vmatpush1.xpose.msra.mxu0 %v489
  %1409 = vmatprep.subr.mxu0 0.0
  %1410 = vmatpush1.xpose.msra.mxu0 0.0
  %1411 = vmatprep.subr.mxu0 0.0
  %1412 = vmatpush1.xpose.msra.mxu0 0.0
  %1413 = vmatprep.subr.mxu0 0.0
  %1414 = vmatpush1.xpose.msra.mxu0 0.0
  %1415 = vmatprep.subr.mxu0 0.0
  %1416 = vmatpush1.xpose.msra.mxu0 0.0
  %1417 = vmatprep.subr.mxu0 0.0
  %1418 = vmatpush1.xpose.msra.mxu0 0.0
  %1419 = vmatprep.subr.mxu0 0.0
  %1420 = vmatpush1.xpose.msra.mxu0 0.0
  %1421 = vmatprep.subr.mxu0 0.0
  %1422 = vmatpush1.xpose.msra.mxu0 0.0
  %1423 = vmatprep.subr.mxu0 0.0
  %1424 = vmatpush1.xpose.msra.mxu0 0.0
  %1425 = vmatprep.subr.mxu0 0.0
  %1426 = vmatpush1.xpose.msra.mxu0 0.0
  %1427 = vmatprep.subr.mxu0 0.0
  %1428 = vmatpush1.xpose.msra.mxu0 0.0
  %1429 = vmatprep.subr.mxu0 0.0
  %1430 = vmatpush1.xpose.msra.mxu0 0.0
  %1431 = vmatprep.subr.mxu0 0.0
  %1432 = vmatpush1.xpose.msra.mxu0 0.0
  %1433 = vmatprep.subr.mxu0 0.0
  %1434 = vmatpush1.xpose.msra.mxu0 0.0
  %1435 = vmatprep.subr.mxu0 0.0
  %1436 = vmatpush1.xpose.msra.mxu0 0.0
  %1437 = vmatprep.subr.mxu0 0.0
  %1438 = vmatpush1.xpose.msra.mxu0 0.0
  %1439 = vmatprep.subr.mxu0 0.0
  %1440 = vmatpush1.xpose.msra.mxu0 0.0
  %1441 = vmatprep.subr.mxu0 0.0
  %1442 = vmatpush1.xpose.msra.mxu0 0.0
  %1443 = vmatprep.subr.mxu0 0.0
  %1444 = vmatpush1.xpose.msra.mxu0 0.0
  %1445 = vmatprep.subr.mxu0 0.0
  %1446 = vmatpush1.xpose.msra.mxu0 0.0
  %1447 = vmatprep.subr.mxu0 0.0
  %1448 = vmatpush1.xpose.msra.mxu0 0.0
  %1449 = vmatprep.subr.mxu0 0.0
  %1450 = vmatpush1.xpose.msra.mxu0 0.0
  %1451 = vmatprep.subr.mxu0 0.0
  %1452 = vmatpush1.xpose.msra.mxu0 0.0
  %1453 = vmatprep.subr.mxu0 0.0
  %1454 = vmatpush1.xpose.msra.mxu0 0.0
  %1455 = vmatprep.subr.mxu0 0.0
  %1456 = vmatpush1.xpose.msra.mxu0 0.0
  %1457 = vmatprep.subr.mxu0 0.0
  %1458 = vmatpush1.xpose.msra.mxu0 0.0
  %1459 = vmatprep.subr.mxu0 0.0
  %1460 = vmatpush1.xpose.msra.mxu0 0.0
  %1461 = vmatprep.subr.mxu0 0.0
  %1462 = vmatpush1.xpose.msra.mxu0 0.0
  %1463 = vmatprep.mubr.f32.mxu0 0.0
  %1464 = vmatmul.mubr.f32.gmra.mrb[0].mxu0 %v1385
  %v1465 = vpop.f32.mrb[0].mxu0
  %v1466 = vadd.f32 %v219, %v1465
  %v1467 = vpop.f32.mrb[0].mxu0
  %1468 = vmatprep.mubr.f32.mxu0 0.0
  %1469 = vmatmul.mubr.f32.gmra.mrb[0].mxu0 %v1388
  %v1470 = vpop.f32.mrb[0].mxu0
  %v1471 = vadd.f32 %v220, %v1470
  %v1472 = vpop.f32.mrb[0].mxu0
  %1473 = vmatprep.mubr.f32.mxu0 0.0
  %1474 = vmatmul.mubr.f32.gmra.mrb[0].mxu0 %v1391
  %v1475 = vpop.f32.mrb[0].mxu0
  %v1476 = vadd.f32 %v221, %v1475
  %v1477 = vpop.f32.mrb[0].mxu0
  %1478 = vmatprep.mubr.f32.mxu0 0.0
  %1479 = vmatmul.mubr.f32.gmra.mrb[0].mxu0 %v1394
  %v1480 = vpop.f32.mrb[0].mxu0
  %v1481 = vadd.f32 %v222, %v1480
  %v1482 = vpop.f32.mrb[0].mxu0
  %1483 = vmatprep.mubr.f32.mxu0 0.0
  %1484 = vmatmul.mubr.f32.gmra.mrb[0].mxu0 %v1397
  %v1485 = vpop.f32.mrb[0].mxu0
  %v1486 = vadd.f32 %v223, %v1485
  %v1487 = vpop.f32.mrb[0].mxu0
  %1488 = vdwg.mxu0
  %v1489 = vsel %vm581, %v1466, -inf
  %1490 = vmax.xlane.f32.xlu0 %v1489
  %v1491 = vpop.xlane.xlu0 %1490
  %v1492 = vsel %vm581, %v1471, -inf
  %1493 = vmax.xlane.f32.xlu0 %v1492
  %v1494 = vpop.xlane.xlu0 %1493
  %v1495 = vsel %vm581, %v1476, -inf
  %1496 = vmax.xlane.f32.xlu0 %v1495
  %v1497 = vpop.xlane.xlu0 %1496
  %v1498 = vsel %vm581, %v1481, -inf
  %1499 = vmax.xlane.f32.xlu0 %v1498
  %v1500 = vpop.xlane.xlu0 %1499
  %v1501 = vsel %vm594, %v1486, -inf
  %1502 = vmax.xlane.f32.xlu0 %v1501
  %v1503 = vpop.xlane.xlu0 %1502
  %v1504 = vsub.f32 %v1466, %v1491
  %v1505 = vsub.f32 %v1471, %v1494
  %v1506 = vsub.f32 %v1476, %v1497
  %v1507 = vsub.f32 %v1481, %v1500
  %v1508 = vsub.f32 %v1486, %v1503
  %v1509 = vmul.f32 %v1504, 1.442695
  %v1510 = vpow.pop %v1509
  %v1511 = vmul.f32 %v1505, 1.442695
  %v1512 = vpow.pop %v1511
  %v1513 = vmul.f32 %v1506, 1.442695
  %v1514 = vpow.pop %v1513
  %v1515 = vmul.f32 %v1507, 1.442695
  %v1516 = vpow.pop %v1515
  %v1517 = vmul.f32 %v1508, 1.442695
  %v1518 = vpow.pop %v1517
  %v1519 = vsel %vm581, %v1510, 0.0
  %1520 = vadd.xlane.f32.xlu0 %v1519
  %v1521 = vpop.xlane.xlu0 %1520
  %v1522 = vsel %vm581, %v1512, 0.0
  %1523 = vadd.xlane.f32.xlu0 %v1522
  %v1524 = vpop.xlane.xlu0 %1523
  %v1525 = vsel %vm581, %v1514, 0.0
  %1526 = vadd.xlane.f32.xlu0 %v1525
  %v1527 = vpop.xlane.xlu0 %1526
  %v1528 = vsel %vm581, %v1516, 0.0
  %1529 = vadd.xlane.f32.xlu0 %v1528
  %v1530 = vpop.xlane.xlu0 %1529
  %v1531 = vsel %vm594, %v1518, 0.0
  %1532 = vadd.xlane.f32.xlu0 %v1531
  %v1533 = vpop.xlane.xlu0 %1532
  %v1534 = vrcp.pop %v1521
  %v1535 = vmul.f32 %v1510, %v1534
  %v1536 = vrcp.pop %v1524
  %v1537 = vmul.f32 %v1512, %v1536
  %v1538 = vrcp.pop %v1527
  %v1539 = vmul.f32 %v1514, %v1538
  %v1540 = vrcp.pop %v1530
  %v1541 = vmul.f32 %v1516, %v1540
  %v1542 = vrcp.pop %v1533
  %v1543 = vmul.f32 %v1518, %v1542
  %1545 = vrot.lane.b32.xlu0 %v242, 64
  %v1546 = vpop.permute.xlu0 %1545
  %v1548 = vmul.f32 %v423, %v1546
  %v1549 = vmul.f32 %v428, %v1546
  %v1550 = vmul.f32 %v433, %v1546
  %v1551 = vmul.f32 %v438, %v1546
  %v1552 = vmul.f32 %v443, %v1546
  %1558 = vrot.lane.b32.xlu0 %v1548, 64
  %v1559 = vpop.permute.xlu0 %1558
  %1560 = vrot.lane.b32.xlu0 %v1549, 64
  %v1561 = vpop.permute.xlu0 %1560
  %1562 = vrot.lane.b32.xlu0 %v1550, 64
  %v1563 = vpop.permute.xlu0 %1562
  %1564 = vrot.lane.b32.xlu0 %v1551, 64
  %v1565 = vpop.permute.xlu0 %1564
  %1566 = vrot.lane.b32.xlu0 %v1552, 64
  %v1567 = vpop.permute.xlu0 %1566
  %v1573 = vsel %vm581, %v1535, 0
  %v1576 = vsel %vm581, %v1537, 0
  %v1579 = vsel %vm581, %v1539, 0
  %v1582 = vsel %vm581, %v1541, 0
  %v1585 = vsel %vm581, %v1543, 0
  %v1587 = vsel %vm855, %v1567, 0
  %1589 = vmatprep.subr.mxu0 0.0
  %1590 = vmatpush1.msra.mxu0 %v1559
  %1591 = vmatprep.subr.mxu0 0.0
  %1592 = vmatpush1.msra.mxu0 %v1561
  %1593 = vmatprep.subr.mxu0 0.0
  %1594 = vmatpush1.msra.mxu0 %v1563
  %1595 = vmatprep.subr.mxu0 0.0
  %1596 = vmatpush1.msra.mxu0 %v1565
  %1597 = vmatprep.subr.mxu0 0.0
  %1598 = vmatpush1.msra.mxu0 %v1587
  %1599 = vmatprep.subr.mxu0 0.0
  %1600 = vmatpush1.msra.mxu0 0.0
  %1601 = vmatprep.subr.mxu0 0.0
  %1602 = vmatpush1.msra.mxu0 0.0
  %1603 = vmatprep.subr.mxu0 0.0
  %1604 = vmatpush1.msra.mxu0 0.0
  %1605 = vmatprep.subr.mxu0 0.0
  %1606 = vmatpush1.msra.mxu0 0.0
  %1607 = vmatprep.subr.mxu0 0.0
  %1608 = vmatpush1.msra.mxu0 0.0
  %1609 = vmatprep.subr.mxu0 0.0
  %1610 = vmatpush1.msra.mxu0 0.0
  %1611 = vmatprep.subr.mxu0 0.0
  %1612 = vmatpush1.msra.mxu0 0.0
  %1613 = vmatprep.subr.mxu0 0.0
  %1614 = vmatpush1.msra.mxu0 0.0
  %1615 = vmatprep.subr.mxu0 0.0
  %1616 = vmatpush1.msra.mxu0 0.0
  %1617 = vmatprep.subr.mxu0 0.0
  %1618 = vmatpush1.msra.mxu0 0.0
  %1619 = vmatprep.subr.mxu0 0.0
  %1620 = vmatpush1.msra.mxu0 0.0
  %1621 = vmatprep.subr.mxu0 0.0
  %1622 = vmatpush1.msra.mxu0 0.0
  %1623 = vmatprep.subr.mxu0 0.0
  %1624 = vmatpush1.msra.mxu0 0.0
  %1625 = vmatprep.subr.mxu0 0.0
  %1626 = vmatpush1.msra.mxu0 0.0
  %1627 = vmatprep.subr.mxu0 0.0
  %1628 = vmatpush1.msra.mxu0 0.0
  %1629 = vmatprep.subr.mxu0 0.0
  %1630 = vmatpush1.msra.mxu0 0.0
  %1631 = vmatprep.subr.mxu0 0.0
  %1632 = vmatpush1.msra.mxu0 0.0
  %1633 = vmatprep.subr.mxu0 0.0
  %1634 = vmatpush1.msra.mxu0 0.0
  %1635 = vmatprep.subr.mxu0 0.0
  %1636 = vmatpush1.msra.mxu0 0.0
  %1637 = vmatprep.subr.mxu0 0.0
  %1638 = vmatpush1.msra.mxu0 0.0
  %1639 = vmatprep.subr.mxu0 0.0
  %1640 = vmatpush1.msra.mxu0 0.0
  %1641 = vmatprep.subr.mxu0 0.0
  %1642 = vmatpush1.msra.mxu0 0.0
  %1643 = vmatprep.subr.mxu0 0.0
  %1644 = vmatpush1.msra.mxu0 0.0
  %1645 = vmatprep.subr.mxu0 0.0
  %1646 = vmatpush1.msra.mxu0 0.0
  %1647 = vmatprep.subr.mxu0 0.0
  %1648 = vmatpush1.msra.mxu0 0.0
  %1649 = vmatprep.subr.mxu0 0.0
  %1650 = vmatpush1.msra.mxu0 0.0
  %1651 = vmatprep.subr.mxu0 0.0
  %1652 = vmatpush1.msra.mxu0 0.0
  %1653 = vmatprep.mubr.f32.mxu0 0.0
  %1654 = vmatmul.mubr.f32.gmra.mrb[0].mxu0 %v1573
  %v1655 = vpop.f32.mrb[0].mxu0
  %v1656 = vadd.f32 0.0, %v1655
  %v1657 = vpop.f32.mrb[0].mxu0
  %1658 = vmatprep.mubr.f32.mxu0 0.0
  %1659 = vmatmul.mubr.f32.gmra.mrb[0].mxu0 %v1576
  %v1660 = vpop.f32.mrb[0].mxu0
  %v1661 = vadd.f32 0.0, %v1660
  %v1662 = vpop.f32.mrb[0].mxu0
  %1663 = vmatprep.mubr.f32.mxu0 0.0
  %1664 = vmatmul.mubr.f32.gmra.mrb[0].mxu0 %v1579
  %v1665 = vpop.f32.mrb[0].mxu0
  %v1666 = vadd.f32 0.0, %v1665
  %v1667 = vpop.f32.mrb[0].mxu0
  %1668 = vmatprep.mubr.f32.mxu0 0.0
  %1669 = vmatmul.mubr.f32.gmra.mrb[0].mxu0 %v1582
  %v1670 = vpop.f32.mrb[0].mxu0
  %v1671 = vadd.f32 0.0, %v1670
  %v1672 = vpop.f32.mrb[0].mxu0
  %1673 = vmatprep.mubr.f32.mxu0 0.0
  %1674 = vmatmul.mubr.f32.gmra.mrb[0].mxu0 %v1585
  %v1675 = vpop.f32.mrb[0].mxu0
  %v1676 = vadd.f32 0.0, %v1675
  %v1677 = vpop.f32.mrb[0].mxu0
  %1678 = vdwg.mxu0
  %v1679 = vadd.f32 %v1374, %v1656
  %v1680 = vadd.f32 %v1375, %v1661
  %v1681 = vadd.f32 %v1376, %v1666
  %v1682 = vadd.f32 %v1377, %v1671
  %v1683 = vadd.f32 %v1378, %v1676
  %v1684 = vld [vmem:[%s6] sm:$0xff]
  %v1685 = vld [vmem:[%s6 + $0x8] sm:$0xff]
  %v1686 = vld [vmem:[%s6 + $0x10] sm:$0xff]
  %v1687 = vld [vmem:[%s6 + $0x18] sm:$0xff]
  %v1688 = vlaneseq
  %v1689 = vshrl.u32 %v1688, 7
  %v1690 = vsub.s32 2, %v1689
  %v1691 = vrot.slane %v243, %v1690
  %v1693 = vsel %vm244, %v1679, 0
  %v1696 = vsel %vm244, %v1680, 0
  %v1699 = vsel %vm244, %v1681, 0
  %v1702 = vsel %vm244, %v1682, 0
  %v1705 = vsel %vm244, %v1683, 0
  %1707 = vmatprep.subr.mxu0 0.0
  %1708 = vmatpush1.msra.mxu0 %v1684
  %1709 = vmatprep.subr.mxu0 0.0
  %1710 = vmatpush1.msra.mxu0 %v1685
  %1711 = vmatprep.subr.mxu0 0.0
  %1712 = vmatpush1.msra.mxu0 %v1686
  %1713 = vmatprep.subr.mxu0 0.0
  %1714 = vmatpush1.msra.mxu0 %v1687
  %1715 = vmatprep.subr.mxu0 0.0
  %1716 = vmatpush1.msra.mxu0 0.0
  %1717 = vmatprep.subr.mxu0 0.0
  %1718 = vmatpush1.msra.mxu0 0.0
  %1719 = vmatprep.subr.mxu0 0.0
  %1720 = vmatpush1.msra.mxu0 0.0
  %1721 = vmatprep.subr.mxu0 0.0
  %1722 = vmatpush1.msra.mxu0 0.0
  %1723 = vmatprep.subr.mxu0 0.0
  %1724 = vmatpush1.msra.mxu0 0.0
  %1725 = vmatprep.subr.mxu0 0.0
  %1726 = vmatpush1.msra.mxu0 0.0
  %1727 = vmatprep.subr.mxu0 0.0
  %1728 = vmatpush1.msra.mxu0 0.0
  %1729 = vmatprep.subr.mxu0 0.0
  %1730 = vmatpush1.msra.mxu0 0.0
  %1731 = vmatprep.subr.mxu0 0.0
  %1732 = vmatpush1.msra.mxu0 0.0
  %1733 = vmatprep.subr.mxu0 0.0
  %1734 = vmatpush1.msra.mxu0 0.0
  %1735 = vmatprep.subr.mxu0 0.0
  %1736 = vmatpush1.msra.mxu0 0.0
  %1737 = vmatprep.subr.mxu0 0.0
  %1738 = vmatpush1.msra.mxu0 0.0
  %1739 = vmatprep.subr.mxu0 0.0
  %1740 = vmatpush1.msra.mxu0 0.0
  %1741 = vmatprep.subr.mxu0 0.0
  %1742 = vmatpush1.msra.mxu0 0.0
  %1743 = vmatprep.subr.mxu0 0.0
  %1744 = vmatpush1.msra.mxu0 0.0
  %1745 = vmatprep.subr.mxu0 0.0
  %1746 = vmatpush1.msra.mxu0 0.0
  %1747 = vmatprep.subr.mxu0 0.0
  %1748 = vmatpush1.msra.mxu0 0.0
  %1749 = vmatprep.subr.mxu0 0.0
  %1750 = vmatpush1.msra.mxu0 0.0
  %1751 = vmatprep.subr.mxu0 0.0
  %1752 = vmatpush1.msra.mxu0 0.0
  %1753 = vmatprep.subr.mxu0 0.0
  %1754 = vmatpush1.msra.mxu0 0.0
  %1755 = vmatprep.subr.mxu0 0.0
  %1756 = vmatpush1.msra.mxu0 0.0
  %1757 = vmatprep.subr.mxu0 0.0
  %1758 = vmatpush1.msra.mxu0 0.0
  %1759 = vmatprep.subr.mxu0 0.0
  %1760 = vmatpush1.msra.mxu0 0.0
  %1761 = vmatprep.subr.mxu0 0.0
  %1762 = vmatpush1.msra.mxu0 0.0
  %1763 = vmatprep.subr.mxu0 0.0
  %1764 = vmatpush1.msra.mxu0 0.0
  %1765 = vmatprep.subr.mxu0 0.0
  %1766 = vmatpush1.msra.mxu0 0.0
  %1767 = vmatprep.subr.mxu0 0.0
  %1768 = vmatpush1.msra.mxu0 0.0
  %1769 = vmatprep.subr.mxu0 0.0
  %1770 = vmatpush1.msra.mxu0 0.0
  %1771 = vmatprep.mubr.f32.mxu0 0.0
  %1772 = vmatmul.mubr.f32.gmra.mrb[0].mxu0 %v1693
  %v1773 = vpop.f32.mrb[0].mxu0
  %v1774 = vadd.f32 %v1691, %v1773
  %v1775 = vpop.f32.mrb[0].mxu0
  %1776 = vmatprep.mubr.f32.mxu0 0.0
  %1777 = vmatmul.mubr.f32.gmra.mrb[0].mxu0 %v1696
  %v1778 = vpop.f32.mrb[0].mxu0
  %v1779 = vadd.f32 %v1691, %v1778
  %v1780 = vpop.f32.mrb[0].mxu0
  %1781 = vmatprep.mubr.f32.mxu0 0.0
  %1782 = vmatmul.mubr.f32.gmra.mrb[0].mxu0 %v1699
  %v1783 = vpop.f32.mrb[0].mxu0
  %v1784 = vadd.f32 %v1691, %v1783
  %v1785 = vpop.f32.mrb[0].mxu0
  %1786 = vmatprep.mubr.f32.mxu0 0.0
  %1787 = vmatmul.mubr.f32.gmra.mrb[0].mxu0 %v1702
  %v1788 = vpop.f32.mrb[0].mxu0
  %v1789 = vadd.f32 %v1691, %v1788
  %v1790 = vpop.f32.mrb[0].mxu0
  %1791 = vmatprep.mubr.f32.mxu0 0.0
  %1792 = vmatmul.mubr.f32.gmra.mrb[0].mxu0 %v1705
  %v1793 = vpop.f32.mrb[0].mxu0
  %v1794 = vadd.f32 %v1691, %v1793
  %v1795 = vpop.f32.mrb[0].mxu0
  %1796 = vdwg.mxu0
  %v1797 = vadd.f32 %v1774, %v137
  %v1798 = vadd.f32 %v1779, %v142
  %v1799 = vadd.f32 %v1784, %v147
  %v1800 = vadd.f32 %v1789, %v152
  %v1801 = vadd.f32 %v1794, %v157
  %v1802 = vsel %vm244, %v1797, 0.0
  %1803 = vadd.xlane.f32.xlu0 %v1802
  %v1804 = vpop.xlane.xlu0 %1803
  %v1805 = vsel %vm244, %v1798, 0.0
  %1806 = vadd.xlane.f32.xlu0 %v1805
  %v1807 = vpop.xlane.xlu0 %1806
  %v1808 = vsel %vm244, %v1799, 0.0
  %1809 = vadd.xlane.f32.xlu0 %v1808
  %v1810 = vpop.xlane.xlu0 %1809
  %v1811 = vsel %vm244, %v1800, 0.0
  %1812 = vadd.xlane.f32.xlu0 %v1811
  %v1813 = vpop.xlane.xlu0 %1812
  %v1814 = vsel %vm257, %v1801, 0.0
  %1815 = vadd.xlane.f32.xlu0 %v1814
  %v1816 = vpop.xlane.xlu0 %1815
  %v1817 = vmul.f32 %v1804, %v261
  %v1818 = vmul.f32 %v1807, %v261
  %v1819 = vmul.f32 %v1810, %v261
  %v1820 = vmul.f32 %v1813, %v261
  %v1821 = vmul.f32 %v1816, %v261
  %v1822 = vsub.f32 %v1797, %v1817
  %v1823 = vsub.f32 %v1798, %v1818
  %v1824 = vsub.f32 %v1799, %v1819
  %v1825 = vsub.f32 %v1800, %v1820
  %v1826 = vsub.f32 %v1801, %v1821
  %v1827 = vmul.f32 %v1822, %v1822
  %v1828 = vmul.f32 %v1823, %v1823
  %v1829 = vmul.f32 %v1824, %v1824
  %v1830 = vmul.f32 %v1825, %v1825
  %v1831 = vmul.f32 %v1826, %v1826
  %v1832 = vsel %vm244, %v1827, 0.0
  %1833 = vadd.xlane.f32.xlu0 %v1832
  %v1834 = vpop.xlane.xlu0 %1833
  %v1835 = vsel %vm244, %v1828, 0.0
  %1836 = vadd.xlane.f32.xlu0 %v1835
  %v1837 = vpop.xlane.xlu0 %1836
  %v1838 = vsel %vm244, %v1829, 0.0
  %1839 = vadd.xlane.f32.xlu0 %v1838
  %v1840 = vpop.xlane.xlu0 %1839
  %v1841 = vsel %vm244, %v1830, 0.0
  %1842 = vadd.xlane.f32.xlu0 %v1841
  %v1843 = vpop.xlane.xlu0 %1842
  %v1844 = vsel %vm257, %v1831, 0.0
  %1845 = vadd.xlane.f32.xlu0 %v1844
  %v1846 = vpop.xlane.xlu0 %1845
  %v1847 = vmul.f32 %v1834, %v261
  %v1848 = vmul.f32 %v1837, %v261
  %v1849 = vmul.f32 %v1840, %v261
  %v1850 = vmul.f32 %v1843, %v261
  %v1851 = vmul.f32 %v1846, %v261
  %v1852 = vadd.f32 %v1847, 1e-06
  %v1853 = vadd.f32 %v1848, 1e-06
  %v1854 = vadd.f32 %v1849, 1e-06
  %v1855 = vadd.f32 %v1850, 1e-06
  %v1856 = vadd.f32 %v1851, 1e-06
  %v1857 = vrsqrt.pop %v1852
  %v1858 = vrsqrt.pop %v1853
  %v1859 = vrsqrt.pop %v1854
  %v1860 = vrsqrt.pop %v1855
  %v1861 = vrsqrt.pop %v1856
  %v1862 = vmul.f32 %v1822, %v1857
  %v1863 = vmul.f32 %v1823, %v1858
  %v1864 = vmul.f32 %v1824, %v1859
  %v1865 = vmul.f32 %v1825, %v1860
  %v1866 = vmul.f32 %v1826, %v1861
  %v1867 = vlaneseq
  %v1868 = vshrl.u32 %v1867, 7
  %v1869 = vsub.s32 3, %v1868
  %v1870 = vrot.slane %v243, %v1869
  %v1871 = vmul.f32 %v1862, %v1870
  %v1872 = vmul.f32 %v1863, %v1870
  %v1873 = vmul.f32 %v1864, %v1870
  %v1874 = vmul.f32 %v1865, %v1870
  %v1875 = vmul.f32 %v1866, %v1870
  %v1876 = vlaneseq
  %v1877 = vshrl.u32 %v1876, 7
  %v1878 = vsub.s32 4, %v1877
  %v1879 = vrot.slane %v243, %v1878
  %v1880 = vadd.f32 %v1871, %v1879
  %v1881 = vadd.f32 %v1872, %v1879
  %v1882 = vadd.f32 %v1873, %v1879
  %v1883 = vadd.f32 %v1874, %v1879
  %v1884 = vadd.f32 %v1875, %v1879
  %v1885 = vld [vmem:[%s7] sm:$0xff]
  %v1886 = vld [vmem:[%s7 + $0x8] sm:$0xff]
  %v1887 = vld [vmem:[%s7 + $0x10] sm:$0xff]
  %v1888 = vld [vmem:[%s7 + $0x18] sm:$0xff]
  %v1889 = vld [vmem:[%s8] sm:$0x1]
  %v1891 = vlaneseq
  %v1892 = vshrl.u32 %v1891, 7
  %v1893 = vsub.s32 0, %v1892
  %v1894 = vrot.slane %v1889, %v1893
  %v1897 = vsel %vm244, %v1880, 0
  %v1900 = vsel %vm244, %v1881, 0
  %v1903 = vsel %vm244, %v1882, 0
  %v1906 = vsel %vm244, %v1883, 0
  %v1909 = vsel %vm244, %v1884, 0
  %1911 = vmatprep.subr.mxu0 0.0
  %1912 = vmatpush1.msra.mxu0 %v1885
  %1913 = vmatprep.subr.mxu0 0.0
  %1914 = vmatpush1.msra.mxu0 %v1886
  %1915 = vmatprep.subr.mxu0 0.0
  %1916 = vmatpush1.msra.mxu0 %v1887
  %1917 = vmatprep.subr.mxu0 0.0
  %1918 = vmatpush1.msra.mxu0 %v1888
  %1919 = vmatprep.subr.mxu0 0.0
  %1920 = vmatpush1.msra.mxu0 0.0
  %1921 = vmatprep.subr.mxu0 0.0
  %1922 = vmatpush1.msra.mxu0 0.0
  %1923 = vmatprep.subr.mxu0 0.0
  %1924 = vmatpush1.msra.mxu0 0.0
  %1925 = vmatprep.subr.mxu0 0.0
  %1926 = vmatpush1.msra.mxu0 0.0
  %1927 = vmatprep.subr.mxu0 0.0
  %1928 = vmatpush1.msra.mxu0 0.0
  %1929 = vmatprep.subr.mxu0 0.0
  %1930 = vmatpush1.msra.mxu0 0.0
  %1931 = vmatprep.subr.mxu0 0.0
  %1932 = vmatpush1.msra.mxu0 0.0
  %1933 = vmatprep.subr.mxu0 0.0
  %1934 = vmatpush1.msra.mxu0 0.0
  %1935 = vmatprep.subr.mxu0 0.0
  %1936 = vmatpush1.msra.mxu0 0.0
  %1937 = vmatprep.subr.mxu0 0.0
  %1938 = vmatpush1.msra.mxu0 0.0
  %1939 = vmatprep.subr.mxu0 0.0
  %1940 = vmatpush1.msra.mxu0 0.0
  %1941 = vmatprep.subr.mxu0 0.0
  %1942 = vmatpush1.msra.mxu0 0.0
  %1943 = vmatprep.subr.mxu0 0.0
  %1944 = vmatpush1.msra.mxu0 0.0
  %1945 = vmatprep.subr.mxu0 0.0
  %1946 = vmatpush1.msra.mxu0 0.0
  %1947 = vmatprep.subr.mxu0 0.0
  %1948 = vmatpush1.msra.mxu0 0.0
  %1949 = vmatprep.subr.mxu0 0.0
  %1950 = vmatpush1.msra.mxu0 0.0
  %1951 = vmatprep.subr.mxu0 0.0
  %1952 = vmatpush1.msra.mxu0 0.0
  %1953 = vmatprep.subr.mxu0 0.0
  %1954 = vmatpush1.msra.mxu0 0.0
  %1955 = vmatprep.subr.mxu0 0.0
  %1956 = vmatpush1.msra.mxu0 0.0
  %1957 = vmatprep.subr.mxu0 0.0
  %1958 = vmatpush1.msra.mxu0 0.0
  %1959 = vmatprep.subr.mxu0 0.0
  %1960 = vmatpush1.msra.mxu0 0.0
  %1961 = vmatprep.subr.mxu0 0.0
  %1962 = vmatpush1.msra.mxu0 0.0
  %1963 = vmatprep.subr.mxu0 0.0
  %1964 = vmatpush1.msra.mxu0 0.0
  %1965 = vmatprep.subr.mxu0 0.0
  %1966 = vmatpush1.msra.mxu0 0.0
  %1967 = vmatprep.subr.mxu0 0.0
  %1968 = vmatpush1.msra.mxu0 0.0
  %1969 = vmatprep.subr.mxu0 0.0
  %1970 = vmatpush1.msra.mxu0 0.0
  %1971 = vmatprep.subr.mxu0 0.0
  %1972 = vmatpush1.msra.mxu0 0.0
  %1973 = vmatprep.subr.mxu0 0.0
  %1974 = vmatpush1.msra.mxu0 0.0
  %1975 = vmatprep.mubr.f32.mxu0 0.0
  %1976 = vmatmul.mubr.f32.gmra.mrb[0].mxu0 %v1897
  %v1977 = vpop.f32.mrb[0].mxu0
  %v1978 = vadd.f32 %v1894, %v1977
  %v1979 = vpop.f32.mrb[0].mxu0
  %1980 = vmatprep.mubr.f32.mxu0 0.0
  %1981 = vmatmul.mubr.f32.gmra.mrb[0].mxu0 %v1900
  %v1982 = vpop.f32.mrb[0].mxu0
  %v1983 = vadd.f32 %v1894, %v1982
  %v1984 = vpop.f32.mrb[0].mxu0
  %1985 = vmatprep.mubr.f32.mxu0 0.0
  %1986 = vmatmul.mubr.f32.gmra.mrb[0].mxu0 %v1903
  %v1987 = vpop.f32.mrb[0].mxu0
  %v1988 = vadd.f32 %v1894, %v1987
  %v1989 = vpop.f32.mrb[0].mxu0
  %1990 = vmatprep.mubr.f32.mxu0 0.0
  %1991 = vmatmul.mubr.f32.gmra.mrb[0].mxu0 %v1906
  %v1992 = vpop.f32.mrb[0].mxu0
  %v1993 = vadd.f32 %v1894, %v1992
  %v1994 = vpop.f32.mrb[0].mxu0
  %1995 = vmatprep.mubr.f32.mxu0 0.0
  %1996 = vmatmul.mubr.f32.gmra.mrb[0].mxu0 %v1909
  %v1997 = vpop.f32.mrb[0].mxu0
  %v1998 = vadd.f32 %v1894, %v1997
  %v1999 = vpop.f32.mrb[0].mxu0
  %2000 = vdwg.mxu0
  %v2001 = vmul.f32 %v1978, 0.5
  %v2002 = vmul.f32 %v1983, 0.5
  %v2003 = vmul.f32 %v1988, 0.5
  %v2004 = vmul.f32 %v1993, 0.5
  %v2005 = vmul.f32 %v1998, 0.5
  %v2006 = vmul.f32 %v1978, 0.70710677
  %v2007 = vmul.f32 %v1983, 0.70710677
  %v2008 = vmul.f32 %v1988, 0.70710677
  %v2009 = vmul.f32 %v1993, 0.70710677
  %v2010 = vmul.f32 %v1998, 0.70710677
  %v2011 = verf.f32.pop %v2006
  %v2012 = verf.f32.pop %v2007
  %v2013 = verf.f32.pop %v2008
  %v2014 = verf.f32.pop %v2009
  %v2015 = verf.f32.pop %v2010
  %v2016 = vadd.f32 %v2011, 1.0
  %v2017 = vadd.f32 %v2012, 1.0
  %v2018 = vadd.f32 %v2013, 1.0
  %v2019 = vadd.f32 %v2014, 1.0
  %v2020 = vadd.f32 %v2015, 1.0
  %v2021 = vmul.f32 %v2001, %v2016
  %v2022 = vmul.f32 %v2002, %v2017
  %v2023 = vmul.f32 %v2003, %v2018
  %v2024 = vmul.f32 %v2004, %v2019
  %v2025 = vmul.f32 %v2005, %v2020
  %v2026 = vld [vmem:[%s9] sm:$0xff]
  %v2027 = vld [vmem:[%s9 + $0x8] sm:$0xff]
  %v2028 = vld [vmem:[%s9 + $0x10] sm:$0xff]
  %v2029 = vld [vmem:[%s9 + $0x18] sm:$0xff]
  %v2030 = vld [vmem:[%s9 + $0x20] sm:$0xff]
  %v2031 = vld [vmem:[%s9 + $0x28] sm:$0xff]
  %v2032 = vld [vmem:[%s9 + $0x30] sm:$0xff]
  %v2033 = vld [vmem:[%s9 + $0x38] sm:$0xff]
  %v2034 = vlaneseq
  %v2035 = vshrl.u32 %v2034, 7
  %v2036 = vsub.s32 5, %v2035
  %v2037 = vrot.slane %v243, %v2036
  %vm2038 = vcmask 523264
  %v2040 = vsel %vm2038, %v2021, 0
  %v2043 = vsel %vm2038, %v2022, 0
  %v2046 = vsel %vm2038, %v2023, 0
  %v2049 = vsel %vm2038, %v2024, 0
  %v2052 = vsel %vm2038, %v2025, 0
  %2054 = vmatprep.subr.mxu0 0.0
  %2055 = vmatpush1.msra.mxu0 %v2026
  %2056 = vmatprep.subr.mxu0 0.0
  %2057 = vmatpush1.msra.mxu0 %v2027
  %2058 = vmatprep.subr.mxu0 0.0
  %2059 = vmatpush1.msra.mxu0 %v2028
  %2060 = vmatprep.subr.mxu0 0.0
  %2061 = vmatpush1.msra.mxu0 %v2029
  %2062 = vmatprep.subr.mxu0 0.0
  %2063 = vmatpush1.msra.mxu0 %v2030
  %2064 = vmatprep.subr.mxu0 0.0
  %2065 = vmatpush1.msra.mxu0 %v2031
  %2066 = vmatprep.subr.mxu0 0.0
  %2067 = vmatpush1.msra.mxu0 %v2032
  %2068 = vmatprep.subr.mxu0 0.0
  %2069 = vmatpush1.msra.mxu0 %v2033
  %2070 = vmatprep.subr.mxu0 0.0
  %2071 = vmatpush1.msra.mxu0 0.0
  %2072 = vmatprep.subr.mxu0 0.0
  %2073 = vmatpush1.msra.mxu0 0.0
  %2074 = vmatprep.subr.mxu0 0.0
  %2075 = vmatpush1.msra.mxu0 0.0
  %2076 = vmatprep.subr.mxu0 0.0
  %2077 = vmatpush1.msra.mxu0 0.0
  %2078 = vmatprep.subr.mxu0 0.0
  %2079 = vmatpush1.msra.mxu0 0.0
  %2080 = vmatprep.subr.mxu0 0.0
  %2081 = vmatpush1.msra.mxu0 0.0
  %2082 = vmatprep.subr.mxu0 0.0
  %2083 = vmatpush1.msra.mxu0 0.0
  %2084 = vmatprep.subr.mxu0 0.0
  %2085 = vmatpush1.msra.mxu0 0.0
  %2086 = vmatprep.subr.mxu0 0.0
  %2087 = vmatpush1.msra.mxu0 0.0
  %2088 = vmatprep.subr.mxu0 0.0
  %2089 = vmatpush1.msra.mxu0 0.0
  %2090 = vmatprep.subr.mxu0 0.0
  %2091 = vmatpush1.msra.mxu0 0.0
  %2092 = vmatprep.subr.mxu0 0.0
  %2093 = vmatpush1.msra.mxu0 0.0
  %2094 = vmatprep.subr.mxu0 0.0
  %2095 = vmatpush1.msra.mxu0 0.0
  %2096 = vmatprep.subr.mxu0 0.0
  %2097 = vmatpush1.msra.mxu0 0.0
  %2098 = vmatprep.subr.mxu0 0.0
  %2099 = vmatpush1.msra.mxu0 0.0
  %2100 = vmatprep.subr.mxu0 0.0
  %2101 = vmatpush1.msra.mxu0 0.0
  %2102 = vmatprep.subr.mxu0 0.0
  %2103 = vmatpush1.msra.mxu0 0.0
  %2104 = vmatprep.subr.mxu0 0.0
  %2105 = vmatpush1.msra.mxu0 0.0
  %2106 = vmatprep.subr.mxu0 0.0
  %2107 = vmatpush1.msra.mxu0 0.0
  %2108 = vmatprep.subr.mxu0 0.0
  %2109 = vmatpush1.msra.mxu0 0.0
  %2110 = vmatprep.subr.mxu0 0.0
  %2111 = vmatpush1.msra.mxu0 0.0
  %2112 = vmatprep.subr.mxu0 0.0
  %2113 = vmatpush1.msra.mxu0 0.0
  %2114 = vmatprep.subr.mxu0 0.0
  %2115 = vmatpush1.msra.mxu0 0.0
  %2116 = vmatprep.subr.mxu0 0.0
  %2117 = vmatpush1.msra.mxu0 0.0
  %2118 = vmatprep.mubr.f32.mxu0 0.0
  %2119 = vmatmul.mubr.f32.gmra.mrb[0].mxu0 %v2040
  %v2120 = vpop.f32.mrb[0].mxu0
  %v2121 = vadd.f32 %v2037, %v2120
  %v2122 = vpop.f32.mrb[0].mxu0
  %2123 = vmatprep.mubr.f32.mxu0 0.0
  %2124 = vmatmul.mubr.f32.gmra.mrb[0].mxu0 %v2043
  %v2125 = vpop.f32.mrb[0].mxu0
  %v2126 = vadd.f32 %v2037, %v2125
  %v2127 = vpop.f32.mrb[0].mxu0
  %2128 = vmatprep.mubr.f32.mxu0 0.0
  %2129 = vmatmul.mubr.f32.gmra.mrb[0].mxu0 %v2046
  %v2130 = vpop.f32.mrb[0].mxu0
  %v2131 = vadd.f32 %v2037, %v2130
  %v2132 = vpop.f32.mrb[0].mxu0
  %2133 = vmatprep.mubr.f32.mxu0 0.0
  %2134 = vmatmul.mubr.f32.gmra.mrb[0].mxu0 %v2049
  %v2135 = vpop.f32.mrb[0].mxu0
  %v2136 = vadd.f32 %v2037, %v2135
  %v2137 = vpop.f32.mrb[0].mxu0
  %2138 = vmatprep.mubr.f32.mxu0 0.0
  %2139 = vmatmul.mubr.f32.gmra.mrb[0].mxu0 %v2052
  %v2140 = vpop.f32.mrb[0].mxu0
  %v2141 = vadd.f32 %v2037, %v2140
  %v2142 = vpop.f32.mrb[0].mxu0
  %2143 = vdwg.mxu0
  %v2144 = vadd.f32 %v2121, %v1797
  %v2145 = vadd.f32 %v2126, %v1798
  %v2146 = vadd.f32 %v2131, %v1799
  %v2147 = vadd.f32 %v2136, %v1800
  %v2148 = vadd.f32 %v2141, %v1801
  %s2149 = scalar_lea.vmem %s10, 8
  %v2150 = vld [vmem:[%s2149] sm:$0x3f]
  %v2151 = vsel %vm244, %v2144, 0.0
  %2152 = vadd.xlane.f32.xlu0 %v2151
  %v2153 = vpop.xlane.xlu0 %2152
  %v2154 = vsel %vm244, %v2145, 0.0
  %2155 = vadd.xlane.f32.xlu0 %v2154
  %v2156 = vpop.xlane.xlu0 %2155
  %v2157 = vsel %vm244, %v2146, 0.0
  %2158 = vadd.xlane.f32.xlu0 %v2157
  %v2159 = vpop.xlane.xlu0 %2158
  %v2160 = vsel %vm244, %v2147, 0.0
  %2161 = vadd.xlane.f32.xlu0 %v2160
  %v2162 = vpop.xlane.xlu0 %2161
  %v2163 = vsel %vm257, %v2148, 0.0
  %2164 = vadd.xlane.f32.xlu0 %v2163
  %v2165 = vpop.xlane.xlu0 %2164
  %v2166 = vmul.f32 %v2153, %v261
  %v2167 = vmul.f32 %v2156, %v261
  %v2168 = vmul.f32 %v2159, %v261
  %v2169 = vmul.f32 %v2162, %v261
  %v2170 = vmul.f32 %v2165, %v261
  %v2171 = vsub.f32 %v2144, %v2166
  %v2172 = vsub.f32 %v2145, %v2167
  %v2173 = vsub.f32 %v2146, %v2168
  %v2174 = vsub.f32 %v2147, %v2169
  %v2175 = vsub.f32 %v2148, %v2170
  %v2176 = vmul.f32 %v2171, %v2171
  %v2177 = vmul.f32 %v2172, %v2172
  %v2178 = vmul.f32 %v2173, %v2173
  %v2179 = vmul.f32 %v2174, %v2174
  %v2180 = vmul.f32 %v2175, %v2175
  %v2181 = vsel %vm244, %v2176, 0.0
  %2182 = vadd.xlane.f32.xlu0 %v2181
  %v2183 = vpop.xlane.xlu0 %2182
  %v2184 = vsel %vm244, %v2177, 0.0
  %2185 = vadd.xlane.f32.xlu0 %v2184
  %v2186 = vpop.xlane.xlu0 %2185
  %v2187 = vsel %vm244, %v2178, 0.0
  %2188 = vadd.xlane.f32.xlu0 %v2187
  %v2189 = vpop.xlane.xlu0 %2188
  %v2190 = vsel %vm244, %v2179, 0.0
  %2191 = vadd.xlane.f32.xlu0 %v2190
  %v2192 = vpop.xlane.xlu0 %2191
  %v2193 = vsel %vm257, %v2180, 0.0
  %2194 = vadd.xlane.f32.xlu0 %v2193
  %v2195 = vpop.xlane.xlu0 %2194
  %v2196 = vmul.f32 %v2183, %v261
  %v2197 = vmul.f32 %v2186, %v261
  %v2198 = vmul.f32 %v2189, %v261
  %v2199 = vmul.f32 %v2192, %v261
  %v2200 = vmul.f32 %v2195, %v261
  %v2201 = vadd.f32 %v2196, 1e-06
  %v2202 = vadd.f32 %v2197, 1e-06
  %v2203 = vadd.f32 %v2198, 1e-06
  %v2204 = vadd.f32 %v2199, 1e-06
  %v2205 = vadd.f32 %v2200, 1e-06
  %v2206 = vrsqrt.pop %v2201
  %v2207 = vrsqrt.pop %v2202
  %v2208 = vrsqrt.pop %v2203
  %v2209 = vrsqrt.pop %v2204
  %v2210 = vrsqrt.pop %v2205
  %v2211 = vmul.f32 %v2171, %v2206
  %v2212 = vmul.f32 %v2172, %v2207
  %v2213 = vmul.f32 %v2173, %v2208
  %v2214 = vmul.f32 %v2174, %v2209
  %v2215 = vmul.f32 %v2175, %v2210
  %v2216 = vlaneseq
  %v2217 = vshrl.u32 %v2216, 7
  %v2218 = vsub.s32 0, %v2217
  %v2219 = vrot.slane %v2150, %v2218
  %v2220 = vmul.f32 %v2211, %v2219
  %v2221 = vmul.f32 %v2212, %v2219
  %v2222 = vmul.f32 %v2213, %v2219
  %v2223 = vmul.f32 %v2214, %v2219
  %v2224 = vmul.f32 %v2215, %v2219
  %v2225 = vlaneseq
  %v2226 = vshrl.u32 %v2225, 7
  %v2227 = vsub.s32 1, %v2226
  %v2228 = vrot.slane %v2150, %v2227
  %v2229 = vadd.f32 %v2220, %v2228
  %v2230 = vadd.f32 %v2221, %v2228
  %v2231 = vadd.f32 %v2222, %v2228
  %v2232 = vadd.f32 %v2223, %v2228
  %v2233 = vadd.f32 %v2224, %v2228
  %s2234 = scalar_lea.vmem %s4, 32
  %v2235 = vld [vmem:[%s2234] sm:$0xff]
  %v2236 = vld [vmem:[%s2234 + $0x8] sm:$0xff]
  %v2237 = vld [vmem:[%s2234 + $0x10] sm:$0xff]
  %v2238 = vld [vmem:[%s2234 + $0x18] sm:$0xff]
  %s2239 = scalar_lea.vmem %s5, 1
  %v2240 = vld [vmem:[%s2239] sm:$0x1]
  %v2242 = vlaneseq
  %v2243 = vshrl.u32 %v2242, 7
  %v2244 = vsub.s32 0, %v2243
  %v2245 = vrot.slane %v2240, %v2244
  %v2248 = vsel %vm244, %v2229, 0
  %v2251 = vsel %vm244, %v2230, 0
  %v2254 = vsel %vm244, %v2231, 0
  %v2257 = vsel %vm244, %v2232, 0
  %v2260 = vsel %vm244, %v2233, 0
  %2262 = vmatprep.subr.mxu0 0.0
  %2263 = vmatpush1.msra.mxu0 %v2235
  %2264 = vmatprep.subr.mxu0 0.0
  %2265 = vmatpush1.msra.mxu0 %v2236
  %2266 = vmatprep.subr.mxu0 0.0
  %2267 = vmatpush1.msra.mxu0 %v2237
  %2268 = vmatprep.subr.mxu0 0.0
  %2269 = vmatpush1.msra.mxu0 %v2238
  %2270 = vmatprep.subr.mxu0 0.0
  %2271 = vmatpush1.msra.mxu0 0.0
  %2272 = vmatprep.subr.mxu0 0.0
  %2273 = vmatpush1.msra.mxu0 0.0
  %2274 = vmatprep.subr.mxu0 0.0
  %2275 = vmatpush1.msra.mxu0 0.0
  %2276 = vmatprep.subr.mxu0 0.0
  %2277 = vmatpush1.msra.mxu0 0.0
  %2278 = vmatprep.subr.mxu0 0.0
  %2279 = vmatpush1.msra.mxu0 0.0
  %2280 = vmatprep.subr.mxu0 0.0
  %2281 = vmatpush1.msra.mxu0 0.0
  %2282 = vmatprep.subr.mxu0 0.0
  %2283 = vmatpush1.msra.mxu0 0.0
  %2284 = vmatprep.subr.mxu0 0.0
  %2285 = vmatpush1.msra.mxu0 0.0
  %2286 = vmatprep.subr.mxu0 0.0
  %2287 = vmatpush1.msra.mxu0 0.0
  %2288 = vmatprep.subr.mxu0 0.0
  %2289 = vmatpush1.msra.mxu0 0.0
  %2290 = vmatprep.subr.mxu0 0.0
  %2291 = vmatpush1.msra.mxu0 0.0
  %2292 = vmatprep.subr.mxu0 0.0
  %2293 = vmatpush1.msra.mxu0 0.0
  %2294 = vmatprep.subr.mxu0 0.0
  %2295 = vmatpush1.msra.mxu0 0.0
  %2296 = vmatprep.subr.mxu0 0.0
  %2297 = vmatpush1.msra.mxu0 0.0
  %2298 = vmatprep.subr.mxu0 0.0
  %2299 = vmatpush1.msra.mxu0 0.0
  %2300 = vmatprep.subr.mxu0 0.0
  %2301 = vmatpush1.msra.mxu0 0.0
  %2302 = vmatprep.subr.mxu0 0.0
  %2303 = vmatpush1.msra.mxu0 0.0
  %2304 = vmatprep.subr.mxu0 0.0
  %2305 = vmatpush1.msra.mxu0 0.0
  %2306 = vmatprep.subr.mxu0 0.0
  %2307 = vmatpush1.msra.mxu0 0.0
  %2308 = vmatprep.subr.mxu0 0.0
  %2309 = vmatpush1.msra.mxu0 0.0
  %2310 = vmatprep.subr.mxu0 0.0
  %2311 = vmatpush1.msra.mxu0 0.0
  %2312 = vmatprep.subr.mxu0 0.0
  %2313 = vmatpush1.msra.mxu0 0.0
  %2314 = vmatprep.subr.mxu0 0.0
  %2315 = vmatpush1.msra.mxu0 0.0
  %2316 = vmatprep.subr.mxu0 0.0
  %2317 = vmatpush1.msra.mxu0 0.0
  %2318 = vmatprep.subr.mxu0 0.0
  %2319 = vmatpush1.msra.mxu0 0.0
  %2320 = vmatprep.subr.mxu0 0.0
  %2321 = vmatpush1.msra.mxu0 0.0
  %2322 = vmatprep.subr.mxu0 0.0
  %2323 = vmatpush1.msra.mxu0 0.0
  %2324 = vmatprep.subr.mxu0 0.0
  %2325 = vmatpush1.msra.mxu0 0.0
  %2326 = vmatprep.mubr.f32.mxu0 0.0
  %2327 = vmatmul.mubr.f32.gmra.mrb[0].mxu0 %v2248
  %v2328 = vpop.f32.mrb[0].mxu0
  %v2329 = vadd.f32 %v2245, %v2328
  %v2330 = vpop.f32.mrb[0].mxu0
  %2331 = vmatprep.mubr.f32.mxu0 0.0
  %2332 = vmatmul.mubr.f32.gmra.mrb[0].mxu0 %v2251
  %v2333 = vpop.f32.mrb[0].mxu0
  %v2334 = vadd.f32 %v2245, %v2333
  %v2335 = vpop.f32.mrb[0].mxu0
  %2336 = vmatprep.mubr.f32.mxu0 0.0
  %2337 = vmatmul.mubr.f32.gmra.mrb[0].mxu0 %v2254
  %v2338 = vpop.f32.mrb[0].mxu0
  %v2339 = vadd.f32 %v2245, %v2338
  %v2340 = vpop.f32.mrb[0].mxu0
  %2341 = vmatprep.mubr.f32.mxu0 0.0
  %2342 = vmatmul.mubr.f32.gmra.mrb[0].mxu0 %v2257
  %v2343 = vpop.f32.mrb[0].mxu0
  %v2344 = vadd.f32 %v2245, %v2343
  %v2345 = vpop.f32.mrb[0].mxu0
  %2346 = vmatprep.mubr.f32.mxu0 0.0
  %2347 = vmatmul.mubr.f32.gmra.mrb[0].mxu0 %v2260
  %v2348 = vpop.f32.mrb[0].mxu0
  %v2349 = vadd.f32 %v2245, %v2348
  %v2350 = vpop.f32.mrb[0].mxu0
  %2351 = vdwg.mxu0
  %v2352 = vmul.f32 %v2329, %v227
  %v2353 = vmul.f32 %v2334, %v227
  %v2354 = vmul.f32 %v2339, %v227
  %v2355 = vmul.f32 %v2344, %v227
  %v2356 = vmul.f32 %v2349, %v227
  %2362 = vrot.lane.b32.xlu0 %v2329, 96
  %v2363 = vpop.permute.xlu0 %2362
  %2364 = vrot.lane.b32.xlu0 %v2334, 96
  %v2365 = vpop.permute.xlu0 %2364
  %2366 = vrot.lane.b32.xlu0 %v2339, 96
  %v2367 = vpop.permute.xlu0 %2366
  %2368 = vrot.lane.b32.xlu0 %v2344, 96
  %v2369 = vpop.permute.xlu0 %2368
  %2370 = vrot.lane.b32.xlu0 %v2349, 96
  %v2371 = vpop.permute.xlu0 %2370
  %v2373 = vsel %vm244, %v2352, 0
  %v2376 = vsel %vm244, %v2353, 0
  %v2379 = vsel %vm244, %v2354, 0
  %v2382 = vsel %vm244, %v2355, 0
  %v2385 = vsel %vm244, %v2356, 0
  %v2387 = vsel %vm244, %v2363, 0
  %v2389 = vsel %vm244, %v2365, 0
  %v2391 = vsel %vm244, %v2367, 0
  %v2393 = vsel %vm244, %v2369, 0
  %v2395 = vsel %vm244, %v2371, 0
  %2397 = vmatprep.subr.mxu0 0.0
  %2398 = vmatpush1.xpose.msra.mxu0 %v2387
  %2399 = vmatprep.subr.mxu0 0.0
  %2400 = vmatpush1.xpose.msra.mxu0 %v2389
  %2401 = vmatprep.subr.mxu0 0.0
  %2402 = vmatpush1.xpose.msra.mxu0 %v2391
  %2403 = vmatprep.subr.mxu0 0.0
  %2404 = vmatpush1.xpose.msra.mxu0 %v2393
  %2405 = vmatprep.subr.mxu0 0.0
  %2406 = vmatpush1.xpose.msra.mxu0 %v2395
  %2407 = vmatprep.subr.mxu0 0.0
  %2408 = vmatpush1.xpose.msra.mxu0 0.0
  %2409 = vmatprep.subr.mxu0 0.0
  %2410 = vmatpush1.xpose.msra.mxu0 0.0
  %2411 = vmatprep.subr.mxu0 0.0
  %2412 = vmatpush1.xpose.msra.mxu0 0.0
  %2413 = vmatprep.subr.mxu0 0.0
  %2414 = vmatpush1.xpose.msra.mxu0 0.0
  %2415 = vmatprep.subr.mxu0 0.0
  %2416 = vmatpush1.xpose.msra.mxu0 0.0
  %2417 = vmatprep.subr.mxu0 0.0
  %2418 = vmatpush1.xpose.msra.mxu0 0.0
  %2419 = vmatprep.subr.mxu0 0.0
  %2420 = vmatpush1.xpose.msra.mxu0 0.0
  %2421 = vmatprep.subr.mxu0 0.0
  %2422 = vmatpush1.xpose.msra.mxu0 0.0
  %2423 = vmatprep.subr.mxu0 0.0
  %2424 = vmatpush1.xpose.msra.mxu0 0.0
  %2425 = vmatprep.subr.mxu0 0.0
  %2426 = vmatpush1.xpose.msra.mxu0 0.0
  %2427 = vmatprep.subr.mxu0 0.0
  %2428 = vmatpush1.xpose.msra.mxu0 0.0
  %2429 = vmatprep.subr.mxu0 0.0
  %2430 = vmatpush1.xpose.msra.mxu0 0.0
  %2431 = vmatprep.subr.mxu0 0.0
  %2432 = vmatpush1.xpose.msra.mxu0 0.0
  %2433 = vmatprep.subr.mxu0 0.0
  %2434 = vmatpush1.xpose.msra.mxu0 0.0
  %2435 = vmatprep.subr.mxu0 0.0
  %2436 = vmatpush1.xpose.msra.mxu0 0.0
  %2437 = vmatprep.subr.mxu0 0.0
  %2438 = vmatpush1.xpose.msra.mxu0 0.0
  %2439 = vmatprep.subr.mxu0 0.0
  %2440 = vmatpush1.xpose.msra.mxu0 0.0
  %2441 = vmatprep.subr.mxu0 0.0
  %2442 = vmatpush1.xpose.msra.mxu0 0.0
  %2443 = vmatprep.subr.mxu0 0.0
  %2444 = vmatpush1.xpose.msra.mxu0 0.0
  %2445 = vmatprep.subr.mxu0 0.0
  %2446 = vmatpush1.xpose.msra.mxu0 0.0
  %2447 = vmatprep.subr.mxu0 0.0
  %2448 = vmatpush1.xpose.msra.mxu0 0.0
  %2449 = vmatprep.subr.mxu0 0.0
  %2450 = vmatpush1.xpose.msra.mxu0 0.0
  %2451 = vmatprep.subr.mxu0 0.0
  %2452 = vmatpush1.xpose.msra.mxu0 0.0
  %2453 = vmatprep.subr.mxu0 0.0
  %2454 = vmatpush1.xpose.msra.mxu0 0.0
  %2455 = vmatprep.subr.mxu0 0.0
  %2456 = vmatpush1.xpose.msra.mxu0 0.0
  %2457 = vmatprep.subr.mxu0 0.0
  %2458 = vmatpush1.xpose.msra.mxu0 0.0
  %2459 = vmatprep.subr.mxu0 0.0
  %2460 = vmatpush1.xpose.msra.mxu0 0.0
  %2461 = vmatprep.mubr.f32.mxu0 0.0
  %2462 = vmatmul.mubr.f32.gmra.mrb[0].mxu0 %v2373
  %v2463 = vpop.f32.mrb[0].mxu0
  %v2464 = vadd.f32 %v219, %v2463
  %v2465 = vpop.f32.mrb[0].mxu0
  %2466 = vmatprep.mubr.f32.mxu0 0.0
  %2467 = vmatmul.mubr.f32.gmra.mrb[0].mxu0 %v2376
  %v2468 = vpop.f32.mrb[0].mxu0
  %v2469 = vadd.f32 %v220, %v2468
  %v2470 = vpop.f32.mrb[0].mxu0
  %2471 = vmatprep.mubr.f32.mxu0 0.0
  %2472 = vmatmul.mubr.f32.gmra.mrb[0].mxu0 %v2379
  %v2473 = vpop.f32.mrb[0].mxu0
  %v2474 = vadd.f32 %v221, %v2473
  %v2475 = vpop.f32.mrb[0].mxu0
  %2476 = vmatprep.mubr.f32.mxu0 0.0
  %2477 = vmatmul.mubr.f32.gmra.mrb[0].mxu0 %v2382
  %v2478 = vpop.f32.mrb[0].mxu0
  %v2479 = vadd.f32 %v222, %v2478
  %v2480 = vpop.f32.mrb[0].mxu0
  %2481 = vmatprep.mubr.f32.mxu0 0.0
  %2482 = vmatmul.mubr.f32.gmra.mrb[0].mxu0 %v2385
  %v2483 = vpop.f32.mrb[0].mxu0
  %v2484 = vadd.f32 %v223, %v2483
  %v2485 = vpop.f32.mrb[0].mxu0
  %2486 = vdwg.mxu0
  %v2487 = vsel %vm581, %v2464, -inf
  %2488 = vmax.xlane.f32.xlu0 %v2487
  %v2489 = vpop.xlane.xlu0 %2488
  %v2490 = vsel %vm581, %v2469, -inf
  %2491 = vmax.xlane.f32.xlu0 %v2490
  %v2492 = vpop.xlane.xlu0 %2491
  %v2493 = vsel %vm581, %v2474, -inf
  %2494 = vmax.xlane.f32.xlu0 %v2493
  %v2495 = vpop.xlane.xlu0 %2494
  %v2496 = vsel %vm581, %v2479, -inf
  %2497 = vmax.xlane.f32.xlu0 %v2496
  %v2498 = vpop.xlane.xlu0 %2497
  %v2499 = vsel %vm594, %v2484, -inf
  %2500 = vmax.xlane.f32.xlu0 %v2499
  %v2501 = vpop.xlane.xlu0 %2500
  %v2502 = vsub.f32 %v2464, %v2489
  %v2503 = vsub.f32 %v2469, %v2492
  %v2504 = vsub.f32 %v2474, %v2495
  %v2505 = vsub.f32 %v2479, %v2498
  %v2506 = vsub.f32 %v2484, %v2501
  %v2507 = vmul.f32 %v2502, 1.442695
  %v2508 = vpow.pop %v2507
  %v2509 = vmul.f32 %v2503, 1.442695
  %v2510 = vpow.pop %v2509
  %v2511 = vmul.f32 %v2504, 1.442695
  %v2512 = vpow.pop %v2511
  %v2513 = vmul.f32 %v2505, 1.442695
  %v2514 = vpow.pop %v2513
  %v2515 = vmul.f32 %v2506, 1.442695
  %v2516 = vpow.pop %v2515
  %v2517 = vsel %vm581, %v2508, 0.0
  %2518 = vadd.xlane.f32.xlu0 %v2517
  %v2519 = vpop.xlane.xlu0 %2518
  %v2520 = vsel %vm581, %v2510, 0.0
  %2521 = vadd.xlane.f32.xlu0 %v2520
  %v2522 = vpop.xlane.xlu0 %2521
  %v2523 = vsel %vm581, %v2512, 0.0
  %2524 = vadd.xlane.f32.xlu0 %v2523
  %v2525 = vpop.xlane.xlu0 %2524
  %v2526 = vsel %vm581, %v2514, 0.0
  %2527 = vadd.xlane.f32.xlu0 %v2526
  %v2528 = vpop.xlane.xlu0 %2527
  %v2529 = vsel %vm594, %v2516, 0.0
  %2530 = vadd.xlane.f32.xlu0 %v2529
  %v2531 = vpop.xlane.xlu0 %2530
  %v2532 = vrcp.pop %v2519
  %v2533 = vmul.f32 %v2508, %v2532
  %v2534 = vrcp.pop %v2522
  %v2535 = vmul.f32 %v2510, %v2534
  %v2536 = vrcp.pop %v2525
  %v2537 = vmul.f32 %v2512, %v2536
  %v2538 = vrcp.pop %v2528
  %v2539 = vmul.f32 %v2514, %v2538
  %v2540 = vrcp.pop %v2531
  %v2541 = vmul.f32 %v2516, %v2540
  %v2542 = vmul.f32 %v2329, %v640
  %v2543 = vmul.f32 %v2334, %v640
  %v2544 = vmul.f32 %v2339, %v640
  %v2545 = vmul.f32 %v2344, %v640
  %v2546 = vmul.f32 %v2349, %v640
  %v2547 = vmul.f32 %v2329, %v232
  %v2548 = vmul.f32 %v2334, %v232
  %v2549 = vmul.f32 %v2339, %v232
  %v2550 = vmul.f32 %v2344, %v232
  %v2551 = vmul.f32 %v2349, %v232
  %v2553 = vsel %vm244, %v2547, 0
  %v2556 = vsel %vm244, %v2548, 0
  %v2559 = vsel %vm244, %v2549, 0
  %v2562 = vsel %vm244, %v2550, 0
  %v2565 = vsel %vm244, %v2551, 0
  %2567 = vmatprep.subr.mxu0 0.0
  %2568 = vmatpush1.xpose.msra.mxu0 %v2387
  %2569 = vmatprep.subr.mxu0 0.0
  %2570 = vmatpush1.xpose.msra.mxu0 %v2389
  %2571 = vmatprep.subr.mxu0 0.0
  %2572 = vmatpush1.xpose.msra.mxu0 %v2391
  %2573 = vmatprep.subr.mxu0 0.0
  %2574 = vmatpush1.xpose.msra.mxu0 %v2393
  %2575 = vmatprep.subr.mxu0 0.0
  %2576 = vmatpush1.xpose.msra.mxu0 %v2395
  %2577 = vmatprep.subr.mxu0 0.0
  %2578 = vmatpush1.xpose.msra.mxu0 0.0
  %2579 = vmatprep.subr.mxu0 0.0
  %2580 = vmatpush1.xpose.msra.mxu0 0.0
  %2581 = vmatprep.subr.mxu0 0.0
  %2582 = vmatpush1.xpose.msra.mxu0 0.0
  %2583 = vmatprep.subr.mxu0 0.0
  %2584 = vmatpush1.xpose.msra.mxu0 0.0
  %2585 = vmatprep.subr.mxu0 0.0
  %2586 = vmatpush1.xpose.msra.mxu0 0.0
  %2587 = vmatprep.subr.mxu0 0.0
  %2588 = vmatpush1.xpose.msra.mxu0 0.0
  %2589 = vmatprep.subr.mxu0 0.0
  %2590 = vmatpush1.xpose.msra.mxu0 0.0
  %2591 = vmatprep.subr.mxu0 0.0
  %2592 = vmatpush1.xpose.msra.mxu0 0.0
  %2593 = vmatprep.subr.mxu0 0.0
  %2594 = vmatpush1.xpose.msra.mxu0 0.0
  %2595 = vmatprep.subr.mxu0 0.0
  %2596 = vmatpush1.xpose.msra.mxu0 0.0
  %2597 = vmatprep.subr.mxu0 0.0
  %2598 = vmatpush1.xpose.msra.mxu0 0.0
  %2599 = vmatprep.subr.mxu0 0.0
  %2600 = vmatpush1.xpose.msra.mxu0 0.0
  %2601 = vmatprep.subr.mxu0 0.0
  %2602 = vmatpush1.xpose.msra.mxu0 0.0
  %2603 = vmatprep.subr.mxu0 0.0
  %2604 = vmatpush1.xpose.msra.mxu0 0.0
  %2605 = vmatprep.subr.mxu0 0.0
  %2606 = vmatpush1.xpose.msra.mxu0 0.0
  %2607 = vmatprep.subr.mxu0 0.0
  %2608 = vmatpush1.xpose.msra.mxu0 0.0
  %2609 = vmatprep.subr.mxu0 0.0
  %2610 = vmatpush1.xpose.msra.mxu0 0.0
  %2611 = vmatprep.subr.mxu0 0.0
  %2612 = vmatpush1.xpose.msra.mxu0 0.0
  %2613 = vmatprep.subr.mxu0 0.0
  %2614 = vmatpush1.xpose.msra.mxu0 0.0
  %2615 = vmatprep.subr.mxu0 0.0
  %2616 = vmatpush1.xpose.msra.mxu0 0.0
  %2617 = vmatprep.subr.mxu0 0.0
  %2618 = vmatpush1.xpose.msra.mxu0 0.0
  %2619 = vmatprep.subr.mxu0 0.0
  %2620 = vmatpush1.xpose.msra.mxu0 0.0
  %2621 = vmatprep.subr.mxu0 0.0
  %2622 = vmatpush1.xpose.msra.mxu0 0.0
  %2623 = vmatprep.subr.mxu0 0.0
  %2624 = vmatpush1.xpose.msra.mxu0 0.0
  %2625 = vmatprep.subr.mxu0 0.0
  %2626 = vmatpush1.xpose.msra.mxu0 0.0
  %2627 = vmatprep.subr.mxu0 0.0
  %2628 = vmatpush1.xpose.msra.mxu0 0.0
  %2629 = vmatprep.subr.mxu0 0.0
  %2630 = vmatpush1.xpose.msra.mxu0 0.0
  %2631 = vmatprep.mubr.f32.mxu0 0.0
  %2632 = vmatmul.mubr.f32.gmra.mrb[0].mxu0 %v2553
  %v2633 = vpop.f32.mrb[0].mxu0
  %v2634 = vadd.f32 %v219, %v2633
  %v2635 = vpop.f32.mrb[0].mxu0
  %2636 = vmatprep.mubr.f32.mxu0 0.0
  %2637 = vmatmul.mubr.f32.gmra.mrb[0].mxu0 %v2556
  %v2638 = vpop.f32.mrb[0].mxu0
  %v2639 = vadd.f32 %v220, %v2638
  %v2640 = vpop.f32.mrb[0].mxu0
  %2641 = vmatprep.mubr.f32.mxu0 0.0
  %2642 = vmatmul.mubr.f32.gmra.mrb[0].mxu0 %v2559
  %v2643 = vpop.f32.mrb[0].mxu0
  %v2644 = vadd.f32 %v221, %v2643
  %v2645 = vpop.f32.mrb[0].mxu0
  %2646 = vmatprep.mubr.f32.mxu0 0.0
  %2647 = vmatmul.mubr.f32.gmra.mrb[0].mxu0 %v2562
  %v2648 = vpop.f32.mrb[0].mxu0
  %v2649 = vadd.f32 %v222, %v2648
  %v2650 = vpop.f32.mrb[0].mxu0
  %2651 = vmatprep.mubr.f32.mxu0 0.0
  %2652 = vmatmul.mubr.f32.gmra.mrb[0].mxu0 %v2565
  %v2653 = vpop.f32.mrb[0].mxu0
  %v2654 = vadd.f32 %v223, %v2653
  %v2655 = vpop.f32.mrb[0].mxu0
  %2656 = vdwg.mxu0
  %v2657 = vsel %vm581, %v2634, -inf
  %2658 = vmax.xlane.f32.xlu0 %v2657
  %v2659 = vpop.xlane.xlu0 %2658
  %v2660 = vsel %vm581, %v2639, -inf
  %2661 = vmax.xlane.f32.xlu0 %v2660
  %v2662 = vpop.xlane.xlu0 %2661
  %v2663 = vsel %vm581, %v2644, -inf
  %2664 = vmax.xlane.f32.xlu0 %v2663
  %v2665 = vpop.xlane.xlu0 %2664
  %v2666 = vsel %vm581, %v2649, -inf
  %2667 = vmax.xlane.f32.xlu0 %v2666
  %v2668 = vpop.xlane.xlu0 %2667
  %v2669 = vsel %vm594, %v2654, -inf
  %2670 = vmax.xlane.f32.xlu0 %v2669
  %v2671 = vpop.xlane.xlu0 %2670
  %v2672 = vsub.f32 %v2634, %v2659
  %v2673 = vsub.f32 %v2639, %v2662
  %v2674 = vsub.f32 %v2644, %v2665
  %v2675 = vsub.f32 %v2649, %v2668
  %v2676 = vsub.f32 %v2654, %v2671
  %v2677 = vmul.f32 %v2672, 1.442695
  %v2678 = vpow.pop %v2677
  %v2679 = vmul.f32 %v2673, 1.442695
  %v2680 = vpow.pop %v2679
  %v2681 = vmul.f32 %v2674, 1.442695
  %v2682 = vpow.pop %v2681
  %v2683 = vmul.f32 %v2675, 1.442695
  %v2684 = vpow.pop %v2683
  %v2685 = vmul.f32 %v2676, 1.442695
  %v2686 = vpow.pop %v2685
  %v2687 = vsel %vm581, %v2678, 0.0
  %2688 = vadd.xlane.f32.xlu0 %v2687
  %v2689 = vpop.xlane.xlu0 %2688
  %v2690 = vsel %vm581, %v2680, 0.0
  %2691 = vadd.xlane.f32.xlu0 %v2690
  %v2692 = vpop.xlane.xlu0 %2691
  %v2693 = vsel %vm581, %v2682, 0.0
  %2694 = vadd.xlane.f32.xlu0 %v2693
  %v2695 = vpop.xlane.xlu0 %2694
  %v2696 = vsel %vm581, %v2684, 0.0
  %2697 = vadd.xlane.f32.xlu0 %v2696
  %v2698 = vpop.xlane.xlu0 %2697
  %v2699 = vsel %vm594, %v2686, 0.0
  %2700 = vadd.xlane.f32.xlu0 %v2699
  %v2701 = vpop.xlane.xlu0 %2700
  %v2702 = vrcp.pop %v2689
  %v2703 = vmul.f32 %v2678, %v2702
  %v2704 = vrcp.pop %v2692
  %v2705 = vmul.f32 %v2680, %v2704
  %v2706 = vrcp.pop %v2695
  %v2707 = vmul.f32 %v2682, %v2706
  %v2708 = vrcp.pop %v2698
  %v2709 = vmul.f32 %v2684, %v2708
  %v2710 = vrcp.pop %v2701
  %v2711 = vmul.f32 %v2686, %v2710
  %v2712 = vmul.f32 %v2329, %v814
  %v2713 = vmul.f32 %v2334, %v814
  %v2714 = vmul.f32 %v2339, %v814
  %v2715 = vmul.f32 %v2344, %v814
  %v2716 = vmul.f32 %v2349, %v814
  %2722 = vrot.lane.b32.xlu0 %v2712, 64
  %v2723 = vpop.permute.xlu0 %2722
  %2724 = vrot.lane.b32.xlu0 %v2713, 64
  %v2725 = vpop.permute.xlu0 %2724
  %2726 = vrot.lane.b32.xlu0 %v2714, 64
  %v2727 = vpop.permute.xlu0 %2726
  %2728 = vrot.lane.b32.xlu0 %v2715, 64
  %v2729 = vpop.permute.xlu0 %2728
  %2730 = vrot.lane.b32.xlu0 %v2716, 64
  %v2731 = vpop.permute.xlu0 %2730
  %v2737 = vsel %vm581, %v2703, 0
  %v2740 = vsel %vm581, %v2705, 0
  %v2743 = vsel %vm581, %v2707, 0
  %v2746 = vsel %vm581, %v2709, 0
  %v2749 = vsel %vm581, %v2711, 0
  %v2751 = vsel %vm855, %v2731, 0
  %2753 = vmatprep.subr.mxu0 0.0
  %2754 = vmatpush1.msra.mxu0 %v2723
  %2755 = vmatprep.subr.mxu0 0.0
  %2756 = vmatpush1.msra.mxu0 %v2725
  %2757 = vmatprep.subr.mxu0 0.0
  %2758 = vmatpush1.msra.mxu0 %v2727
  %2759 = vmatprep.subr.mxu0 0.0
  %2760 = vmatpush1.msra.mxu0 %v2729
  %2761 = vmatprep.subr.mxu0 0.0
  %2762 = vmatpush1.msra.mxu0 %v2751
  %2763 = vmatprep.subr.mxu0 0.0
  %2764 = vmatpush1.msra.mxu0 0.0
  %2765 = vmatprep.subr.mxu0 0.0
  %2766 = vmatpush1.msra.mxu0 0.0
  %2767 = vmatprep.subr.mxu0 0.0
  %2768 = vmatpush1.msra.mxu0 0.0
  %2769 = vmatprep.subr.mxu0 0.0
  %2770 = vmatpush1.msra.mxu0 0.0
  %2771 = vmatprep.subr.mxu0 0.0
  %2772 = vmatpush1.msra.mxu0 0.0
  %2773 = vmatprep.subr.mxu0 0.0
  %2774 = vmatpush1.msra.mxu0 0.0
  %2775 = vmatprep.subr.mxu0 0.0
  %2776 = vmatpush1.msra.mxu0 0.0
  %2777 = vmatprep.subr.mxu0 0.0
  %2778 = vmatpush1.msra.mxu0 0.0
  %2779 = vmatprep.subr.mxu0 0.0
  %2780 = vmatpush1.msra.mxu0 0.0
  %2781 = vmatprep.subr.mxu0 0.0
  %2782 = vmatpush1.msra.mxu0 0.0
  %2783 = vmatprep.subr.mxu0 0.0
  %2784 = vmatpush1.msra.mxu0 0.0
  %2785 = vmatprep.subr.mxu0 0.0
  %2786 = vmatpush1.msra.mxu0 0.0
  %2787 = vmatprep.subr.mxu0 0.0
  %2788 = vmatpush1.msra.mxu0 0.0
  %2789 = vmatprep.subr.mxu0 0.0
  %2790 = vmatpush1.msra.mxu0 0.0
  %2791 = vmatprep.subr.mxu0 0.0
  %2792 = vmatpush1.msra.mxu0 0.0
  %2793 = vmatprep.subr.mxu0 0.0
  %2794 = vmatpush1.msra.mxu0 0.0
  %2795 = vmatprep.subr.mxu0 0.0
  %2796 = vmatpush1.msra.mxu0 0.0
  %2797 = vmatprep.subr.mxu0 0.0
  %2798 = vmatpush1.msra.mxu0 0.0
  %2799 = vmatprep.subr.mxu0 0.0
  %2800 = vmatpush1.msra.mxu0 0.0
  %2801 = vmatprep.subr.mxu0 0.0
  %2802 = vmatpush1.msra.mxu0 0.0
  %2803 = vmatprep.subr.mxu0 0.0
  %2804 = vmatpush1.msra.mxu0 0.0
  %2805 = vmatprep.subr.mxu0 0.0
  %2806 = vmatpush1.msra.mxu0 0.0
  %2807 = vmatprep.subr.mxu0 0.0
  %2808 = vmatpush1.msra.mxu0 0.0
  %2809 = vmatprep.subr.mxu0 0.0
  %2810 = vmatpush1.msra.mxu0 0.0
  %2811 = vmatprep.subr.mxu0 0.0
  %2812 = vmatpush1.msra.mxu0 0.0
  %2813 = vmatprep.subr.mxu0 0.0
  %2814 = vmatpush1.msra.mxu0 0.0
  %2815 = vmatprep.subr.mxu0 0.0
  %2816 = vmatpush1.msra.mxu0 0.0
  %2817 = vmatprep.mubr.f32.mxu0 0.0
  %2818 = vmatmul.mubr.f32.gmra.mrb[0].mxu0 %v2737
  %v2819 = vpop.f32.mrb[0].mxu0
  %v2820 = vadd.f32 0.0, %v2819
  %v2821 = vpop.f32.mrb[0].mxu0
  %2822 = vmatprep.mubr.f32.mxu0 0.0
  %2823 = vmatmul.mubr.f32.gmra.mrb[0].mxu0 %v2740
  %v2824 = vpop.f32.mrb[0].mxu0
  %v2825 = vadd.f32 0.0, %v2824
  %v2826 = vpop.f32.mrb[0].mxu0
  %2827 = vmatprep.mubr.f32.mxu0 0.0
  %2828 = vmatmul.mubr.f32.gmra.mrb[0].mxu0 %v2743
  %v2829 = vpop.f32.mrb[0].mxu0
  %v2830 = vadd.f32 0.0, %v2829
  %v2831 = vpop.f32.mrb[0].mxu0
  %2832 = vmatprep.mubr.f32.mxu0 0.0
  %2833 = vmatmul.mubr.f32.gmra.mrb[0].mxu0 %v2746
  %v2834 = vpop.f32.mrb[0].mxu0
  %v2835 = vadd.f32 0.0, %v2834
  %v2836 = vpop.f32.mrb[0].mxu0
  %2837 = vmatprep.mubr.f32.mxu0 0.0
  %2838 = vmatmul.mubr.f32.gmra.mrb[0].mxu0 %v2749
  %v2839 = vpop.f32.mrb[0].mxu0
  %v2840 = vadd.f32 0.0, %v2839
  %v2841 = vpop.f32.mrb[0].mxu0
  %2842 = vdwg.mxu0
  %2848 = vrot.lane.b32.xlu0 %v2542, 64
  %v2849 = vpop.permute.xlu0 %2848
  %2850 = vrot.lane.b32.xlu0 %v2543, 64
  %v2851 = vpop.permute.xlu0 %2850
  %2852 = vrot.lane.b32.xlu0 %v2544, 64
  %v2853 = vpop.permute.xlu0 %2852
  %2854 = vrot.lane.b32.xlu0 %v2545, 64
  %v2855 = vpop.permute.xlu0 %2854
  %2856 = vrot.lane.b32.xlu0 %v2546, 64
  %v2857 = vpop.permute.xlu0 %2856
  %v2863 = vsel %vm581, %v2533, 0
  %v2866 = vsel %vm581, %v2535, 0
  %v2869 = vsel %vm581, %v2537, 0
  %v2872 = vsel %vm581, %v2539, 0
  %v2875 = vsel %vm581, %v2541, 0
  %v2877 = vsel %vm855, %v2857, 0
  %2879 = vmatprep.subr.mxu0 0.0
  %2880 = vmatpush1.msra.mxu0 %v2849
  %2881 = vmatprep.subr.mxu0 0.0
  %2882 = vmatpush1.msra.mxu0 %v2851
  %2883 = vmatprep.subr.mxu0 0.0
  %2884 = vmatpush1.msra.mxu0 %v2853
  %2885 = vmatprep.subr.mxu0 0.0
  %2886 = vmatpush1.msra.mxu0 %v2855
  %2887 = vmatprep.subr.mxu0 0.0
  %2888 = vmatpush1.msra.mxu0 %v2877
  %2889 = vmatprep.subr.mxu0 0.0
  %2890 = vmatpush1.msra.mxu0 0.0
  %2891 = vmatprep.subr.mxu0 0.0
  %2892 = vmatpush1.msra.mxu0 0.0
  %2893 = vmatprep.subr.mxu0 0.0
  %2894 = vmatpush1.msra.mxu0 0.0
  %2895 = vmatprep.subr.mxu0 0.0
  %2896 = vmatpush1.msra.mxu0 0.0
  %2897 = vmatprep.subr.mxu0 0.0
  %2898 = vmatpush1.msra.mxu0 0.0
  %2899 = vmatprep.subr.mxu0 0.0
  %2900 = vmatpush1.msra.mxu0 0.0
  %2901 = vmatprep.subr.mxu0 0.0
  %2902 = vmatpush1.msra.mxu0 0.0
  %2903 = vmatprep.subr.mxu0 0.0
  %2904 = vmatpush1.msra.mxu0 0.0
  %2905 = vmatprep.subr.mxu0 0.0
  %2906 = vmatpush1.msra.mxu0 0.0
  %2907 = vmatprep.subr.mxu0 0.0
  %2908 = vmatpush1.msra.mxu0 0.0
  %2909 = vmatprep.subr.mxu0 0.0
  %2910 = vmatpush1.msra.mxu0 0.0
  %2911 = vmatprep.subr.mxu0 0.0
  %2912 = vmatpush1.msra.mxu0 0.0
  %2913 = vmatprep.subr.mxu0 0.0
  %2914 = vmatpush1.msra.mxu0 0.0
  %2915 = vmatprep.subr.mxu0 0.0
  %2916 = vmatpush1.msra.mxu0 0.0
  %2917 = vmatprep.subr.mxu0 0.0
  %2918 = vmatpush1.msra.mxu0 0.0
  %2919 = vmatprep.subr.mxu0 0.0
  %2920 = vmatpush1.msra.mxu0 0.0
  %2921 = vmatprep.subr.mxu0 0.0
  %2922 = vmatpush1.msra.mxu0 0.0
  %2923 = vmatprep.subr.mxu0 0.0
  %2924 = vmatpush1.msra.mxu0 0.0
  %2925 = vmatprep.subr.mxu0 0.0
  %2926 = vmatpush1.msra.mxu0 0.0
  %2927 = vmatprep.subr.mxu0 0.0
  %2928 = vmatpush1.msra.mxu0 0.0
  %2929 = vmatprep.subr.mxu0 0.0
  %2930 = vmatpush1.msra.mxu0 0.0
  %2931 = vmatprep.subr.mxu0 0.0
  %2932 = vmatpush1.msra.mxu0 0.0
  %2933 = vmatprep.subr.mxu0 0.0
  %2934 = vmatpush1.msra.mxu0 0.0
  %2935 = vmatprep.subr.mxu0 0.0
  %2936 = vmatpush1.msra.mxu0 0.0
  %2937 = vmatprep.subr.mxu0 0.0
  %2938 = vmatpush1.msra.mxu0 0.0
  %2939 = vmatprep.subr.mxu0 0.0
  %2940 = vmatpush1.msra.mxu0 0.0
  %2941 = vmatprep.subr.mxu0 0.0
  %2942 = vmatpush1.msra.mxu0 0.0
  %2943 = vmatprep.mubr.f32.mxu0 0.0
  %2944 = vmatmul.mubr.f32.gmra.mrb[0].mxu0 %v2863
  %v2945 = vpop.f32.mrb[0].mxu0
  %v2946 = vadd.f32 %v2820, %v2945
  %v2947 = vpop.f32.mrb[0].mxu0
  %2948 = vmatprep.mubr.f32.mxu0 0.0
  %2949 = vmatmul.mubr.f32.gmra.mrb[0].mxu0 %v2866
  %v2950 = vpop.f32.mrb[0].mxu0
  %v2951 = vadd.f32 %v2825, %v2950
  %v2952 = vpop.f32.mrb[0].mxu0
  %2953 = vmatprep.mubr.f32.mxu0 0.0
  %2954 = vmatmul.mubr.f32.gmra.mrb[0].mxu0 %v2869
  %v2955 = vpop.f32.mrb[0].mxu0
  %v2956 = vadd.f32 %v2830, %v2955
  %v2957 = vpop.f32.mrb[0].mxu0
  %2958 = vmatprep.mubr.f32.mxu0 0.0
  %2959 = vmatmul.mubr.f32.gmra.mrb[0].mxu0 %v2872
  %v2960 = vpop.f32.mrb[0].mxu0
  %v2961 = vadd.f32 %v2835, %v2960
  %v2962 = vpop.f32.mrb[0].mxu0
  %2963 = vmatprep.mubr.f32.mxu0 0.0
  %2964 = vmatmul.mubr.f32.gmra.mrb[0].mxu0 %v2875
  %v2965 = vpop.f32.mrb[0].mxu0
  %v2966 = vadd.f32 %v2840, %v2965
  %v2967 = vpop.f32.mrb[0].mxu0
  %2968 = vdwg.mxu0
  %v2969 = vmul.f32 %v2329, %v237
  %v2970 = vmul.f32 %v2334, %v237
  %v2971 = vmul.f32 %v2339, %v237
  %v2972 = vmul.f32 %v2344, %v237
  %v2973 = vmul.f32 %v2349, %v237
  %v2975 = vsel %vm244, %v2969, 0
  %v2978 = vsel %vm244, %v2970, 0
  %v2981 = vsel %vm244, %v2971, 0
  %v2984 = vsel %vm244, %v2972, 0
  %v2987 = vsel %vm244, %v2973, 0
  %2989 = vmatprep.subr.mxu0 0.0
  %2990 = vmatpush1.xpose.msra.mxu0 %v2387
  %2991 = vmatprep.subr.mxu0 0.0
  %2992 = vmatpush1.xpose.msra.mxu0 %v2389
  %2993 = vmatprep.subr.mxu0 0.0
  %2994 = vmatpush1.xpose.msra.mxu0 %v2391
  %2995 = vmatprep.subr.mxu0 0.0
  %2996 = vmatpush1.xpose.msra.mxu0 %v2393
  %2997 = vmatprep.subr.mxu0 0.0
  %2998 = vmatpush1.xpose.msra.mxu0 %v2395
  %2999 = vmatprep.subr.mxu0 0.0
  %3000 = vmatpush1.xpose.msra.mxu0 0.0
  %3001 = vmatprep.subr.mxu0 0.0
  %3002 = vmatpush1.xpose.msra.mxu0 0.0
  %3003 = vmatprep.subr.mxu0 0.0
  %3004 = vmatpush1.xpose.msra.mxu0 0.0
  %3005 = vmatprep.subr.mxu0 0.0
  %3006 = vmatpush1.xpose.msra.mxu0 0.0
  %3007 = vmatprep.subr.mxu0 0.0
  %3008 = vmatpush1.xpose.msra.mxu0 0.0
  %3009 = vmatprep.subr.mxu0 0.0
  %3010 = vmatpush1.xpose.msra.mxu0 0.0
  %3011 = vmatprep.subr.mxu0 0.0
  %3012 = vmatpush1.xpose.msra.mxu0 0.0
  %3013 = vmatprep.subr.mxu0 0.0
  %3014 = vmatpush1.xpose.msra.mxu0 0.0
  %3015 = vmatprep.subr.mxu0 0.0
  %3016 = vmatpush1.xpose.msra.mxu0 0.0
  %3017 = vmatprep.subr.mxu0 0.0
  %3018 = vmatpush1.xpose.msra.mxu0 0.0
  %3019 = vmatprep.subr.mxu0 0.0
  %3020 = vmatpush1.xpose.msra.mxu0 0.0
  %3021 = vmatprep.subr.mxu0 0.0
  %3022 = vmatpush1.xpose.msra.mxu0 0.0
  %3023 = vmatprep.subr.mxu0 0.0
  %3024 = vmatpush1.xpose.msra.mxu0 0.0
  %3025 = vmatprep.subr.mxu0 0.0
  %3026 = vmatpush1.xpose.msra.mxu0 0.0
  %3027 = vmatprep.subr.mxu0 0.0
  %3028 = vmatpush1.xpose.msra.mxu0 0.0
  %3029 = vmatprep.subr.mxu0 0.0
  %3030 = vmatpush1.xpose.msra.mxu0 0.0
  %3031 = vmatprep.subr.mxu0 0.0
  %3032 = vmatpush1.xpose.msra.mxu0 0.0
  %3033 = vmatprep.subr.mxu0 0.0
  %3034 = vmatpush1.xpose.msra.mxu0 0.0
  %3035 = vmatprep.subr.mxu0 0.0
  %3036 = vmatpush1.xpose.msra.mxu0 0.0
  %3037 = vmatprep.subr.mxu0 0.0
  %3038 = vmatpush1.xpose.msra.mxu0 0.0
  %3039 = vmatprep.subr.mxu0 0.0
  %3040 = vmatpush1.xpose.msra.mxu0 0.0
  %3041 = vmatprep.subr.mxu0 0.0
  %3042 = vmatpush1.xpose.msra.mxu0 0.0
  %3043 = vmatprep.subr.mxu0 0.0
  %3044 = vmatpush1.xpose.msra.mxu0 0.0
  %3045 = vmatprep.subr.mxu0 0.0
  %3046 = vmatpush1.xpose.msra.mxu0 0.0
  %3047 = vmatprep.subr.mxu0 0.0
  %3048 = vmatpush1.xpose.msra.mxu0 0.0
  %3049 = vmatprep.subr.mxu0 0.0
  %3050 = vmatpush1.xpose.msra.mxu0 0.0
  %3051 = vmatprep.subr.mxu0 0.0
  %3052 = vmatpush1.xpose.msra.mxu0 0.0
  %3053 = vmatprep.mubr.f32.mxu0 0.0
  %3054 = vmatmul.mubr.f32.gmra.mrb[0].mxu0 %v2975
  %v3055 = vpop.f32.mrb[0].mxu0
  %v3056 = vadd.f32 %v219, %v3055
  %v3057 = vpop.f32.mrb[0].mxu0
  %3058 = vmatprep.mubr.f32.mxu0 0.0
  %3059 = vmatmul.mubr.f32.gmra.mrb[0].mxu0 %v2978
  %v3060 = vpop.f32.mrb[0].mxu0
  %v3061 = vadd.f32 %v220, %v3060
  %v3062 = vpop.f32.mrb[0].mxu0
  %3063 = vmatprep.mubr.f32.mxu0 0.0
  %3064 = vmatmul.mubr.f32.gmra.mrb[0].mxu0 %v2981
  %v3065 = vpop.f32.mrb[0].mxu0
  %v3066 = vadd.f32 %v221, %v3065
  %v3067 = vpop.f32.mrb[0].mxu0
  %3068 = vmatprep.mubr.f32.mxu0 0.0
  %3069 = vmatmul.mubr.f32.gmra.mrb[0].mxu0 %v2984
  %v3070 = vpop.f32.mrb[0].mxu0
  %v3071 = vadd.f32 %v222, %v3070
  %v3072 = vpop.f32.mrb[0].mxu0
  %3073 = vmatprep.mubr.f32.mxu0 0.0
  %3074 = vmatmul.mubr.f32.gmra.mrb[0].mxu0 %v2987
  %v3075 = vpop.f32.mrb[0].mxu0
  %v3076 = vadd.f32 %v223, %v3075
  %v3077 = vpop.f32.mrb[0].mxu0
  %3078 = vdwg.mxu0
  %v3079 = vsel %vm581, %v3056, -inf
  %3080 = vmax.xlane.f32.xlu0 %v3079
  %v3081 = vpop.xlane.xlu0 %3080
  %v3082 = vsel %vm581, %v3061, -inf
  %3083 = vmax.xlane.f32.xlu0 %v3082
  %v3084 = vpop.xlane.xlu0 %3083
  %v3085 = vsel %vm581, %v3066, -inf
  %3086 = vmax.xlane.f32.xlu0 %v3085
  %v3087 = vpop.xlane.xlu0 %3086
  %v3088 = vsel %vm581, %v3071, -inf
  %3089 = vmax.xlane.f32.xlu0 %v3088
  %v3090 = vpop.xlane.xlu0 %3089
  %v3091 = vsel %vm594, %v3076, -inf
  %3092 = vmax.xlane.f32.xlu0 %v3091
  %v3093 = vpop.xlane.xlu0 %3092
  %v3094 = vsub.f32 %v3056, %v3081
  %v3095 = vsub.f32 %v3061, %v3084
  %v3096 = vsub.f32 %v3066, %v3087
  %v3097 = vsub.f32 %v3071, %v3090
  %v3098 = vsub.f32 %v3076, %v3093
  %v3099 = vmul.f32 %v3094, 1.442695
  %v3100 = vpow.pop %v3099
  %v3101 = vmul.f32 %v3095, 1.442695
  %v3102 = vpow.pop %v3101
  %v3103 = vmul.f32 %v3096, 1.442695
  %v3104 = vpow.pop %v3103
  %v3105 = vmul.f32 %v3097, 1.442695
  %v3106 = vpow.pop %v3105
  %v3107 = vmul.f32 %v3098, 1.442695
  %v3108 = vpow.pop %v3107
  %v3109 = vsel %vm581, %v3100, 0.0
  %3110 = vadd.xlane.f32.xlu0 %v3109
  %v3111 = vpop.xlane.xlu0 %3110
  %v3112 = vsel %vm581, %v3102, 0.0
  %3113 = vadd.xlane.f32.xlu0 %v3112
  %v3114 = vpop.xlane.xlu0 %3113
  %v3115 = vsel %vm581, %v3104, 0.0
  %3116 = vadd.xlane.f32.xlu0 %v3115
  %v3117 = vpop.xlane.xlu0 %3116
  %v3118 = vsel %vm581, %v3106, 0.0
  %3119 = vadd.xlane.f32.xlu0 %v3118
  %v3120 = vpop.xlane.xlu0 %3119
  %v3121 = vsel %vm594, %v3108, 0.0
  %3122 = vadd.xlane.f32.xlu0 %v3121
  %v3123 = vpop.xlane.xlu0 %3122
  %v3124 = vrcp.pop %v3111
  %v3125 = vmul.f32 %v3100, %v3124
  %v3126 = vrcp.pop %v3114
  %v3127 = vmul.f32 %v3102, %v3126
  %v3128 = vrcp.pop %v3117
  %v3129 = vmul.f32 %v3104, %v3128
  %v3130 = vrcp.pop %v3120
  %v3131 = vmul.f32 %v3106, %v3130
  %v3132 = vrcp.pop %v3123
  %v3133 = vmul.f32 %v3108, %v3132
  %v3134 = vmul.f32 %v2329, %v1241
  %v3135 = vmul.f32 %v2334, %v1241
  %v3136 = vmul.f32 %v2339, %v1241
  %v3137 = vmul.f32 %v2344, %v1241
  %v3138 = vmul.f32 %v2349, %v1241
  %3144 = vrot.lane.b32.xlu0 %v3134, 64
  %v3145 = vpop.permute.xlu0 %3144
  %3146 = vrot.lane.b32.xlu0 %v3135, 64
  %v3147 = vpop.permute.xlu0 %3146
  %3148 = vrot.lane.b32.xlu0 %v3136, 64
  %v3149 = vpop.permute.xlu0 %3148
  %3150 = vrot.lane.b32.xlu0 %v3137, 64
  %v3151 = vpop.permute.xlu0 %3150
  %3152 = vrot.lane.b32.xlu0 %v3138, 64
  %v3153 = vpop.permute.xlu0 %3152
  %v3159 = vsel %vm581, %v3125, 0
  %v3162 = vsel %vm581, %v3127, 0
  %v3165 = vsel %vm581, %v3129, 0
  %v3168 = vsel %vm581, %v3131, 0
  %v3171 = vsel %vm581, %v3133, 0
  %v3173 = vsel %vm855, %v3153, 0
  %3175 = vmatprep.subr.mxu0 0.0
  %3176 = vmatpush1.msra.mxu0 %v3145
  %3177 = vmatprep.subr.mxu0 0.0
  %3178 = vmatpush1.msra.mxu0 %v3147
  %3179 = vmatprep.subr.mxu0 0.0
  %3180 = vmatpush1.msra.mxu0 %v3149
  %3181 = vmatprep.subr.mxu0 0.0
  %3182 = vmatpush1.msra.mxu0 %v3151
  %3183 = vmatprep.subr.mxu0 0.0
  %3184 = vmatpush1.msra.mxu0 %v3173
  %3185 = vmatprep.subr.mxu0 0.0
  %3186 = vmatpush1.msra.mxu0 0.0
  %3187 = vmatprep.subr.mxu0 0.0
  %3188 = vmatpush1.msra.mxu0 0.0
  %3189 = vmatprep.subr.mxu0 0.0
  %3190 = vmatpush1.msra.mxu0 0.0
  %3191 = vmatprep.subr.mxu0 0.0
  %3192 = vmatpush1.msra.mxu0 0.0
  %3193 = vmatprep.subr.mxu0 0.0
  %3194 = vmatpush1.msra.mxu0 0.0
  %3195 = vmatprep.subr.mxu0 0.0
  %3196 = vmatpush1.msra.mxu0 0.0
  %3197 = vmatprep.subr.mxu0 0.0
  %3198 = vmatpush1.msra.mxu0 0.0
  %3199 = vmatprep.subr.mxu0 0.0
  %3200 = vmatpush1.msra.mxu0 0.0
  %3201 = vmatprep.subr.mxu0 0.0
  %3202 = vmatpush1.msra.mxu0 0.0
  %3203 = vmatprep.subr.mxu0 0.0
  %3204 = vmatpush1.msra.mxu0 0.0
  %3205 = vmatprep.subr.mxu0 0.0
  %3206 = vmatpush1.msra.mxu0 0.0
  %3207 = vmatprep.subr.mxu0 0.0
  %3208 = vmatpush1.msra.mxu0 0.0
  %3209 = vmatprep.subr.mxu0 0.0
  %3210 = vmatpush1.msra.mxu0 0.0
  %3211 = vmatprep.subr.mxu0 0.0
  %3212 = vmatpush1.msra.mxu0 0.0
  %3213 = vmatprep.subr.mxu0 0.0
  %3214 = vmatpush1.msra.mxu0 0.0
  %3215 = vmatprep.subr.mxu0 0.0
  %3216 = vmatpush1.msra.mxu0 0.0
  %3217 = vmatprep.subr.mxu0 0.0
  %3218 = vmatpush1.msra.mxu0 0.0
  %3219 = vmatprep.subr.mxu0 0.0
  %3220 = vmatpush1.msra.mxu0 0.0
  %3221 = vmatprep.subr.mxu0 0.0
  %3222 = vmatpush1.msra.mxu0 0.0
  %3223 = vmatprep.subr.mxu0 0.0
  %3224 = vmatpush1.msra.mxu0 0.0
  %3225 = vmatprep.subr.mxu0 0.0
  %3226 = vmatpush1.msra.mxu0 0.0
  %3227 = vmatprep.subr.mxu0 0.0
  %3228 = vmatpush1.msra.mxu0 0.0
  %3229 = vmatprep.subr.mxu0 0.0
  %3230 = vmatpush1.msra.mxu0 0.0
  %3231 = vmatprep.subr.mxu0 0.0
  %3232 = vmatpush1.msra.mxu0 0.0
  %3233 = vmatprep.subr.mxu0 0.0
  %3234 = vmatpush1.msra.mxu0 0.0
  %3235 = vmatprep.subr.mxu0 0.0
  %3236 = vmatpush1.msra.mxu0 0.0
  %3237 = vmatprep.subr.mxu0 0.0
  %3238 = vmatpush1.msra.mxu0 0.0
  %3239 = vmatprep.mubr.f32.mxu0 0.0
  %3240 = vmatmul.mubr.f32.gmra.mrb[0].mxu0 %v3159
  %v3241 = vpop.f32.mrb[0].mxu0
  %v3242 = vadd.f32 0.0, %v3241
  %v3243 = vpop.f32.mrb[0].mxu0
  %3244 = vmatprep.mubr.f32.mxu0 0.0
  %3245 = vmatmul.mubr.f32.gmra.mrb[0].mxu0 %v3162
  %v3246 = vpop.f32.mrb[0].mxu0
  %v3247 = vadd.f32 0.0, %v3246
  %v3248 = vpop.f32.mrb[0].mxu0
  %3249 = vmatprep.mubr.f32.mxu0 0.0
  %3250 = vmatmul.mubr.f32.gmra.mrb[0].mxu0 %v3165
  %v3251 = vpop.f32.mrb[0].mxu0
  %v3252 = vadd.f32 0.0, %v3251
  %v3253 = vpop.f32.mrb[0].mxu0
  %3254 = vmatprep.mubr.f32.mxu0 0.0
  %3255 = vmatmul.mubr.f32.gmra.mrb[0].mxu0 %v3168
  %v3256 = vpop.f32.mrb[0].mxu0
  %v3257 = vadd.f32 0.0, %v3256
  %v3258 = vpop.f32.mrb[0].mxu0
  %3259 = vmatprep.mubr.f32.mxu0 0.0
  %3260 = vmatmul.mubr.f32.gmra.mrb[0].mxu0 %v3171
  %v3261 = vpop.f32.mrb[0].mxu0
  %v3262 = vadd.f32 0.0, %v3261
  %v3263 = vpop.f32.mrb[0].mxu0
  %3264 = vdwg.mxu0
  %v3265 = vadd.f32 %v2946, %v3242
  %v3266 = vadd.f32 %v2951, %v3247
  %v3267 = vadd.f32 %v2956, %v3252
  %v3268 = vadd.f32 %v2961, %v3257
  %v3269 = vadd.f32 %v2966, %v3262
  %v3270 = vmul.f32 %v2329, %v242
  %v3271 = vmul.f32 %v2334, %v242
  %v3272 = vmul.f32 %v2339, %v242
  %v3273 = vmul.f32 %v2344, %v242
  %v3274 = vmul.f32 %v2349, %v242
  %v3276 = vsel %vm244, %v3270, 0
  %v3279 = vsel %vm244, %v3271, 0
  %v3282 = vsel %vm244, %v3272, 0
  %v3285 = vsel %vm244, %v3273, 0
  %v3288 = vsel %vm244, %v3274, 0
  %3290 = vmatprep.subr.mxu0 0.0
  %3291 = vmatpush1.xpose.msra.mxu0 %v2387
  %3292 = vmatprep.subr.mxu0 0.0
  %3293 = vmatpush1.xpose.msra.mxu0 %v2389
  %3294 = vmatprep.subr.mxu0 0.0
  %3295 = vmatpush1.xpose.msra.mxu0 %v2391
  %3296 = vmatprep.subr.mxu0 0.0
  %3297 = vmatpush1.xpose.msra.mxu0 %v2393
  %3298 = vmatprep.subr.mxu0 0.0
  %3299 = vmatpush1.xpose.msra.mxu0 %v2395
  %3300 = vmatprep.subr.mxu0 0.0
  %3301 = vmatpush1.xpose.msra.mxu0 0.0
  %3302 = vmatprep.subr.mxu0 0.0
  %3303 = vmatpush1.xpose.msra.mxu0 0.0
  %3304 = vmatprep.subr.mxu0 0.0
  %3305 = vmatpush1.xpose.msra.mxu0 0.0
  %3306 = vmatprep.subr.mxu0 0.0
  %3307 = vmatpush1.xpose.msra.mxu0 0.0
  %3308 = vmatprep.subr.mxu0 0.0
  %3309 = vmatpush1.xpose.msra.mxu0 0.0
  %3310 = vmatprep.subr.mxu0 0.0
  %3311 = vmatpush1.xpose.msra.mxu0 0.0
  %3312 = vmatprep.subr.mxu0 0.0
  %3313 = vmatpush1.xpose.msra.mxu0 0.0
  %3314 = vmatprep.subr.mxu0 0.0
  %3315 = vmatpush1.xpose.msra.mxu0 0.0
  %3316 = vmatprep.subr.mxu0 0.0
  %3317 = vmatpush1.xpose.msra.mxu0 0.0
  %3318 = vmatprep.subr.mxu0 0.0
  %3319 = vmatpush1.xpose.msra.mxu0 0.0
  %3320 = vmatprep.subr.mxu0 0.0
  %3321 = vmatpush1.xpose.msra.mxu0 0.0
  %3322 = vmatprep.subr.mxu0 0.0
  %3323 = vmatpush1.xpose.msra.mxu0 0.0
  %3324 = vmatprep.subr.mxu0 0.0
  %3325 = vmatpush1.xpose.msra.mxu0 0.0
  %3326 = vmatprep.subr.mxu0 0.0
  %3327 = vmatpush1.xpose.msra.mxu0 0.0
  %3328 = vmatprep.subr.mxu0 0.0
  %3329 = vmatpush1.xpose.msra.mxu0 0.0
  %3330 = vmatprep.subr.mxu0 0.0
  %3331 = vmatpush1.xpose.msra.mxu0 0.0
  %3332 = vmatprep.subr.mxu0 0.0
  %3333 = vmatpush1.xpose.msra.mxu0 0.0
  %3334 = vmatprep.subr.mxu0 0.0
  %3335 = vmatpush1.xpose.msra.mxu0 0.0
  %3336 = vmatprep.subr.mxu0 0.0
  %3337 = vmatpush1.xpose.msra.mxu0 0.0
  %3338 = vmatprep.subr.mxu0 0.0
  %3339 = vmatpush1.xpose.msra.mxu0 0.0
  %3340 = vmatprep.subr.mxu0 0.0
  %3341 = vmatpush1.xpose.msra.mxu0 0.0
  %3342 = vmatprep.subr.mxu0 0.0
  %3343 = vmatpush1.xpose.msra.mxu0 0.0
  %3344 = vmatprep.subr.mxu0 0.0
  %3345 = vmatpush1.xpose.msra.mxu0 0.0
  %3346 = vmatprep.subr.mxu0 0.0
  %3347 = vmatpush1.xpose.msra.mxu0 0.0
  %3348 = vmatprep.subr.mxu0 0.0
  %3349 = vmatpush1.xpose.msra.mxu0 0.0
  %3350 = vmatprep.subr.mxu0 0.0
  %3351 = vmatpush1.xpose.msra.mxu0 0.0
  %3352 = vmatprep.subr.mxu0 0.0
  %3353 = vmatpush1.xpose.msra.mxu0 0.0
  %3354 = vmatprep.mubr.f32.mxu0 0.0
  %3355 = vmatmul.mubr.f32.gmra.mrb[0].mxu0 %v3276
  %v3356 = vpop.f32.mrb[0].mxu0
  %v3357 = vadd.f32 %v219, %v3356
  %v3358 = vpop.f32.mrb[0].mxu0
  %3359 = vmatprep.mubr.f32.mxu0 0.0
  %3360 = vmatmul.mubr.f32.gmra.mrb[0].mxu0 %v3279
  %v3361 = vpop.f32.mrb[0].mxu0
  %v3362 = vadd.f32 %v220, %v3361
  %v3363 = vpop.f32.mrb[0].mxu0
  %3364 = vmatprep.mubr.f32.mxu0 0.0
  %3365 = vmatmul.mubr.f32.gmra.mrb[0].mxu0 %v3282
  %v3366 = vpop.f32.mrb[0].mxu0
  %v3367 = vadd.f32 %v221, %v3366
  %v3368 = vpop.f32.mrb[0].mxu0
  %3369 = vmatprep.mubr.f32.mxu0 0.0
  %3370 = vmatmul.mubr.f32.gmra.mrb[0].mxu0 %v3285
  %v3371 = vpop.f32.mrb[0].mxu0
  %v3372 = vadd.f32 %v222, %v3371
  %v3373 = vpop.f32.mrb[0].mxu0
  %3374 = vmatprep.mubr.f32.mxu0 0.0
  %3375 = vmatmul.mubr.f32.gmra.mrb[0].mxu0 %v3288
  %v3376 = vpop.f32.mrb[0].mxu0
  %v3377 = vadd.f32 %v223, %v3376
  %v3378 = vpop.f32.mrb[0].mxu0
  %3379 = vdwg.mxu0
  %v3380 = vsel %vm581, %v3357, -inf
  %3381 = vmax.xlane.f32.xlu0 %v3380
  %v3382 = vpop.xlane.xlu0 %3381
  %v3383 = vsel %vm581, %v3362, -inf
  %3384 = vmax.xlane.f32.xlu0 %v3383
  %v3385 = vpop.xlane.xlu0 %3384
  %v3386 = vsel %vm581, %v3367, -inf
  %3387 = vmax.xlane.f32.xlu0 %v3386
  %v3388 = vpop.xlane.xlu0 %3387
  %v3389 = vsel %vm581, %v3372, -inf
  %3390 = vmax.xlane.f32.xlu0 %v3389
  %v3391 = vpop.xlane.xlu0 %3390
  %v3392 = vsel %vm594, %v3377, -inf
  %3393 = vmax.xlane.f32.xlu0 %v3392
  %v3394 = vpop.xlane.xlu0 %3393
  %v3395 = vsub.f32 %v3357, %v3382
  %v3396 = vsub.f32 %v3362, %v3385
  %v3397 = vsub.f32 %v3367, %v3388
  %v3398 = vsub.f32 %v3372, %v3391
  %v3399 = vsub.f32 %v3377, %v3394
  %v3400 = vmul.f32 %v3395, 1.442695
  %v3401 = vpow.pop %v3400
  %v3402 = vmul.f32 %v3396, 1.442695
  %v3403 = vpow.pop %v3402
  %v3404 = vmul.f32 %v3397, 1.442695
  %v3405 = vpow.pop %v3404
  %v3406 = vmul.f32 %v3398, 1.442695
  %v3407 = vpow.pop %v3406
  %v3408 = vmul.f32 %v3399, 1.442695
  %v3409 = vpow.pop %v3408
  %v3410 = vsel %vm581, %v3401, 0.0
  %3411 = vadd.xlane.f32.xlu0 %v3410
  %v3412 = vpop.xlane.xlu0 %3411
  %v3413 = vsel %vm581, %v3403, 0.0
  %3414 = vadd.xlane.f32.xlu0 %v3413
  %v3415 = vpop.xlane.xlu0 %3414
  %v3416 = vsel %vm581, %v3405, 0.0
  %3417 = vadd.xlane.f32.xlu0 %v3416
  %v3418 = vpop.xlane.xlu0 %3417
  %v3419 = vsel %vm581, %v3407, 0.0
  %3420 = vadd.xlane.f32.xlu0 %v3419
  %v3421 = vpop.xlane.xlu0 %3420
  %v3422 = vsel %vm594, %v3409, 0.0
  %3423 = vadd.xlane.f32.xlu0 %v3422
  %v3424 = vpop.xlane.xlu0 %3423
  %v3425 = vrcp.pop %v3412
  %v3426 = vmul.f32 %v3401, %v3425
  %v3427 = vrcp.pop %v3415
  %v3428 = vmul.f32 %v3403, %v3427
  %v3429 = vrcp.pop %v3418
  %v3430 = vmul.f32 %v3405, %v3429
  %v3431 = vrcp.pop %v3421
  %v3432 = vmul.f32 %v3407, %v3431
  %v3433 = vrcp.pop %v3424
  %v3434 = vmul.f32 %v3409, %v3433
  %v3435 = vmul.f32 %v2329, %v1546
  %v3436 = vmul.f32 %v2334, %v1546
  %v3437 = vmul.f32 %v2339, %v1546
  %v3438 = vmul.f32 %v2344, %v1546
  %v3439 = vmul.f32 %v2349, %v1546
  %3445 = vrot.lane.b32.xlu0 %v3435, 64
  %v3446 = vpop.permute.xlu0 %3445
  %3447 = vrot.lane.b32.xlu0 %v3436, 64
  %v3448 = vpop.permute.xlu0 %3447
  %3449 = vrot.lane.b32.xlu0 %v3437, 64
  %v3450 = vpop.permute.xlu0 %3449
  %3451 = vrot.lane.b32.xlu0 %v3438, 64
  %v3452 = vpop.permute.xlu0 %3451
  %3453 = vrot.lane.b32.xlu0 %v3439, 64
  %v3454 = vpop.permute.xlu0 %3453
  %v3460 = vsel %vm581, %v3426, 0
  %v3463 = vsel %vm581, %v3428, 0
  %v3466 = vsel %vm581, %v3430, 0
  %v3469 = vsel %vm581, %v3432, 0
  %v3472 = vsel %vm581, %v3434, 0
  %v3474 = vsel %vm855, %v3454, 0
  %3476 = vmatprep.subr.mxu0 0.0
  %3477 = vmatpush1.msra.mxu0 %v3446
  %3478 = vmatprep.subr.mxu0 0.0
  %3479 = vmatpush1.msra.mxu0 %v3448
  %3480 = vmatprep.subr.mxu0 0.0
  %3481 = vmatpush1.msra.mxu0 %v3450
  %3482 = vmatprep.subr.mxu0 0.0
  %3483 = vmatpush1.msra.mxu0 %v3452
  %3484 = vmatprep.subr.mxu0 0.0
  %3485 = vmatpush1.msra.mxu0 %v3474
  %3486 = vmatprep.subr.mxu0 0.0
  %3487 = vmatpush1.msra.mxu0 0.0
  %3488 = vmatprep.subr.mxu0 0.0
  %3489 = vmatpush1.msra.mxu0 0.0
  %3490 = vmatprep.subr.mxu0 0.0
  %3491 = vmatpush1.msra.mxu0 0.0
  %3492 = vmatprep.subr.mxu0 0.0
  %3493 = vmatpush1.msra.mxu0 0.0
  %3494 = vmatprep.subr.mxu0 0.0
  %3495 = vmatpush1.msra.mxu0 0.0
  %3496 = vmatprep.subr.mxu0 0.0
  %3497 = vmatpush1.msra.mxu0 0.0
  %3498 = vmatprep.subr.mxu0 0.0
  %3499 = vmatpush1.msra.mxu0 0.0
  %3500 = vmatprep.subr.mxu0 0.0
  %3501 = vmatpush1.msra.mxu0 0.0
  %3502 = vmatprep.subr.mxu0 0.0
  %3503 = vmatpush1.msra.mxu0 0.0
  %3504 = vmatprep.subr.mxu0 0.0
  %3505 = vmatpush1.msra.mxu0 0.0
  %3506 = vmatprep.subr.mxu0 0.0
  %3507 = vmatpush1.msra.mxu0 0.0
  %3508 = vmatprep.subr.mxu0 0.0
  %3509 = vmatpush1.msra.mxu0 0.0
  %3510 = vmatprep.subr.mxu0 0.0
  %3511 = vmatpush1.msra.mxu0 0.0
  %3512 = vmatprep.subr.mxu0 0.0
  %3513 = vmatpush1.msra.mxu0 0.0
  %3514 = vmatprep.subr.mxu0 0.0
  %3515 = vmatpush1.msra.mxu0 0.0
  %3516 = vmatprep.subr.mxu0 0.0
  %3517 = vmatpush1.msra.mxu0 0.0
  %3518 = vmatprep.subr.mxu0 0.0
  %3519 = vmatpush1.msra.mxu0 0.0
  %3520 = vmatprep.subr.mxu0 0.0
  %3521 = vmatpush1.msra.mxu0 0.0
  %3522 = vmatprep.subr.mxu0 0.0
  %3523 = vmatpush1.msra.mxu0 0.0
  %3524 = vmatprep.subr.mxu0 0.0
  %3525 = vmatpush1.msra.mxu0 0.0
  %3526 = vmatprep.subr.mxu0 0.0
  %3527 = vmatpush1.msra.mxu0 0.0
  %3528 = vmatprep.subr.mxu0 0.0
  %3529 = vmatpush1.msra.mxu0 0.0
  %3530 = vmatprep.subr.mxu0 0.0
  %3531 = vmatpush1.msra.mxu0 0.0
  %3532 = vmatprep.subr.mxu0 0.0
  %3533 = vmatpush1.msra.mxu0 0.0
  %3534 = vmatprep.subr.mxu0 0.0
  %3535 = vmatpush1.msra.mxu0 0.0
  %3536 = vmatprep.subr.mxu0 0.0
  %3537 = vmatpush1.msra.mxu0 0.0
  %3538 = vmatprep.subr.mxu0 0.0
  %3539 = vmatpush1.msra.mxu0 0.0
  %3540 = vmatprep.mubr.f32.mxu0 0.0
  %3541 = vmatmul.mubr.f32.gmra.mrb[0].mxu0 %v3460
  %v3542 = vpop.f32.mrb[0].mxu0
  %v3543 = vadd.f32 0.0, %v3542
  %v3544 = vpop.f32.mrb[0].mxu0
  %3545 = vmatprep.mubr.f32.mxu0 0.0
  %3546 = vmatmul.mubr.f32.gmra.mrb[0].mxu0 %v3463
  %v3547 = vpop.f32.mrb[0].mxu0
  %v3548 = vadd.f32 0.0, %v3547
  %v3549 = vpop.f32.mrb[0].mxu0
  %3550 = vmatprep.mubr.f32.mxu0 0.0
  %3551 = vmatmul.mubr.f32.gmra.mrb[0].mxu0 %v3466
  %v3552 = vpop.f32.mrb[0].mxu0
  %v3553 = vadd.f32 0.0, %v3552
  %v3554 = vpop.f32.mrb[0].mxu0
  %3555 = vmatprep.mubr.f32.mxu0 0.0
  %3556 = vmatmul.mubr.f32.gmra.mrb[0].mxu0 %v3469
  %v3557 = vpop.f32.mrb[0].mxu0
  %v3558 = vadd.f32 0.0, %v3557
  %v3559 = vpop.f32.mrb[0].mxu0
  %3560 = vmatprep.mubr.f32.mxu0 0.0
  %3561 = vmatmul.mubr.f32.gmra.mrb[0].mxu0 %v3472
  %v3562 = vpop.f32.mrb[0].mxu0
  %v3563 = vadd.f32 0.0, %v3562
  %v3564 = vpop.f32.mrb[0].mxu0
  %3565 = vdwg.mxu0
  %v3566 = vadd.f32 %v3265, %v3543
  %v3567 = vadd.f32 %v3266, %v3548
  %v3568 = vadd.f32 %v3267, %v3553
  %v3569 = vadd.f32 %v3268, %v3558
  %v3570 = vadd.f32 %v3269, %v3563
  %s3571 = scalar_lea.vmem %s6, 32
  %v3572 = vld [vmem:[%s3571] sm:$0xff]
  %v3573 = vld [vmem:[%s3571 + $0x8] sm:$0xff]
  %v3574 = vld [vmem:[%s3571 + $0x10] sm:$0xff]
  %v3575 = vld [vmem:[%s3571 + $0x18] sm:$0xff]
  %v3576 = vlaneseq
  %v3577 = vshrl.u32 %v3576, 7
  %v3578 = vsub.s32 2, %v3577
  %v3579 = vrot.slane %v2150, %v3578
  %v3581 = vsel %vm244, %v3566, 0
  %v3584 = vsel %vm244, %v3567, 0
  %v3587 = vsel %vm244, %v3568, 0
  %v3590 = vsel %vm244, %v3569, 0
  %v3593 = vsel %vm244, %v3570, 0
  %3595 = vmatprep.subr.mxu0 0.0
  %3596 = vmatpush1.msra.mxu0 %v3572
  %3597 = vmatprep.subr.mxu0 0.0
  %3598 = vmatpush1.msra.mxu0 %v3573
  %3599 = vmatprep.subr.mxu0 0.0
  %3600 = vmatpush1.msra.mxu0 %v3574
  %3601 = vmatprep.subr.mxu0 0.0
  %3602 = vmatpush1.msra.mxu0 %v3575
  %3603 = vmatprep.subr.mxu0 0.0
  %3604 = vmatpush1.msra.mxu0 0.0
  %3605 = vmatprep.subr.mxu0 0.0
  %3606 = vmatpush1.msra.mxu0 0.0
  %3607 = vmatprep.subr.mxu0 0.0
  %3608 = vmatpush1.msra.mxu0 0.0
  %3609 = vmatprep.subr.mxu0 0.0
  %3610 = vmatpush1.msra.mxu0 0.0
  %3611 = vmatprep.subr.mxu0 0.0
  %3612 = vmatpush1.msra.mxu0 0.0
  %3613 = vmatprep.subr.mxu0 0.0
  %3614 = vmatpush1.msra.mxu0 0.0
  %3615 = vmatprep.subr.mxu0 0.0
  %3616 = vmatpush1.msra.mxu0 0.0
  %3617 = vmatprep.subr.mxu0 0.0
  %3618 = vmatpush1.msra.mxu0 0.0
  %3619 = vmatprep.subr.mxu0 0.0
  %3620 = vmatpush1.msra.mxu0 0.0
  %3621 = vmatprep.subr.mxu0 0.0
  %3622 = vmatpush1.msra.mxu0 0.0
  %3623 = vmatprep.subr.mxu0 0.0
  %3624 = vmatpush1.msra.mxu0 0.0
  %3625 = vmatprep.subr.mxu0 0.0
  %3626 = vmatpush1.msra.mxu0 0.0
  %3627 = vmatprep.subr.mxu0 0.0
  %3628 = vmatpush1.msra.mxu0 0.0
  %3629 = vmatprep.subr.mxu0 0.0
  %3630 = vmatpush1.msra.mxu0 0.0
  %3631 = vmatprep.subr.mxu0 0.0
  %3632 = vmatpush1.msra.mxu0 0.0
  %3633 = vmatprep.subr.mxu0 0.0
  %3634 = vmatpush1.msra.mxu0 0.0
  %3635 = vmatprep.subr.mxu0 0.0
  %3636 = vmatpush1.msra.mxu0 0.0
  %3637 = vmatprep.subr.mxu0 0.0
  %3638 = vmatpush1.msra.mxu0 0.0
  %3639 = vmatprep.subr.mxu0 0.0
  %3640 = vmatpush1.msra.mxu0 0.0
  %3641 = vmatprep.subr.mxu0 0.0
  %3642 = vmatpush1.msra.mxu0 0.0
  %3643 = vmatprep.subr.mxu0 0.0
  %3644 = vmatpush1.msra.mxu0 0.0
  %3645 = vmatprep.subr.mxu0 0.0
  %3646 = vmatpush1.msra.mxu0 0.0
  %3647 = vmatprep.subr.mxu0 0.0
  %3648 = vmatpush1.msra.mxu0 0.0
  %3649 = vmatprep.subr.mxu0 0.0
  %3650 = vmatpush1.msra.mxu0 0.0
  %3651 = vmatprep.subr.mxu0 0.0
  %3652 = vmatpush1.msra.mxu0 0.0
  %3653 = vmatprep.subr.mxu0 0.0
  %3654 = vmatpush1.msra.mxu0 0.0
  %3655 = vmatprep.subr.mxu0 0.0
  %3656 = vmatpush1.msra.mxu0 0.0
  %3657 = vmatprep.subr.mxu0 0.0
  %3658 = vmatpush1.msra.mxu0 0.0
  %3659 = vmatprep.mubr.f32.mxu0 0.0
  %3660 = vmatmul.mubr.f32.gmra.mrb[0].mxu0 %v3581
  %v3661 = vpop.f32.mrb[0].mxu0
  %v3662 = vadd.f32 %v3579, %v3661
  %v3663 = vpop.f32.mrb[0].mxu0
  %3664 = vmatprep.mubr.f32.mxu0 0.0
  %3665 = vmatmul.mubr.f32.gmra.mrb[0].mxu0 %v3584
  %v3666 = vpop.f32.mrb[0].mxu0
  %v3667 = vadd.f32 %v3579, %v3666
  %v3668 = vpop.f32.mrb[0].mxu0
  %3669 = vmatprep.mubr.f32.mxu0 0.0
  %3670 = vmatmul.mubr.f32.gmra.mrb[0].mxu0 %v3587
  %v3671 = vpop.f32.mrb[0].mxu0
  %v3672 = vadd.f32 %v3579, %v3671
  %v3673 = vpop.f32.mrb[0].mxu0
  %3674 = vmatprep.mubr.f32.mxu0 0.0
  %3675 = vmatmul.mubr.f32.gmra.mrb[0].mxu0 %v3590
  %v3676 = vpop.f32.mrb[0].mxu0
  %v3677 = vadd.f32 %v3579, %v3676
  %v3678 = vpop.f32.mrb[0].mxu0
  %3679 = vmatprep.mubr.f32.mxu0 0.0
  %3680 = vmatmul.mubr.f32.gmra.mrb[0].mxu0 %v3593
  %v3681 = vpop.f32.mrb[0].mxu0
  %v3682 = vadd.f32 %v3579, %v3681
  %v3683 = vpop.f32.mrb[0].mxu0
  %3684 = vdwg.mxu0
  %v3685 = vadd.f32 %v3662, %v2144
  %v3686 = vadd.f32 %v3667, %v2145
  %v3687 = vadd.f32 %v3672, %v2146
  %v3688 = vadd.f32 %v3677, %v2147
  %v3689 = vadd.f32 %v3682, %v2148
  %v3690 = vsel %vm244, %v3685, 0.0
  %3691 = vadd.xlane.f32.xlu0 %v3690
  %v3692 = vpop.xlane.xlu0 %3691
  %v3693 = vsel %vm244, %v3686, 0.0
  %3694 = vadd.xlane.f32.xlu0 %v3693
  %v3695 = vpop.xlane.xlu0 %3694
  %v3696 = vsel %vm244, %v3687, 0.0
  %3697 = vadd.xlane.f32.xlu0 %v3696
  %v3698 = vpop.xlane.xlu0 %3697
  %v3699 = vsel %vm244, %v3688, 0.0
  %3700 = vadd.xlane.f32.xlu0 %v3699
  %v3701 = vpop.xlane.xlu0 %3700
  %v3702 = vsel %vm257, %v3689, 0.0
  %3703 = vadd.xlane.f32.xlu0 %v3702
  %v3704 = vpop.xlane.xlu0 %3703
  %v3705 = vmul.f32 %v3692, %v261
  %v3706 = vmul.f32 %v3695, %v261
  %v3707 = vmul.f32 %v3698, %v261
  %v3708 = vmul.f32 %v3701, %v261
  %v3709 = vmul.f32 %v3704, %v261
  %v3710 = vsub.f32 %v3685, %v3705
  %v3711 = vsub.f32 %v3686, %v3706
  %v3712 = vsub.f32 %v3687, %v3707
  %v3713 = vsub.f32 %v3688, %v3708
  %v3714 = vsub.f32 %v3689, %v3709
  %v3715 = vmul.f32 %v3710, %v3710
  %v3716 = vmul.f32 %v3711, %v3711
  %v3717 = vmul.f32 %v3712, %v3712
  %v3718 = vmul.f32 %v3713, %v3713
  %v3719 = vmul.f32 %v3714, %v3714
  %v3720 = vsel %vm244, %v3715, 0.0
  %3721 = vadd.xlane.f32.xlu0 %v3720
  %v3722 = vpop.xlane.xlu0 %3721
  %v3723 = vsel %vm244, %v3716, 0.0
  %3724 = vadd.xlane.f32.xlu0 %v3723
  %v3725 = vpop.xlane.xlu0 %3724
  %v3726 = vsel %vm244, %v3717, 0.0
  %3727 = vadd.xlane.f32.xlu0 %v3726
  %v3728 = vpop.xlane.xlu0 %3727
  %v3729 = vsel %vm244, %v3718, 0.0
  %3730 = vadd.xlane.f32.xlu0 %v3729
  %v3731 = vpop.xlane.xlu0 %3730
  %v3732 = vsel %vm257, %v3719, 0.0
  %3733 = vadd.xlane.f32.xlu0 %v3732
  %v3734 = vpop.xlane.xlu0 %3733
  %v3735 = vmul.f32 %v3722, %v261
  %v3736 = vmul.f32 %v3725, %v261
  %v3737 = vmul.f32 %v3728, %v261
  %v3738 = vmul.f32 %v3731, %v261
  %v3739 = vmul.f32 %v3734, %v261
  %v3740 = vadd.f32 %v3735, 1e-06
  %v3741 = vadd.f32 %v3736, 1e-06
  %v3742 = vadd.f32 %v3737, 1e-06
  %v3743 = vadd.f32 %v3738, 1e-06
  %v3744 = vadd.f32 %v3739, 1e-06
  %v3745 = vrsqrt.pop %v3740
  %v3746 = vrsqrt.pop %v3741
  %v3747 = vrsqrt.pop %v3742
  %v3748 = vrsqrt.pop %v3743
  %v3749 = vrsqrt.pop %v3744
  %v3750 = vmul.f32 %v3710, %v3745
  %v3751 = vmul.f32 %v3711, %v3746
  %v3752 = vmul.f32 %v3712, %v3747
  %v3753 = vmul.f32 %v3713, %v3748
  %v3754 = vmul.f32 %v3714, %v3749
  %v3755 = vlaneseq
  %v3756 = vshrl.u32 %v3755, 7
  %v3757 = vsub.s32 3, %v3756
  %v3758 = vrot.slane %v2150, %v3757
  %v3759 = vmul.f32 %v3750, %v3758
  %v3760 = vmul.f32 %v3751, %v3758
  %v3761 = vmul.f32 %v3752, %v3758
  %v3762 = vmul.f32 %v3753, %v3758
  %v3763 = vmul.f32 %v3754, %v3758
  %v3764 = vlaneseq
  %v3765 = vshrl.u32 %v3764, 7
  %v3766 = vsub.s32 4, %v3765
  %v3767 = vrot.slane %v2150, %v3766
  %v3768 = vadd.f32 %v3759, %v3767
  %v3769 = vadd.f32 %v3760, %v3767
  %v3770 = vadd.f32 %v3761, %v3767
  %v3771 = vadd.f32 %v3762, %v3767
  %v3772 = vadd.f32 %v3763, %v3767
  %s3773 = scalar_lea.vmem %s7, 32
  %v3774 = vld [vmem:[%s3773] sm:$0xff]
  %v3775 = vld [vmem:[%s3773 + $0x8] sm:$0xff]
  %v3776 = vld [vmem:[%s3773 + $0x10] sm:$0xff]
  %v3777 = vld [vmem:[%s3773 + $0x18] sm:$0xff]
  %s3778 = scalar_lea.vmem %s8, 1
  %v3779 = vld [vmem:[%s3778] sm:$0x1]
  %v3781 = vlaneseq
  %v3782 = vshrl.u32 %v3781, 7
  %v3783 = vsub.s32 0, %v3782
  %v3784 = vrot.slane %v3779, %v3783
  %v3787 = vsel %vm244, %v3768, 0
  %v3790 = vsel %vm244, %v3769, 0
  %v3793 = vsel %vm244, %v3770, 0
  %v3796 = vsel %vm244, %v3771, 0
  %v3799 = vsel %vm244, %v3772, 0
  %3801 = vmatprep.subr.mxu0 0.0
  %3802 = vmatpush1.msra.mxu0 %v3774
  %3803 = vmatprep.subr.mxu0 0.0
  %3804 = vmatpush1.msra.mxu0 %v3775
  %3805 = vmatprep.subr.mxu0 0.0
  %3806 = vmatpush1.msra.mxu0 %v3776
  %3807 = vmatprep.subr.mxu0 0.0
  %3808 = vmatpush1.msra.mxu0 %v3777
  %3809 = vmatprep.subr.mxu0 0.0
  %3810 = vmatpush1.msra.mxu0 0.0
  %3811 = vmatprep.subr.mxu0 0.0
  %3812 = vmatpush1.msra.mxu0 0.0
  %3813 = vmatprep.subr.mxu0 0.0
  %3814 = vmatpush1.msra.mxu0 0.0
  %3815 = vmatprep.subr.mxu0 0.0
  %3816 = vmatpush1.msra.mxu0 0.0
  %3817 = vmatprep.subr.mxu0 0.0
  %3818 = vmatpush1.msra.mxu0 0.0
  %3819 = vmatprep.subr.mxu0 0.0
  %3820 = vmatpush1.msra.mxu0 0.0
  %3821 = vmatprep.subr.mxu0 0.0
  %3822 = vmatpush1.msra.mxu0 0.0
  %3823 = vmatprep.subr.mxu0 0.0
  %3824 = vmatpush1.msra.mxu0 0.0
  %3825 = vmatprep.subr.mxu0 0.0
  %3826 = vmatpush1.msra.mxu0 0.0
  %3827 = vmatprep.subr.mxu0 0.0
  %3828 = vmatpush1.msra.mxu0 0.0
  %3829 = vmatprep.subr.mxu0 0.0
  %3830 = vmatpush1.msra.mxu0 0.0
  %3831 = vmatprep.subr.mxu0 0.0
  %3832 = vmatpush1.msra.mxu0 0.0
  %3833 = vmatprep.subr.mxu0 0.0
  %3834 = vmatpush1.msra.mxu0 0.0
  %3835 = vmatprep.subr.mxu0 0.0
  %3836 = vmatpush1.msra.mxu0 0.0
  %3837 = vmatprep.subr.mxu0 0.0
  %3838 = vmatpush1.msra.mxu0 0.0
  %3839 = vmatprep.subr.mxu0 0.0
  %3840 = vmatpush1.msra.mxu0 0.0
  %3841 = vmatprep.subr.mxu0 0.0
  %3842 = vmatpush1.msra.mxu0 0.0
  %3843 = vmatprep.subr.mxu0 0.0
  %3844 = vmatpush1.msra.mxu0 0.0
  %3845 = vmatprep.subr.mxu0 0.0
  %3846 = vmatpush1.msra.mxu0 0.0
  %3847 = vmatprep.subr.mxu0 0.0
  %3848 = vmatpush1.msra.mxu0 0.0
  %3849 = vmatprep.subr.mxu0 0.0
  %3850 = vmatpush1.msra.mxu0 0.0
  %3851 = vmatprep.subr.mxu0 0.0
  %3852 = vmatpush1.msra.mxu0 0.0
  %3853 = vmatprep.subr.mxu0 0.0
  %3854 = vmatpush1.msra.mxu0 0.0
  %3855 = vmatprep.subr.mxu0 0.0
  %3856 = vmatpush1.msra.mxu0 0.0
  %3857 = vmatprep.subr.mxu0 0.0
  %3858 = vmatpush1.msra.mxu0 0.0
  %3859 = vmatprep.subr.mxu0 0.0
  %3860 = vmatpush1.msra.mxu0 0.0
  %3861 = vmatprep.subr.mxu0 0.0
  %3862 = vmatpush1.msra.mxu0 0.0
  %3863 = vmatprep.subr.mxu0 0.0
  %3864 = vmatpush1.msra.mxu0 0.0
  %3865 = vmatprep.mubr.f32.mxu0 0.0
  %3866 = vmatmul.mubr.f32.gmra.mrb[0].mxu0 %v3787
  %v3867 = vpop.f32.mrb[0].mxu0
  %v3868 = vadd.f32 %v3784, %v3867
  %v3869 = vpop.f32.mrb[0].mxu0
  %3870 = vmatprep.mubr.f32.mxu0 0.0
  %3871 = vmatmul.mubr.f32.gmra.mrb[0].mxu0 %v3790
  %v3872 = vpop.f32.mrb[0].mxu0
  %v3873 = vadd.f32 %v3784, %v3872
  %v3874 = vpop.f32.mrb[0].mxu0
  %3875 = vmatprep.mubr.f32.mxu0 0.0
  %3876 = vmatmul.mubr.f32.gmra.mrb[0].mxu0 %v3793
  %v3877 = vpop.f32.mrb[0].mxu0
  %v3878 = vadd.f32 %v3784, %v3877
  %v3879 = vpop.f32.mrb[0].mxu0
  %3880 = vmatprep.mubr.f32.mxu0 0.0
  %3881 = vmatmul.mubr.f32.gmra.mrb[0].mxu0 %v3796
  %v3882 = vpop.f32.mrb[0].mxu0
  %v3883 = vadd.f32 %v3784, %v3882
  %v3884 = vpop.f32.mrb[0].mxu0
  %3885 = vmatprep.mubr.f32.mxu0 0.0
  %3886 = vmatmul.mubr.f32.gmra.mrb[0].mxu0 %v3799
  %v3887 = vpop.f32.mrb[0].mxu0
  %v3888 = vadd.f32 %v3784, %v3887
  %v3889 = vpop.f32.mrb[0].mxu0
  %3890 = vdwg.mxu0
  %v3891 = vmul.f32 %v3868, 0.5
  %v3892 = vmul.f32 %v3873, 0.5
  %v3893 = vmul.f32 %v3878, 0.5
  %v3894 = vmul.f32 %v3883, 0.5
  %v3895 = vmul.f32 %v3888, 0.5
  %v3896 = vmul.f32 %v3868, 0.70710677
  %v3897 = vmul.f32 %v3873, 0.70710677
  %v3898 = vmul.f32 %v3878, 0.70710677
  %v3899 = vmul.f32 %v3883, 0.70710677
  %v3900 = vmul.f32 %v3888, 0.70710677
  %v3901 = verf.f32.pop %v3896
  %v3902 = verf.f32.pop %v3897
  %v3903 = verf.f32.pop %v3898
  %v3904 = verf.f32.pop %v3899
  %v3905 = verf.f32.pop %v3900
  %v3906 = vadd.f32 %v3901, 1.0
  %v3907 = vadd.f32 %v3902, 1.0
  %v3908 = vadd.f32 %v3903, 1.0
  %v3909 = vadd.f32 %v3904, 1.0
  %v3910 = vadd.f32 %v3905, 1.0
  %v3911 = vmul.f32 %v3891, %v3906
  %v3912 = vmul.f32 %v3892, %v3907
  %v3913 = vmul.f32 %v3893, %v3908
  %v3914 = vmul.f32 %v3894, %v3909
  %v3915 = vmul.f32 %v3895, %v3910
  %s3916 = scalar_lea.vmem %s9, 64
  %v3917 = vld [vmem:[%s3916] sm:$0xff]
  %v3918 = vld [vmem:[%s3916 + $0x8] sm:$0xff]
  %v3919 = vld [vmem:[%s3916 + $0x10] sm:$0xff]
  %v3920 = vld [vmem:[%s3916 + $0x18] sm:$0xff]
  %v3921 = vld [vmem:[%s3916 + $0x20] sm:$0xff]
  %v3922 = vld [vmem:[%s3916 + $0x28] sm:$0xff]
  %v3923 = vld [vmem:[%s3916 + $0x30] sm:$0xff]
  %v3924 = vld [vmem:[%s3916 + $0x38] sm:$0xff]
  %v3925 = vlaneseq
  %v3926 = vshrl.u32 %v3925, 7
  %v3927 = vsub.s32 5, %v3926
  %v3928 = vrot.slane %v2150, %v3927
  %v3930 = vsel %vm2038, %v3911, 0
  %v3933 = vsel %vm2038, %v3912, 0
  %v3936 = vsel %vm2038, %v3913, 0
  %v3939 = vsel %vm2038, %v3914, 0
  %v3942 = vsel %vm2038, %v3915, 0
  %3944 = vmatprep.subr.mxu0 0.0
  %3945 = vmatpush1.msra.mxu0 %v3917
  %3946 = vmatprep.subr.mxu0 0.0
  %3947 = vmatpush1.msra.mxu0 %v3918
  %3948 = vmatprep.subr.mxu0 0.0
  %3949 = vmatpush1.msra.mxu0 %v3919
  %3950 = vmatprep.subr.mxu0 0.0
  %3951 = vmatpush1.msra.mxu0 %v3920
  %3952 = vmatprep.subr.mxu0 0.0
  %3953 = vmatpush1.msra.mxu0 %v3921
  %3954 = vmatprep.subr.mxu0 0.0
  %3955 = vmatpush1.msra.mxu0 %v3922
  %3956 = vmatprep.subr.mxu0 0.0
  %3957 = vmatpush1.msra.mxu0 %v3923
  %3958 = vmatprep.subr.mxu0 0.0
  %3959 = vmatpush1.msra.mxu0 %v3924
  %3960 = vmatprep.subr.mxu0 0.0
  %3961 = vmatpush1.msra.mxu0 0.0
  %3962 = vmatprep.subr.mxu0 0.0
  %3963 = vmatpush1.msra.mxu0 0.0
  %3964 = vmatprep.subr.mxu0 0.0
  %3965 = vmatpush1.msra.mxu0 0.0
  %3966 = vmatprep.subr.mxu0 0.0
  %3967 = vmatpush1.msra.mxu0 0.0
  %3968 = vmatprep.subr.mxu0 0.0
  %3969 = vmatpush1.msra.mxu0 0.0
  %3970 = vmatprep.subr.mxu0 0.0
  %3971 = vmatpush1.msra.mxu0 0.0
  %3972 = vmatprep.subr.mxu0 0.0
  %3973 = vmatpush1.msra.mxu0 0.0
  %3974 = vmatprep.subr.mxu0 0.0
  %3975 = vmatpush1.msra.mxu0 0.0
  %3976 = vmatprep.subr.mxu0 0.0
  %3977 = vmatpush1.msra.mxu0 0.0
  %3978 = vmatprep.subr.mxu0 0.0
  %3979 = vmatpush1.msra.mxu0 0.0
  %3980 = vmatprep.subr.mxu0 0.0
  %3981 = vmatpush1.msra.mxu0 0.0
  %3982 = vmatprep.subr.mxu0 0.0
  %3983 = vmatpush1.msra.mxu0 0.0
  %3984 = vmatprep.subr.mxu0 0.0
  %3985 = vmatpush1.msra.mxu0 0.0
  %3986 = vmatprep.subr.mxu0 0.0
  %3987 = vmatpush1.msra.mxu0 0.0
  %3988 = vmatprep.subr.mxu0 0.0
  %3989 = vmatpush1.msra.mxu0 0.0
  %3990 = vmatprep.subr.mxu0 0.0
  %3991 = vmatpush1.msra.mxu0 0.0
  %3992 = vmatprep.subr.mxu0 0.0
  %3993 = vmatpush1.msra.mxu0 0.0
  %3994 = vmatprep.subr.mxu0 0.0
  %3995 = vmatpush1.msra.mxu0 0.0
  %3996 = vmatprep.subr.mxu0 0.0
  %3997 = vmatpush1.msra.mxu0 0.0
  %3998 = vmatprep.subr.mxu0 0.0
  %3999 = vmatpush1.msra.mxu0 0.0
  %4000 = vmatprep.subr.mxu0 0.0
  %4001 = vmatpush1.msra.mxu0 0.0
  %4002 = vmatprep.subr.mxu0 0.0
  %4003 = vmatpush1.msra.mxu0 0.0
  %4004 = vmatprep.subr.mxu0 0.0
  %4005 = vmatpush1.msra.mxu0 0.0
  %4006 = vmatprep.subr.mxu0 0.0
  %4007 = vmatpush1.msra.mxu0 0.0
  %4008 = vmatprep.mubr.f32.mxu0 0.0
  %4009 = vmatmul.mubr.f32.gmra.mrb[0].mxu0 %v3930
  %v4010 = vpop.f32.mrb[0].mxu0
  %v4011 = vadd.f32 %v3928, %v4010
  %v4012 = vpop.f32.mrb[0].mxu0
  %4013 = vmatprep.mubr.f32.mxu0 0.0
  %4014 = vmatmul.mubr.f32.gmra.mrb[0].mxu0 %v3933
  %v4015 = vpop.f32.mrb[0].mxu0
  %v4016 = vadd.f32 %v3928, %v4015
  %v4017 = vpop.f32.mrb[0].mxu0
  %4018 = vmatprep.mubr.f32.mxu0 0.0
  %4019 = vmatmul.mubr.f32.gmra.mrb[0].mxu0 %v3936
  %v4020 = vpop.f32.mrb[0].mxu0
  %v4021 = vadd.f32 %v3928, %v4020
  %v4022 = vpop.f32.mrb[0].mxu0
  %4023 = vmatprep.mubr.f32.mxu0 0.0
  %4024 = vmatmul.mubr.f32.gmra.mrb[0].mxu0 %v3939
  %v4025 = vpop.f32.mrb[0].mxu0
  %v4026 = vadd.f32 %v3928, %v4025
  %v4027 = vpop.f32.mrb[0].mxu0
  %4028 = vmatprep.mubr.f32.mxu0 0.0
  %4029 = vmatmul.mubr.f32.gmra.mrb[0].mxu0 %v3942
  %v4030 = vpop.f32.mrb[0].mxu0
  %v4031 = vadd.f32 %v3928, %v4030
  %v4032 = vpop.f32.mrb[0].mxu0
  %4033 = vdwg.mxu0
  %v4034 = vadd.f32 %v4011, %v3685
  %v4035 = vadd.f32 %v4016, %v3686
  %v4036 = vadd.f32 %v4021, %v3687
  %v4037 = vadd.f32 %v4026, %v3688
  %v4038 = vadd.f32 %v4031, %v3689
  %v4039 = vld [vmem:[%s3] sm:$0x3]
  %v4040 = vsel %vm244, %v4034, 0.0
  %4041 = vadd.xlane.f32.xlu0 %v4040
  %v4042 = vpop.xlane.xlu0 %4041
  %v4043 = vsel %vm244, %v4035, 0.0
  %4044 = vadd.xlane.f32.xlu0 %v4043
  %v4045 = vpop.xlane.xlu0 %4044
  %v4046 = vsel %vm244, %v4036, 0.0
  %4047 = vadd.xlane.f32.xlu0 %v4046
  %v4048 = vpop.xlane.xlu0 %4047
  %v4049 = vsel %vm244, %v4037, 0.0
  %4050 = vadd.xlane.f32.xlu0 %v4049
  %v4051 = vpop.xlane.xlu0 %4050
  %v4052 = vsel %vm257, %v4038, 0.0
  %4053 = vadd.xlane.f32.xlu0 %v4052
  %v4054 = vpop.xlane.xlu0 %4053
  %v4055 = vmul.f32 %v4042, %v261
  %v4056 = vmul.f32 %v4045, %v261
  %v4057 = vmul.f32 %v4048, %v261
  %v4058 = vmul.f32 %v4051, %v261
  %v4059 = vmul.f32 %v4054, %v261
  %v4060 = vsub.f32 %v4034, %v4055
  %v4061 = vsub.f32 %v4035, %v4056
  %v4062 = vsub.f32 %v4036, %v4057
  %v4063 = vsub.f32 %v4037, %v4058
  %v4064 = vsub.f32 %v4038, %v4059
  %v4065 = vmul.f32 %v4060, %v4060
  %v4066 = vmul.f32 %v4061, %v4061
  %v4067 = vmul.f32 %v4062, %v4062
  %v4068 = vmul.f32 %v4063, %v4063
  %v4069 = vmul.f32 %v4064, %v4064
  %v4070 = vsel %vm244, %v4065, 0.0
  %4071 = vadd.xlane.f32.xlu0 %v4070
  %v4072 = vpop.xlane.xlu0 %4071
  %v4073 = vsel %vm244, %v4066, 0.0
  %4074 = vadd.xlane.f32.xlu0 %v4073
  %v4075 = vpop.xlane.xlu0 %4074
  %v4076 = vsel %vm244, %v4067, 0.0
  %4077 = vadd.xlane.f32.xlu0 %v4076
  %v4078 = vpop.xlane.xlu0 %4077
  %v4079 = vsel %vm244, %v4068, 0.0
  %4080 = vadd.xlane.f32.xlu0 %v4079
  %v4081 = vpop.xlane.xlu0 %4080
  %v4082 = vsel %vm257, %v4069, 0.0
  %4083 = vadd.xlane.f32.xlu0 %v4082
  %v4084 = vpop.xlane.xlu0 %4083
  %v4085 = vmul.f32 %v4072, %v261
  %v4086 = vmul.f32 %v4075, %v261
  %v4087 = vmul.f32 %v4078, %v261
  %v4088 = vmul.f32 %v4081, %v261
  %v4089 = vmul.f32 %v4084, %v261
  %v4090 = vadd.f32 %v4085, 1e-06
  %v4091 = vadd.f32 %v4086, 1e-06
  %v4092 = vadd.f32 %v4087, 1e-06
  %v4093 = vadd.f32 %v4088, 1e-06
  %v4094 = vadd.f32 %v4089, 1e-06
  %v4095 = vrsqrt.pop %v4090
  %v4096 = vrsqrt.pop %v4091
  %v4097 = vrsqrt.pop %v4092
  %v4098 = vrsqrt.pop %v4093
  %v4099 = vrsqrt.pop %v4094
  %v4100 = vmul.f32 %v4060, %v4095
  %v4101 = vmul.f32 %v4061, %v4096
  %v4102 = vmul.f32 %v4062, %v4097
  %v4103 = vmul.f32 %v4063, %v4098
  %v4104 = vmul.f32 %v4064, %v4099
  %v4105 = vlaneseq
  %v4106 = vshrl.u32 %v4105, 7
  %v4107 = vsub.s32 0, %v4106
  %v4108 = vrot.slane %v4039, %v4107
  %v4109 = vmul.f32 %v4100, %v4108
  %v4110 = vmul.f32 %v4101, %v4108
  %v4111 = vmul.f32 %v4102, %v4108
  %v4112 = vmul.f32 %v4103, %v4108
  %v4113 = vmul.f32 %v4104, %v4108
  %v4114 = vlaneseq
  %v4115 = vshrl.u32 %v4114, 7
  %v4116 = vsub.s32 1, %v4115
  %v4117 = vrot.slane %v4039, %v4116
  %v4118 = vadd.f32 %v4109, %v4117
  %v4119 = vadd.f32 %v4110, %v4117
  %v4120 = vadd.f32 %v4111, %v4117
  %v4121 = vadd.f32 %v4112, %v4117
  %v4122 = vadd.f32 %v4113, %v4117
  %4123 = vst.msk [vmem:[%s11] sm:$0xff] %vm244, %v4118
  %4124 = vst.msk [vmem:[%s11 + $0x8] sm:$0xff] %vm244, %v4119
  %4125 = vst.msk [vmem:[%s11 + $0x10] sm:$0xff] %vm244, %v4120
  %4126 = vst.msk [vmem:[%s11 + $0x18] sm:$0xff] %vm244, %v4121
  %4127 = vst.msk [vmem:[%s11 + $0x20] sm:$0x3] %vm257, %v4122
  // Predicated region
  $region46: #{transformer_forward.1} parent=0 // pred_check
    _
  $region47: #{transformer_forward.1} parent=0 // pred_check_branch
    %4129 = sbr.rel (0) target = $region49
  $region48: #{transformer_forward.1} parent=0 // pred_region
    _
  $region49: #{transformer_forward.1} parent=0 // pred_fallthru
    _
  // Predicated region
  $region50: #{transformer_forward.1} parent=0 // pred_check
    _
  $region51: #{transformer_forward.1} parent=0 // pred_check_branch
    %4131 = sbr.rel (0) target = $region53
  $region52: #{transformer_forward.1} parent=0 // pred_region
    _
  $region53: #{transformer_forward.1} parent=0 // pred_fallthru
    _

</llo_original>
